<compile_context>
chip_gen: v7x
topology: tpu7x:2x2x1
jax: 0.10.0
libtpu: 0.0.40
codegen_flags: <defaults>
</compile_context>

<pallas_src>
import math
import functools

import jax
import jax.numpy as jnp
from jax.experimental import pallas as pl
from jax.experimental.pallas import tpu as pltpu


# ----------------------------- fused Pallas kernel -----------------------------

def _decoder_cycle_kernel(tokens_ref, k_ref, v_ref, bias_ref,
                          w_attn1_ref, b_attn1_ref,
                          w_attn2_ref, b_attn2_ref,
                          ff_w1_ref, ff_b1_ref, ff_w2_ref, ff_b2_ref,
                          out_w_ref, out_b_ref,
                          probs_ref,
                          *, heads, n_layers, iteration):
    # Per-grid-step (one batch element) blocks:
    #   tokens_ref/k_ref/v_ref: [1, S, D]   bias_ref: [1, S, S]  (additive 0/-1e9)
    #   w_attn*: [4, D, D] stacked (wq, wk, wv, wo)   b_attn*: [4, D]
    #   ff_w1: [D, Dff]  ff_b1: [1, Dff]  ff_w2: [Dff, D]  ff_b2: [1, D]
    #   out_w: [D, V]    out_b: [1, V]    probs_ref: [1, 1, V]
    S = tokens_ref.shape[1]
    D = tokens_ref.shape[2]
    dh = D // heads
    scale = 1.0 / math.sqrt(dh)

    tokens = tokens_ref[0]                 # [S, D]
    k_in = k_ref[0]                        # [S, D]
    v_in = v_ref[0]                        # [S, D]
    bias = bias_ref[0]                     # [S, S]

    w1 = w_attn1_ref[...]                  # [4, D, D]
    b1 = b_attn1_ref[...]                  # [4, D]
    w2 = w_attn2_ref[...]
    b2 = b_attn2_ref[...]

    def proj(x, w, b):
        return jnp.dot(x, w, preferred_element_type=jnp.float32) + b

    def mha(q_proj, k_proj, v_proj, wo, bo, attn_bias):
        # q_proj/k_proj/v_proj: [S, D] (already projected). All heads in-kernel;
        # the output projection is accumulated per head (== concat(ctx) @ wo).
        acc = None
        for h in range(heads):
            sl = slice(h * dh, (h + 1) * dh)
            qh, kh, vh = q_proj[:, sl], k_proj[:, sl], v_proj[:, sl]
            # scores = qh @ kh^T without an explicit transpose (contract Dh dims).
            s = jax.lax.dot_general(qh, kh, (((1,), (1,)), ((), ())),
                                    preferred_element_type=jnp.float32) * scale
            if attn_bias is not None:
                s = s + attn_bias
            s = s - jnp.max(s, axis=-1, keepdims=True)
            p = jnp.exp(s)
            p = p * pl.reciprocal(jnp.sum(p, axis=-1, keepdims=True), approx=True)
            ctx = jnp.dot(p, vh, preferred_element_type=jnp.float32)      # [S, dh]
            part = jnp.dot(ctx, wo[sl, :], preferred_element_type=jnp.float32)  # [S, D]
            acc = part if acc is None else acc + part
        return acc + bo

    output = tokens
    for _ in range(n_layers):
        # Masked MHA: the query is ALWAYS the original embedded `tokens`
        # (reference semantics), keys/values are the encoder k/v.
        q1 = proj(tokens, w1[0], b1[0:1, :])
        k1 = proj(k_in,   w1[1], b1[1:2, :])
        v1 = proj(v_in,   w1[2], b1[2:3, :])
        q = mha(q1, k1, v1, w1[3], b1[3:4, :], bias)

        # Cross MHA (no mask).
        q2 = proj(q,    w2[0], b2[0:1, :])
        k2 = proj(k_in, w2[1], b2[1:2, :])
        v2 = proj(v_in, w2[2], b2[2:3, :])
        output = mha(q2, k2, v2, w2[3], b2[3:4, :], None)

        # FFN: Linear -> ReLU -> Linear.
        h_ff = jnp.maximum(proj(output, ff_w1_ref[...], ff_b1_ref[...]), 0.0)
        output = proj(h_ff, ff_w2_ref[...], ff_b2_ref[...])

    # Final: select position `iteration`, vocab projection, softmax (exact divide
    # so the output is a proper probability distribution).
    x_iter = output[iteration:iteration + 1, :]                     # [1, D]
    logits = proj(x_iter, out_w_ref[...], out_b_ref[...])           # [1, V]
    logits = logits - jnp.max(logits, axis=-1, keepdims=True)
    e = jnp.exp(logits)
    probs_ref[0] = e / jnp.sum(e, axis=-1, keepdims=True)


def decoder_cycle_forward(params, x_tokens, k, v, N, mask, iteration,
                          *, heads, d_model):
    """Full DecoderCycle forward. Returns softmax probs of shape [B, vocab]."""
    B, S = x_tokens.shape
    D = d_model
    V = params["out_w"].shape[1]
    d_ff = params["ff_w1"].shape[1]

    # Glue: embedding gather + positional encoding (dropout = identity in eval).
    tokens = params["embedding"][x_tokens] * math.sqrt(d_model) \
        + params["pe"][:S][None, :, :]                                   # [B,S,D]

    # Additive attention bias (0 keep / -1e9 masked), precomputed once.
    if mask is None:
        bias = jnp.zeros((B, S, S), jnp.float32)
    else:
        bias = jnp.where(mask == 0, -1e9, 0.0).astype(jnp.float32)       # [B,S,S]

    # Stack each MHA's weights so the kernel takes few, VMEM-resident operands.
    p1, p2 = params["mask_attn"], params["attn"]
    w_attn1 = jnp.stack([p1["wq"], p1["wk"], p1["wv"], p1["wo"]])        # [4,D,D]
    b_attn1 = jnp.stack([p1["bq"], p1["bk"], p1["bv"], p1["bo"]])        # [4,D]
    w_attn2 = jnp.stack([p2["wq"], p2["wk"], p2["wv"], p2["wo"]])
    b_attn2 = jnp.stack([p2["bq"], p2["bk"], p2["bv"], p2["bo"]])

    kernel = functools.partial(_decoder_cycle_kernel,
                               heads=heads, n_layers=int(N),
                               iteration=int(iteration))

    shared3 = lambda b: (0, 0, 0)
    shared2 = lambda b: (0, 0)
    per_b3 = lambda b: (b, 0, 0)

    out = pl.pallas_call(
        kernel,
        out_shape=jax.ShapeDtypeStruct((B, 1, V), jnp.float32),
        grid=(B,),
        in_specs=[
            pl.BlockSpec((1, S, D), per_b3),        # tokens
            pl.BlockSpec((1, S, D), per_b3),        # k
            pl.BlockSpec((1, S, D), per_b3),        # v
            pl.BlockSpec((1, S, S), per_b3),        # additive mask bias
            pl.BlockSpec((4, D, D), shared3),       # masked-MHA weights
            pl.BlockSpec((4, D), shared2),          # masked-MHA biases
            pl.BlockSpec((4, D, D), shared3),       # cross-MHA weights
            pl.BlockSpec((4, D), shared2),          # cross-MHA biases
            pl.BlockSpec((D, d_ff), shared2),       # ff_w1
            pl.BlockSpec((1, d_ff), shared2),       # ff_b1
            pl.BlockSpec((d_ff, D), shared2),       # ff_w2
            pl.BlockSpec((1, D), shared2),          # ff_b2
            pl.BlockSpec((D, V), shared2),          # out_w
            pl.BlockSpec((1, V), shared2),          # out_b
        ],
        out_specs=pl.BlockSpec((1, 1, V), per_b3),
        compiler_params=pltpu.CompilerParams(dimension_semantics=("parallel",)),
    )(tokens, k, v, bias,
      w_attn1, b_attn1, w_attn2, b_attn2,
      params["ff_w1"], params["ff_b1"].reshape(1, d_ff),
      params["ff_w2"], params["ff_b2"].reshape(1, D),
      params["out_w"], params["out_b"].reshape(1, V))

    return out.reshape(B, V)


# ----------------------------- parameters / glue -----------------------------

def make_positional_encoding(max_seq_len, d_model):
    pos = jnp.arange(max_seq_len, dtype=jnp.float32)[:, None]       # [S,1]
    i = jnp.arange(0, d_model, 2, dtype=jnp.float32)[None, :]       # [1,D/2]
    angle = pos / jnp.power(10000.0, i / d_model)
    pe = jnp.zeros((max_seq_len, d_model), jnp.float32)
    pe = pe.at[:, 0::2].set(jnp.sin(angle))
    pe = pe.at[:, 1::2].set(jnp.cos(angle))
    return pe


def init_params(key, vocab, heads, d_model, d_ff, max_seq_len):
    ks = jax.random.split(key, 8)
    s = 0.02

    def mha_params(k4):
        k0, k1, k2, k3 = jax.random.split(k4, 4)
        return {
            "wq": s * jax.random.normal(k0, (d_model, d_model), jnp.float32),
            "bq": jnp.zeros((d_model,), jnp.float32),
            "wk": s * jax.random.normal(k1, (d_model, d_model), jnp.float32),
            "bk": jnp.zeros((d_model,), jnp.float32),
            "wv": s * jax.random.normal(k2, (d_model, d_model), jnp.float32),
            "bv": jnp.zeros((d_model,), jnp.float32),
            "wo": s * jax.random.normal(k3, (d_model, d_model), jnp.float32),
            "bo": jnp.zeros((d_model,), jnp.float32),
        }

    return {
        "embedding": s * jax.random.normal(ks[0], (vocab, d_model), jnp.float32),
        "pe": make_positional_encoding(max_seq_len, d_model),
        "mask_attn": mha_params(ks[1]),
        "attn": mha_params(ks[2]),
        "ff_w1": s * jax.random.normal(ks[3], (d_model, d_ff), jnp.float32),
        "ff_b1": jnp.zeros((d_ff,), jnp.float32),
        "ff_w2": s * jax.random.normal(ks[4], (d_ff, d_model), jnp.float32),
        "ff_b2": jnp.zeros((d_model,), jnp.float32),
        "out_w": s * jax.random.normal(ks[5], (d_model, vocab), jnp.float32),
        "out_b": jnp.zeros((vocab,), jnp.float32),
    }


# -------------------------- pure-JAX reference (check) --------------------------

def _reference_forward(params, x_tokens, k, v, N, mask, iteration, *, heads, d_model):
    dh = d_model // heads

    def mha(p, q_in, k_in, v_in, m):
        B, Sq, _ = q_in.shape
        Sk = k_in.shape[1]
        q = q_in @ p["wq"] + p["bq"]
        kk = k_in @ p["wk"] + p["bk"]
        vv = v_in @ p["wv"] + p["bv"]
        q = q.reshape(B, Sq, heads, dh).transpose(0, 2, 1, 3)
        kk = kk.reshape(B, Sk, heads, dh).transpose(0, 2, 1, 3)
        vv = vv.reshape(B, Sk, heads, dh).transpose(0, 2, 1, 3)
        s = jnp.einsum("bhqd,bhkd->bhqk", q, kk) / math.sqrt(dh)
        if m is not None:
            s = jnp.where(m[:, None] == 0, -1e9, s)
        p_attn = jax.nn.softmax(s, axis=-1)
        ctx = jnp.einsum("bhqk,bhkd->bhqd", p_attn, vv)
        ctx = ctx.transpose(0, 2, 1, 3).reshape(B, Sq, d_model)
        return ctx @ p["wo"] + p["bo"]

    S = x_tokens.shape[1]
    tokens = params["embedding"][x_tokens] * math.sqrt(d_model) + params["pe"][:S][None]
    output = tokens
    for _ in range(N):
        q = mha(params["mask_attn"], tokens, k, v, mask)
        output = mha(params["attn"], q, k, v, None)
        output = jnp.maximum(output @ params["ff_w1"] + params["ff_b1"], 0.0)
        output = output @ params["ff_w2"] + params["ff_b2"]
    logits = output[:, iteration] @ params["out_w"] + params["out_b"]
    return jax.nn.softmax(logits, axis=-1)


# --------------------------------- main ------------------------------------

if __name__ == "__main__":
    # Small, module-consistent shapes.
    VOCAB = 128
    HEADS = 4
    D_MODEL = 32
    D_FF = 64
    MAX_SEQ = 8
    B = 2
    S = 8
    N = 2
    ITERATION = 3

    key = jax.random.PRNGKey(0)
    kp, kx, kk, kv = jax.random.split(key, 4)

    params = init_params(kp, VOCAB, HEADS, D_MODEL, D_FF, MAX_SEQ)

    x = jax.random.randint(kx, (B, S), 0, VOCAB, dtype=jnp.int32)           # token ids
    k_in = jax.random.normal(kk, (B, S, D_MODEL), jnp.float32)              # encoder k
    v_in = jax.random.normal(kv, (B, S, D_MODEL), jnp.float32)              # encoder v
    mask = jnp.tril(jnp.ones((S, S), jnp.float32))[None].repeat(B, axis=0)  # causal (1=keep)

    out = decoder_cycle_forward(params, x, k_in, v_in, N, mask, ITERATION,
                                heads=HEADS, d_model=D_MODEL)
    out = jax.block_until_ready(out)

    ref = _reference_forward(params, x, k_in, v_in, N, mask, ITERATION,
                             heads=HEADS, d_model=D_MODEL)

    assert out.shape == (B, VOCAB)
    assert jnp.allclose(jnp.sum(out, axis=-1), 1.0, atol=1e-4)
    assert jnp.allclose(out, ref, atol=2e-3), float(jnp.max(jnp.abs(out - ref)))
    print("KERNEL_OK")
</pallas_src>

<mosaic_0001>
module attributes {stable_mosaic.version = 11 : i64} {
  func.func @_decoder_cycle_kernel(%arg0: i32, %arg1: memref<1x8x32xf32, #tpu.memory_space<vmem>>, %arg2: memref<1x8x32xf32, #tpu.memory_space<vmem>>, %arg3: memref<1x8x32xf32, #tpu.memory_space<vmem>>, %arg4: memref<1x8x8xf32, #tpu.memory_space<vmem>>, %arg5: memref<4x32x32xf32, #tpu.memory_space<vmem>>, %arg6: memref<4x32xf32, #tpu.memory_space<vmem>>, %arg7: memref<4x32x32xf32, #tpu.memory_space<vmem>>, %arg8: memref<4x32xf32, #tpu.memory_space<vmem>>, %arg9: memref<32x64xf32, #tpu.memory_space<vmem>>, %arg10: memref<1x64xf32, #tpu.memory_space<vmem>>, %arg11: memref<64x32xf32, #tpu.memory_space<vmem>>, %arg12: memref<1x32xf32, #tpu.memory_space<vmem>>, %arg13: memref<32x128xf32, #tpu.memory_space<vmem>>, %arg14: memref<1x128xf32, #tpu.memory_space<vmem>>, %arg15: memref<1x1x128xf32, #tpu.memory_space<vmem>>) attributes {dimension_semantics = [#tpu.dimension_semantics<parallel>], iteration_bounds = array<i64: 2>, scalar_prefetch = 0 : i64, scratch_operands = 0 : i64, tpu.core_type = #tpu.core_type<tc>, window_params = [{transform_indices = @transform_0, window_bounds = array<i64: 1, 8, 32>}, {transform_indices = @transform_1, window_bounds = array<i64: 1, 8, 32>}, {transform_indices = @transform_2, window_bounds = array<i64: 1, 8, 32>}, {transform_indices = @transform_3, window_bounds = array<i64: 1, 8, 8>}, {pipeline_mode = #tpu.pipeline_mode<synchronous>, transform_indices = @transform_4, window_bounds = array<i64: 4, 32, 32>}, {pipeline_mode = #tpu.pipeline_mode<synchronous>, transform_indices = @transform_5, window_bounds = array<i64: 4, 32>}, {pipeline_mode = #tpu.pipeline_mode<synchronous>, transform_indices = @transform_6, window_bounds = array<i64: 4, 32, 32>}, {pipeline_mode = #tpu.pipeline_mode<synchronous>, transform_indices = @transform_7, window_bounds = array<i64: 4, 32>}, {pipeline_mode = #tpu.pipeline_mode<synchronous>, transform_indices = @transform_8, window_bounds = array<i64: 32, 64>}, {pipeline_mode = #tpu.pipeline_mode<synchronous>, transform_indices = @transform_9, window_bounds = array<i64: 1, 64>}, {pipeline_mode = #tpu.pipeline_mode<synchronous>, transform_indices = @transform_10, window_bounds = array<i64: 64, 32>}, {pipeline_mode = #tpu.pipeline_mode<synchronous>, transform_indices = @transform_11, window_bounds = array<i64: 1, 32>}, {pipeline_mode = #tpu.pipeline_mode<synchronous>, transform_indices = @transform_12, window_bounds = array<i64: 32, 128>}, {pipeline_mode = #tpu.pipeline_mode<synchronous>, transform_indices = @transform_13, window_bounds = array<i64: 1, 128>}, {transform_indices = @transform_14, window_bounds = array<i64: 1, 1, 128>}]} {
    %c0 = arith.constant 0 : index
    %c0_0 = arith.constant 0 : index
    %c0_1 = arith.constant 0 : index
    %0 = vector.load %arg1[%c0, %c0_0, %c0_1] : memref<1x8x32xf32, #tpu.memory_space<vmem>>, vector<1x8x32xf32>
    %1 = vector.shape_cast %0 : vector<1x8x32xf32> to vector<8x32xf32>
    %c0_2 = arith.constant 0 : index
    %c0_3 = arith.constant 0 : index
    %c0_4 = arith.constant 0 : index
    %2 = vector.load %arg2[%c0_2, %c0_3, %c0_4] : memref<1x8x32xf32, #tpu.memory_space<vmem>>, vector<1x8x32xf32>
    %3 = vector.shape_cast %2 : vector<1x8x32xf32> to vector<8x32xf32>
    %c0_5 = arith.constant 0 : index
    %c0_6 = arith.constant 0 : index
    %c0_7 = arith.constant 0 : index
    %4 = vector.load %arg3[%c0_5, %c0_6, %c0_7] : memref<1x8x32xf32, #tpu.memory_space<vmem>>, vector<1x8x32xf32>
    %5 = vector.shape_cast %4 : vector<1x8x32xf32> to vector<8x32xf32>
    %c0_8 = arith.constant 0 : index
    %c0_9 = arith.constant 0 : index
    %c0_10 = arith.constant 0 : index
    %6 = vector.load %arg4[%c0_8, %c0_9, %c0_10] : memref<1x8x8xf32, #tpu.memory_space<vmem>>, vector<1x8x8xf32>
    %7 = vector.shape_cast %6 : vector<1x8x8xf32> to vector<8x8xf32>
    %c0_11 = arith.constant 0 : index
    %c0_12 = arith.constant 0 : index
    %c0_13 = arith.constant 0 : index
    %8 = vector.load %arg5[%c0_11, %c0_12, %c0_13] : memref<4x32x32xf32, #tpu.memory_space<vmem>>, vector<4x32x32xf32>
    %c0_14 = arith.constant 0 : index
    %c0_15 = arith.constant 0 : index
    %9 = vector.load %arg6[%c0_14, %c0_15] : memref<4x32xf32, #tpu.memory_space<vmem>>, vector<4x32xf32>
    %c0_16 = arith.constant 0 : index
    %c0_17 = arith.constant 0 : index
    %c0_18 = arith.constant 0 : index
    %10 = vector.load %arg7[%c0_16, %c0_17, %c0_18] : memref<4x32x32xf32, #tpu.memory_space<vmem>>, vector<4x32x32xf32>
    %c0_19 = arith.constant 0 : index
    %c0_20 = arith.constant 0 : index
    %11 = vector.load %arg8[%c0_19, %c0_20] : memref<4x32xf32, #tpu.memory_space<vmem>>, vector<4x32xf32>
    %12 = vector.extract_strided_slice %8 {offsets = [0, 0, 0], sizes = [1, 32, 32], strides = [1, 1, 1]} : vector<4x32x32xf32> to vector<1x32x32xf32>
    %13 = vector.shape_cast %12 : vector<1x32x32xf32> to vector<32x32xf32>
    %14 = vector.extract_strided_slice %9 {offsets = [0, 0], sizes = [1, 32], strides = [1, 1]} : vector<4x32xf32> to vector<1x32xf32>
    %cst = arith.constant dense<0.000000e+00> : vector<8x32xf32>
    %15 = tpu.matmul %1, %13, %cst {dimension_numbers = #tpu.dot_dimension_numbers<[1], [0], [0], [1], [0, 0, 1, 1], [], []>} : vector<8x32xf32>, vector<32x32xf32>, vector<8x32xf32> -> vector<8x32xf32>
    %16 = vector.broadcast %14 : vector<1x32xf32> to vector<8x32xf32>
    %17 = arith.addf %15, %16 : vector<8x32xf32>
    %18 = vector.extract_strided_slice %8 {offsets = [1, 0, 0], sizes = [1, 32, 32], strides = [1, 1, 1]} : vector<4x32x32xf32> to vector<1x32x32xf32>
    %19 = vector.shape_cast %18 : vector<1x32x32xf32> to vector<32x32xf32>
    %20 = vector.extract_strided_slice %9 {offsets = [1, 0], sizes = [1, 32], strides = [1, 1]} : vector<4x32xf32> to vector<1x32xf32>
    %cst_21 = arith.constant dense<0.000000e+00> : vector<8x32xf32>
    %21 = tpu.matmul %3, %19, %cst_21 {dimension_numbers = #tpu.dot_dimension_numbers<[1], [0], [0], [1], [0, 0, 1, 1], [], []>} : vector<8x32xf32>, vector<32x32xf32>, vector<8x32xf32> -> vector<8x32xf32>
    %22 = vector.broadcast %20 : vector<1x32xf32> to vector<8x32xf32>
    %23 = arith.addf %21, %22 : vector<8x32xf32>
    %24 = vector.extract_strided_slice %8 {offsets = [2, 0, 0], sizes = [1, 32, 32], strides = [1, 1, 1]} : vector<4x32x32xf32> to vector<1x32x32xf32>
    %25 = vector.shape_cast %24 : vector<1x32x32xf32> to vector<32x32xf32>
    %26 = vector.extract_strided_slice %9 {offsets = [2, 0], sizes = [1, 32], strides = [1, 1]} : vector<4x32xf32> to vector<1x32xf32>
    %cst_22 = arith.constant dense<0.000000e+00> : vector<8x32xf32>
    %27 = tpu.matmul %5, %25, %cst_22 {dimension_numbers = #tpu.dot_dimension_numbers<[1], [0], [0], [1], [0, 0, 1, 1], [], []>} : vector<8x32xf32>, vector<32x32xf32>, vector<8x32xf32> -> vector<8x32xf32>
    %28 = vector.broadcast %26 : vector<1x32xf32> to vector<8x32xf32>
    %29 = arith.addf %27, %28 : vector<8x32xf32>
    %30 = vector.extract_strided_slice %8 {offsets = [3, 0, 0], sizes = [1, 32, 32], strides = [1, 1, 1]} : vector<4x32x32xf32> to vector<1x32x32xf32>
    %31 = vector.shape_cast %30 : vector<1x32x32xf32> to vector<32x32xf32>
    %32 = vector.extract_strided_slice %9 {offsets = [3, 0], sizes = [1, 32], strides = [1, 1]} : vector<4x32xf32> to vector<1x32xf32>
    %33 = vector.extract_strided_slice %17 {offsets = [0, 0], sizes = [8, 8], strides = [1, 1]} : vector<8x32xf32> to vector<8x8xf32>
    %34 = vector.extract_strided_slice %23 {offsets = [0, 0], sizes = [8, 8], strides = [1, 1]} : vector<8x32xf32> to vector<8x8xf32>
    %35 = vector.extract_strided_slice %29 {offsets = [0, 0], sizes = [8, 8], strides = [1, 1]} : vector<8x32xf32> to vector<8x8xf32>
    %cst_23 = arith.constant dense<0.000000e+00> : vector<8x8xf32>
    %36 = tpu.matmul %33, %34, %cst_23 {dimension_numbers = #tpu.dot_dimension_numbers<[1], [1], [0], [0], [0, 0, 1, 0], [], []>} : vector<8x8xf32>, vector<8x8xf32>, vector<8x8xf32> -> vector<8x8xf32>
    %cst_24 = arith.constant 0.353553385 : f32
    %37 = vector.broadcast %cst_24 : f32 to vector<8x8xf32>
    %38 = arith.mulf %36, %37 : vector<8x8xf32>
    %39 = arith.addf %38, %7 : vector<8x8xf32>
    %cst_25 = arith.constant dense<0xFF800000> : vector<8xf32>
    %40 = vector.multi_reduction <maximumf>, %39, %cst_25 [1] : vector<8x8xf32> to vector<8xf32>
    %41 = vector.shape_cast %40 : vector<8xf32> to vector<8x1xf32>
    %42 = vector.broadcast %41 : vector<8x1xf32> to vector<8x8xf32>
    %43 = arith.subf %39, %42 : vector<8x8xf32>
    %44 = math.exp %43 : vector<8x8xf32>
    %cst_26 = arith.constant dense<0.000000e+00> : vector<8xf32>
    %45 = vector.multi_reduction <add>, %44, %cst_26 [1] : vector<8x8xf32> to vector<8xf32>
    %46 = vector.shape_cast %45 : vector<8xf32> to vector<8x1xf32>
    %47 = tpu.reciprocal %46 {approx = true} : vector<8x1xf32> -> vector<8x1xf32>
    %48 = vector.broadcast %47 : vector<8x1xf32> to vector<8x8xf32>
    %49 = arith.mulf %44, %48 : vector<8x8xf32>
    %cst_27 = arith.constant dense<0.000000e+00> : vector<8x8xf32>
    %50 = tpu.matmul %49, %35, %cst_27 {dimension_numbers = #tpu.dot_dimension_numbers<[1], [0], [0], [1], [0, 0, 1, 1], [], []>} : vector<8x8xf32>, vector<8x8xf32>, vector<8x8xf32> -> vector<8x8xf32>
    %51 = vector.extract_strided_slice %31 {offsets = [0, 0], sizes = [8, 32], strides = [1, 1]} : vector<32x32xf32> to vector<8x32xf32>
    %cst_28 = arith.constant dense<0.000000e+00> : vector<8x32xf32>
    %52 = tpu.matmul %50, %51, %cst_28 {dimension_numbers = #tpu.dot_dimension_numbers<[1], [0], [0], [1], [0, 0, 1, 1], [], []>} : vector<8x8xf32>, vector<8x32xf32>, vector<8x32xf32> -> vector<8x32xf32>
    %53 = vector.extract_strided_slice %17 {offsets = [0, 8], sizes = [8, 8], strides = [1, 1]} : vector<8x32xf32> to vector<8x8xf32>
    %54 = vector.extract_strided_slice %23 {offsets = [0, 8], sizes = [8, 8], strides = [1, 1]} : vector<8x32xf32> to vector<8x8xf32>
    %55 = vector.extract_strided_slice %29 {offsets = [0, 8], sizes = [8, 8], strides = [1, 1]} : vector<8x32xf32> to vector<8x8xf32>
    %cst_29 = arith.constant dense<0.000000e+00> : vector<8x8xf32>
    %56 = tpu.matmul %53, %54, %cst_29 {dimension_numbers = #tpu.dot_dimension_numbers<[1], [1], [0], [0], [0, 0, 1, 0], [], []>} : vector<8x8xf32>, vector<8x8xf32>, vector<8x8xf32> -> vector<8x8xf32>
    %cst_30 = arith.constant 0.353553385 : f32
    %57 = vector.broadcast %cst_30 : f32 to vector<8x8xf32>
    %58 = arith.mulf %56, %57 : vector<8x8xf32>
    %59 = arith.addf %58, %7 : vector<8x8xf32>
    %cst_31 = arith.constant dense<0xFF800000> : vector<8xf32>
    %60 = vector.multi_reduction <maximumf>, %59, %cst_31 [1] : vector<8x8xf32> to vector<8xf32>
    %61 = vector.shape_cast %60 : vector<8xf32> to vector<8x1xf32>
    %62 = vector.broadcast %61 : vector<8x1xf32> to vector<8x8xf32>
    %63 = arith.subf %59, %62 : vector<8x8xf32>
    %64 = math.exp %63 : vector<8x8xf32>
    %cst_32 = arith.constant dense<0.000000e+00> : vector<8xf32>
    %65 = vector.multi_reduction <add>, %64, %cst_32 [1] : vector<8x8xf32> to vector<8xf32>
    %66 = vector.shape_cast %65 : vector<8xf32> to vector<8x1xf32>
    %67 = tpu.reciprocal %66 {approx = true} : vector<8x1xf32> -> vector<8x1xf32>
    %68 = vector.broadcast %67 : vector<8x1xf32> to vector<8x8xf32>
    %69 = arith.mulf %64, %68 : vector<8x8xf32>
    %cst_33 = arith.constant dense<0.000000e+00> : vector<8x8xf32>
    %70 = tpu.matmul %69, %55, %cst_33 {dimension_numbers = #tpu.dot_dimension_numbers<[1], [0], [0], [1], [0, 0, 1, 1], [], []>} : vector<8x8xf32>, vector<8x8xf32>, vector<8x8xf32> -> vector<8x8xf32>
    %71 = vector.extract_strided_slice %31 {offsets = [8, 0], sizes = [8, 32], strides = [1, 1]} : vector<32x32xf32> to vector<8x32xf32>
    %cst_34 = arith.constant dense<0.000000e+00> : vector<8x32xf32>
    %72 = tpu.matmul %70, %71, %cst_34 {dimension_numbers = #tpu.dot_dimension_numbers<[1], [0], [0], [1], [0, 0, 1, 1], [], []>} : vector<8x8xf32>, vector<8x32xf32>, vector<8x32xf32> -> vector<8x32xf32>
    %73 = arith.addf %52, %72 : vector<8x32xf32>
    %74 = vector.extract_strided_slice %17 {offsets = [0, 16], sizes = [8, 8], strides = [1, 1]} : vector<8x32xf32> to vector<8x8xf32>
    %75 = vector.extract_strided_slice %23 {offsets = [0, 16], sizes = [8, 8], strides = [1, 1]} : vector<8x32xf32> to vector<8x8xf32>
    %76 = vector.extract_strided_slice %29 {offsets = [0, 16], sizes = [8, 8], strides = [1, 1]} : vector<8x32xf32> to vector<8x8xf32>
    %cst_35 = arith.constant dense<0.000000e+00> : vector<8x8xf32>
    %77 = tpu.matmul %74, %75, %cst_35 {dimension_numbers = #tpu.dot_dimension_numbers<[1], [1], [0], [0], [0, 0, 1, 0], [], []>} : vector<8x8xf32>, vector<8x8xf32>, vector<8x8xf32> -> vector<8x8xf32>
    %cst_36 = arith.constant 0.353553385 : f32
    %78 = vector.broadcast %cst_36 : f32 to vector<8x8xf32>
    %79 = arith.mulf %77, %78 : vector<8x8xf32>
    %80 = arith.addf %79, %7 : vector<8x8xf32>
    %cst_37 = arith.constant dense<0xFF800000> : vector<8xf32>
    %81 = vector.multi_reduction <maximumf>, %80, %cst_37 [1] : vector<8x8xf32> to vector<8xf32>
    %82 = vector.shape_cast %81 : vector<8xf32> to vector<8x1xf32>
    %83 = vector.broadcast %82 : vector<8x1xf32> to vector<8x8xf32>
    %84 = arith.subf %80, %83 : vector<8x8xf32>
    %85 = math.exp %84 : vector<8x8xf32>
    %cst_38 = arith.constant dense<0.000000e+00> : vector<8xf32>
    %86 = vector.multi_reduction <add>, %85, %cst_38 [1] : vector<8x8xf32> to vector<8xf32>
    %87 = vector.shape_cast %86 : vector<8xf32> to vector<8x1xf32>
    %88 = tpu.reciprocal %87 {approx = true} : vector<8x1xf32> -> vector<8x1xf32>
    %89 = vector.broadcast %88 : vector<8x1xf32> to vector<8x8xf32>
    %90 = arith.mulf %85, %89 : vector<8x8xf32>
    %cst_39 = arith.constant dense<0.000000e+00> : vector<8x8xf32>
    %91 = tpu.matmul %90, %76, %cst_39 {dimension_numbers = #tpu.dot_dimension_numbers<[1], [0], [0], [1], [0, 0, 1, 1], [], []>} : vector<8x8xf32>, vector<8x8xf32>, vector<8x8xf32> -> vector<8x8xf32>
    %92 = vector.extract_strided_slice %31 {offsets = [16, 0], sizes = [8, 32], strides = [1, 1]} : vector<32x32xf32> to vector<8x32xf32>
    %cst_40 = arith.constant dense<0.000000e+00> : vector<8x32xf32>
    %93 = tpu.matmul %91, %92, %cst_40 {dimension_numbers = #tpu.dot_dimension_numbers<[1], [0], [0], [1], [0, 0, 1, 1], [], []>} : vector<8x8xf32>, vector<8x32xf32>, vector<8x32xf32> -> vector<8x32xf32>
    %94 = arith.addf %73, %93 : vector<8x32xf32>
    %95 = vector.extract_strided_slice %17 {offsets = [0, 24], sizes = [8, 8], strides = [1, 1]} : vector<8x32xf32> to vector<8x8xf32>
    %96 = vector.extract_strided_slice %23 {offsets = [0, 24], sizes = [8, 8], strides = [1, 1]} : vector<8x32xf32> to vector<8x8xf32>
    %97 = vector.extract_strided_slice %29 {offsets = [0, 24], sizes = [8, 8], strides = [1, 1]} : vector<8x32xf32> to vector<8x8xf32>
    %cst_41 = arith.constant dense<0.000000e+00> : vector<8x8xf32>
    %98 = tpu.matmul %95, %96, %cst_41 {dimension_numbers = #tpu.dot_dimension_numbers<[1], [1], [0], [0], [0, 0, 1, 0], [], []>} : vector<8x8xf32>, vector<8x8xf32>, vector<8x8xf32> -> vector<8x8xf32>
    %cst_42 = arith.constant 0.353553385 : f32
    %99 = vector.broadcast %cst_42 : f32 to vector<8x8xf32>
    %100 = arith.mulf %98, %99 : vector<8x8xf32>
    %101 = arith.addf %100, %7 : vector<8x8xf32>
    %cst_43 = arith.constant dense<0xFF800000> : vector<8xf32>
    %102 = vector.multi_reduction <maximumf>, %101, %cst_43 [1] : vector<8x8xf32> to vector<8xf32>
    %103 = vector.shape_cast %102 : vector<8xf32> to vector<8x1xf32>
    %104 = vector.broadcast %103 : vector<8x1xf32> to vector<8x8xf32>
    %105 = arith.subf %101, %104 : vector<8x8xf32>
    %106 = math.exp %105 : vector<8x8xf32>
    %cst_44 = arith.constant dense<0.000000e+00> : vector<8xf32>
    %107 = vector.multi_reduction <add>, %106, %cst_44 [1] : vector<8x8xf32> to vector<8xf32>
    %108 = vector.shape_cast %107 : vector<8xf32> to vector<8x1xf32>
    %109 = tpu.reciprocal %108 {approx = true} : vector<8x1xf32> -> vector<8x1xf32>
    %110 = vector.broadcast %109 : vector<8x1xf32> to vector<8x8xf32>
    %111 = arith.mulf %106, %110 : vector<8x8xf32>
    %cst_45 = arith.constant dense<0.000000e+00> : vector<8x8xf32>
    %112 = tpu.matmul %111, %97, %cst_45 {dimension_numbers = #tpu.dot_dimension_numbers<[1], [0], [0], [1], [0, 0, 1, 1], [], []>} : vector<8x8xf32>, vector<8x8xf32>, vector<8x8xf32> -> vector<8x8xf32>
    %113 = vector.extract_strided_slice %31 {offsets = [24, 0], sizes = [8, 32], strides = [1, 1]} : vector<32x32xf32> to vector<8x32xf32>
    %cst_46 = arith.constant dense<0.000000e+00> : vector<8x32xf32>
    %114 = tpu.matmul %112, %113, %cst_46 {dimension_numbers = #tpu.dot_dimension_numbers<[1], [0], [0], [1], [0, 0, 1, 1], [], []>} : vector<8x8xf32>, vector<8x32xf32>, vector<8x32xf32> -> vector<8x32xf32>
    %115 = arith.addf %94, %114 : vector<8x32xf32>
    %116 = vector.broadcast %32 : vector<1x32xf32> to vector<8x32xf32>
    %117 = arith.addf %115, %116 : vector<8x32xf32>
    %118 = vector.extract_strided_slice %10 {offsets = [0, 0, 0], sizes = [1, 32, 32], strides = [1, 1, 1]} : vector<4x32x32xf32> to vector<1x32x32xf32>
    %119 = vector.shape_cast %118 : vector<1x32x32xf32> to vector<32x32xf32>
    %120 = vector.extract_strided_slice %11 {offsets = [0, 0], sizes = [1, 32], strides = [1, 1]} : vector<4x32xf32> to vector<1x32xf32>
    %cst_47 = arith.constant dense<0.000000e+00> : vector<8x32xf32>
    %121 = tpu.matmul %117, %119, %cst_47 {dimension_numbers = #tpu.dot_dimension_numbers<[1], [0], [0], [1], [0, 0, 1, 1], [], []>} : vector<8x32xf32>, vector<32x32xf32>, vector<8x32xf32> -> vector<8x32xf32>
    %122 = vector.broadcast %120 : vector<1x32xf32> to vector<8x32xf32>
    %123 = arith.addf %121, %122 : vector<8x32xf32>
    %124 = vector.extract_strided_slice %10 {offsets = [1, 0, 0], sizes = [1, 32, 32], strides = [1, 1, 1]} : vector<4x32x32xf32> to vector<1x32x32xf32>
    %125 = vector.shape_cast %124 : vector<1x32x32xf32> to vector<32x32xf32>
    %126 = vector.extract_strided_slice %11 {offsets = [1, 0], sizes = [1, 32], strides = [1, 1]} : vector<4x32xf32> to vector<1x32xf32>
    %cst_48 = arith.constant dense<0.000000e+00> : vector<8x32xf32>
    %127 = tpu.matmul %3, %125, %cst_48 {dimension_numbers = #tpu.dot_dimension_numbers<[1], [0], [0], [1], [0, 0, 1, 1], [], []>} : vector<8x32xf32>, vector<32x32xf32>, vector<8x32xf32> -> vector<8x32xf32>
    %128 = vector.broadcast %126 : vector<1x32xf32> to vector<8x32xf32>
    %129 = arith.addf %127, %128 : vector<8x32xf32>
    %130 = vector.extract_strided_slice %10 {offsets = [2, 0, 0], sizes = [1, 32, 32], strides = [1, 1, 1]} : vector<4x32x32xf32> to vector<1x32x32xf32>
    %131 = vector.shape_cast %130 : vector<1x32x32xf32> to vector<32x32xf32>
    %132 = vector.extract_strided_slice %11 {offsets = [2, 0], sizes = [1, 32], strides = [1, 1]} : vector<4x32xf32> to vector<1x32xf32>
    %cst_49 = arith.constant dense<0.000000e+00> : vector<8x32xf32>
    %133 = tpu.matmul %5, %131, %cst_49 {dimension_numbers = #tpu.dot_dimension_numbers<[1], [0], [0], [1], [0, 0, 1, 1], [], []>} : vector<8x32xf32>, vector<32x32xf32>, vector<8x32xf32> -> vector<8x32xf32>
    %134 = vector.broadcast %132 : vector<1x32xf32> to vector<8x32xf32>
    %135 = arith.addf %133, %134 : vector<8x32xf32>
    %136 = vector.extract_strided_slice %10 {offsets = [3, 0, 0], sizes = [1, 32, 32], strides = [1, 1, 1]} : vector<4x32x32xf32> to vector<1x32x32xf32>
    %137 = vector.shape_cast %136 : vector<1x32x32xf32> to vector<32x32xf32>
    %138 = vector.extract_strided_slice %11 {offsets = [3, 0], sizes = [1, 32], strides = [1, 1]} : vector<4x32xf32> to vector<1x32xf32>
    %139 = vector.extract_strided_slice %123 {offsets = [0, 0], sizes = [8, 8], strides = [1, 1]} : vector<8x32xf32> to vector<8x8xf32>
    %140 = vector.extract_strided_slice %129 {offsets = [0, 0], sizes = [8, 8], strides = [1, 1]} : vector<8x32xf32> to vector<8x8xf32>
    %141 = vector.extract_strided_slice %135 {offsets = [0, 0], sizes = [8, 8], strides = [1, 1]} : vector<8x32xf32> to vector<8x8xf32>
    %cst_50 = arith.constant dense<0.000000e+00> : vector<8x8xf32>
    %142 = tpu.matmul %139, %140, %cst_50 {dimension_numbers = #tpu.dot_dimension_numbers<[1], [1], [0], [0], [0, 0, 1, 0], [], []>} : vector<8x8xf32>, vector<8x8xf32>, vector<8x8xf32> -> vector<8x8xf32>
    %cst_51 = arith.constant 0.353553385 : f32
    %143 = vector.broadcast %cst_51 : f32 to vector<8x8xf32>
    %144 = arith.mulf %142, %143 : vector<8x8xf32>
    %cst_52 = arith.constant dense<0xFF800000> : vector<8xf32>
    %145 = vector.multi_reduction <maximumf>, %144, %cst_52 [1] : vector<8x8xf32> to vector<8xf32>
    %146 = vector.shape_cast %145 : vector<8xf32> to vector<8x1xf32>
    %147 = vector.broadcast %146 : vector<8x1xf32> to vector<8x8xf32>
    %148 = arith.subf %144, %147 : vector<8x8xf32>
    %149 = math.exp %148 : vector<8x8xf32>
    %cst_53 = arith.constant dense<0.000000e+00> : vector<8xf32>
    %150 = vector.multi_reduction <add>, %149, %cst_53 [1] : vector<8x8xf32> to vector<8xf32>
    %151 = vector.shape_cast %150 : vector<8xf32> to vector<8x1xf32>
    %152 = tpu.reciprocal %151 {approx = true} : vector<8x1xf32> -> vector<8x1xf32>
    %153 = vector.broadcast %152 : vector<8x1xf32> to vector<8x8xf32>
    %154 = arith.mulf %149, %153 : vector<8x8xf32>
    %cst_54 = arith.constant dense<0.000000e+00> : vector<8x8xf32>
    %155 = tpu.matmul %154, %141, %cst_54 {dimension_numbers = #tpu.dot_dimension_numbers<[1], [0], [0], [1], [0, 0, 1, 1], [], []>} : vector<8x8xf32>, vector<8x8xf32>, vector<8x8xf32> -> vector<8x8xf32>
    %156 = vector.extract_strided_slice %137 {offsets = [0, 0], sizes = [8, 32], strides = [1, 1]} : vector<32x32xf32> to vector<8x32xf32>
    %cst_55 = arith.constant dense<0.000000e+00> : vector<8x32xf32>
    %157 = tpu.matmul %155, %156, %cst_55 {dimension_numbers = #tpu.dot_dimension_numbers<[1], [0], [0], [1], [0, 0, 1, 1], [], []>} : vector<8x8xf32>, vector<8x32xf32>, vector<8x32xf32> -> vector<8x32xf32>
    %158 = vector.extract_strided_slice %123 {offsets = [0, 8], sizes = [8, 8], strides = [1, 1]} : vector<8x32xf32> to vector<8x8xf32>
    %159 = vector.extract_strided_slice %129 {offsets = [0, 8], sizes = [8, 8], strides = [1, 1]} : vector<8x32xf32> to vector<8x8xf32>
    %160 = vector.extract_strided_slice %135 {offsets = [0, 8], sizes = [8, 8], strides = [1, 1]} : vector<8x32xf32> to vector<8x8xf32>
    %cst_56 = arith.constant dense<0.000000e+00> : vector<8x8xf32>
    %161 = tpu.matmul %158, %159, %cst_56 {dimension_numbers = #tpu.dot_dimension_numbers<[1], [1], [0], [0], [0, 0, 1, 0], [], []>} : vector<8x8xf32>, vector<8x8xf32>, vector<8x8xf32> -> vector<8x8xf32>
    %cst_57 = arith.constant 0.353553385 : f32
    %162 = vector.broadcast %cst_57 : f32 to vector<8x8xf32>
    %163 = arith.mulf %161, %162 : vector<8x8xf32>
    %cst_58 = arith.constant dense<0xFF800000> : vector<8xf32>
    %164 = vector.multi_reduction <maximumf>, %163, %cst_58 [1] : vector<8x8xf32> to vector<8xf32>
    %165 = vector.shape_cast %164 : vector<8xf32> to vector<8x1xf32>
    %166 = vector.broadcast %165 : vector<8x1xf32> to vector<8x8xf32>
    %167 = arith.subf %163, %166 : vector<8x8xf32>
    %168 = math.exp %167 : vector<8x8xf32>
    %cst_59 = arith.constant dense<0.000000e+00> : vector<8xf32>
    %169 = vector.multi_reduction <add>, %168, %cst_59 [1] : vector<8x8xf32> to vector<8xf32>
    %170 = vector.shape_cast %169 : vector<8xf32> to vector<8x1xf32>
    %171 = tpu.reciprocal %170 {approx = true} : vector<8x1xf32> -> vector<8x1xf32>
    %172 = vector.broadcast %171 : vector<8x1xf32> to vector<8x8xf32>
    %173 = arith.mulf %168, %172 : vector<8x8xf32>
    %cst_60 = arith.constant dense<0.000000e+00> : vector<8x8xf32>
    %174 = tpu.matmul %173, %160, %cst_60 {dimension_numbers = #tpu.dot_dimension_numbers<[1], [0], [0], [1], [0, 0, 1, 1], [], []>} : vector<8x8xf32>, vector<8x8xf32>, vector<8x8xf32> -> vector<8x8xf32>
    %175 = vector.extract_strided_slice %137 {offsets = [8, 0], sizes = [8, 32], strides = [1, 1]} : vector<32x32xf32> to vector<8x32xf32>
    %cst_61 = arith.constant dense<0.000000e+00> : vector<8x32xf32>
    %176 = tpu.matmul %174, %175, %cst_61 {dimension_numbers = #tpu.dot_dimension_numbers<[1], [0], [0], [1], [0, 0, 1, 1], [], []>} : vector<8x8xf32>, vector<8x32xf32>, vector<8x32xf32> -> vector<8x32xf32>
    %177 = arith.addf %157, %176 : vector<8x32xf32>
    %178 = vector.extract_strided_slice %123 {offsets = [0, 16], sizes = [8, 8], strides = [1, 1]} : vector<8x32xf32> to vector<8x8xf32>
    %179 = vector.extract_strided_slice %129 {offsets = [0, 16], sizes = [8, 8], strides = [1, 1]} : vector<8x32xf32> to vector<8x8xf32>
    %180 = vector.extract_strided_slice %135 {offsets = [0, 16], sizes = [8, 8], strides = [1, 1]} : vector<8x32xf32> to vector<8x8xf32>
    %cst_62 = arith.constant dense<0.000000e+00> : vector<8x8xf32>
    %181 = tpu.matmul %178, %179, %cst_62 {dimension_numbers = #tpu.dot_dimension_numbers<[1], [1], [0], [0], [0, 0, 1, 0], [], []>} : vector<8x8xf32>, vector<8x8xf32>, vector<8x8xf32> -> vector<8x8xf32>
    %cst_63 = arith.constant 0.353553385 : f32
    %182 = vector.broadcast %cst_63 : f32 to vector<8x8xf32>
    %183 = arith.mulf %181, %182 : vector<8x8xf32>
    %cst_64 = arith.constant dense<0xFF800000> : vector<8xf32>
    %184 = vector.multi_reduction <maximumf>, %183, %cst_64 [1] : vector<8x8xf32> to vector<8xf32>
    %185 = vector.shape_cast %184 : vector<8xf32> to vector<8x1xf32>
    %186 = vector.broadcast %185 : vector<8x1xf32> to vector<8x8xf32>
    %187 = arith.subf %183, %186 : vector<8x8xf32>
    %188 = math.exp %187 : vector<8x8xf32>
    %cst_65 = arith.constant dense<0.000000e+00> : vector<8xf32>
    %189 = vector.multi_reduction <add>, %188, %cst_65 [1] : vector<8x8xf32> to vector<8xf32>
    %190 = vector.shape_cast %189 : vector<8xf32> to vector<8x1xf32>
    %191 = tpu.reciprocal %190 {approx = true} : vector<8x1xf32> -> vector<8x1xf32>
    %192 = vector.broadcast %191 : vector<8x1xf32> to vector<8x8xf32>
    %193 = arith.mulf %188, %192 : vector<8x8xf32>
    %cst_66 = arith.constant dense<0.000000e+00> : vector<8x8xf32>
    %194 = tpu.matmul %193, %180, %cst_66 {dimension_numbers = #tpu.dot_dimension_numbers<[1], [0], [0], [1], [0, 0, 1, 1], [], []>} : vector<8x8xf32>, vector<8x8xf32>, vector<8x8xf32> -> vector<8x8xf32>
    %195 = vector.extract_strided_slice %137 {offsets = [16, 0], sizes = [8, 32], strides = [1, 1]} : vector<32x32xf32> to vector<8x32xf32>
    %cst_67 = arith.constant dense<0.000000e+00> : vector<8x32xf32>
    %196 = tpu.matmul %194, %195, %cst_67 {dimension_numbers = #tpu.dot_dimension_numbers<[1], [0], [0], [1], [0, 0, 1, 1], [], []>} : vector<8x8xf32>, vector<8x32xf32>, vector<8x32xf32> -> vector<8x32xf32>
    %197 = arith.addf %177, %196 : vector<8x32xf32>
    %198 = vector.extract_strided_slice %123 {offsets = [0, 24], sizes = [8, 8], strides = [1, 1]} : vector<8x32xf32> to vector<8x8xf32>
    %199 = vector.extract_strided_slice %129 {offsets = [0, 24], sizes = [8, 8], strides = [1, 1]} : vector<8x32xf32> to vector<8x8xf32>
    %200 = vector.extract_strided_slice %135 {offsets = [0, 24], sizes = [8, 8], strides = [1, 1]} : vector<8x32xf32> to vector<8x8xf32>
    %cst_68 = arith.constant dense<0.000000e+00> : vector<8x8xf32>
    %201 = tpu.matmul %198, %199, %cst_68 {dimension_numbers = #tpu.dot_dimension_numbers<[1], [1], [0], [0], [0, 0, 1, 0], [], []>} : vector<8x8xf32>, vector<8x8xf32>, vector<8x8xf32> -> vector<8x8xf32>
    %cst_69 = arith.constant 0.353553385 : f32
    %202 = vector.broadcast %cst_69 : f32 to vector<8x8xf32>
    %203 = arith.mulf %201, %202 : vector<8x8xf32>
    %cst_70 = arith.constant dense<0xFF800000> : vector<8xf32>
    %204 = vector.multi_reduction <maximumf>, %203, %cst_70 [1] : vector<8x8xf32> to vector<8xf32>
    %205 = vector.shape_cast %204 : vector<8xf32> to vector<8x1xf32>
    %206 = vector.broadcast %205 : vector<8x1xf32> to vector<8x8xf32>
    %207 = arith.subf %203, %206 : vector<8x8xf32>
    %208 = math.exp %207 : vector<8x8xf32>
    %cst_71 = arith.constant dense<0.000000e+00> : vector<8xf32>
    %209 = vector.multi_reduction <add>, %208, %cst_71 [1] : vector<8x8xf32> to vector<8xf32>
    %210 = vector.shape_cast %209 : vector<8xf32> to vector<8x1xf32>
    %211 = tpu.reciprocal %210 {approx = true} : vector<8x1xf32> -> vector<8x1xf32>
    %212 = vector.broadcast %211 : vector<8x1xf32> to vector<8x8xf32>
    %213 = arith.mulf %208, %212 : vector<8x8xf32>
    %cst_72 = arith.constant dense<0.000000e+00> : vector<8x8xf32>
    %214 = tpu.matmul %213, %200, %cst_72 {dimension_numbers = #tpu.dot_dimension_numbers<[1], [0], [0], [1], [0, 0, 1, 1], [], []>} : vector<8x8xf32>, vector<8x8xf32>, vector<8x8xf32> -> vector<8x8xf32>
    %215 = vector.extract_strided_slice %137 {offsets = [24, 0], sizes = [8, 32], strides = [1, 1]} : vector<32x32xf32> to vector<8x32xf32>
    %cst_73 = arith.constant dense<0.000000e+00> : vector<8x32xf32>
    %216 = tpu.matmul %214, %215, %cst_73 {dimension_numbers = #tpu.dot_dimension_numbers<[1], [0], [0], [1], [0, 0, 1, 1], [], []>} : vector<8x8xf32>, vector<8x32xf32>, vector<8x32xf32> -> vector<8x32xf32>
    %217 = arith.addf %197, %216 : vector<8x32xf32>
    %218 = vector.broadcast %138 : vector<1x32xf32> to vector<8x32xf32>
    %219 = arith.addf %217, %218 : vector<8x32xf32>
    %c0_74 = arith.constant 0 : index
    %c0_75 = arith.constant 0 : index
    %220 = vector.load %arg9[%c0_74, %c0_75] : memref<32x64xf32, #tpu.memory_space<vmem>>, vector<32x64xf32>
    %c0_76 = arith.constant 0 : index
    %c0_77 = arith.constant 0 : index
    %221 = vector.load %arg10[%c0_76, %c0_77] : memref<1x64xf32, #tpu.memory_space<vmem>>, vector<1x64xf32>
    %cst_78 = arith.constant dense<0.000000e+00> : vector<8x64xf32>
    %222 = tpu.matmul %219, %220, %cst_78 {dimension_numbers = #tpu.dot_dimension_numbers<[1], [0], [0], [1], [0, 0, 1, 1], [], []>} : vector<8x32xf32>, vector<32x64xf32>, vector<8x64xf32> -> vector<8x64xf32>
    %223 = vector.broadcast %221 : vector<1x64xf32> to vector<8x64xf32>
    %224 = arith.addf %222, %223 : vector<8x64xf32>
    %cst_79 = arith.constant 0.000000e+00 : f32
    %225 = vector.broadcast %cst_79 : f32 to vector<8x64xf32>
    %226 = arith.maximumf %224, %225 : vector<8x64xf32>
    %c0_80 = arith.constant 0 : index
    %c0_81 = arith.constant 0 : index
    %227 = vector.load %arg11[%c0_80, %c0_81] : memref<64x32xf32, #tpu.memory_space<vmem>>, vector<64x32xf32>
    %c0_82 = arith.constant 0 : index
    %c0_83 = arith.constant 0 : index
    %228 = vector.load %arg12[%c0_82, %c0_83] : memref<1x32xf32, #tpu.memory_space<vmem>>, vector<1x32xf32>
    %cst_84 = arith.constant dense<0.000000e+00> : vector<8x32xf32>
    %229 = tpu.matmul %226, %227, %cst_84 {dimension_numbers = #tpu.dot_dimension_numbers<[1], [0], [0], [1], [0, 0, 1, 1], [], []>} : vector<8x64xf32>, vector<64x32xf32>, vector<8x32xf32> -> vector<8x32xf32>
    %230 = vector.broadcast %228 : vector<1x32xf32> to vector<8x32xf32>
    %231 = arith.addf %229, %230 : vector<8x32xf32>
    %232 = vector.extract_strided_slice %231 {offsets = [3, 0], sizes = [1, 32], strides = [1, 1]} : vector<8x32xf32> to vector<1x32xf32>
    %c0_85 = arith.constant 0 : index
    %c0_86 = arith.constant 0 : index
    %233 = vector.load %arg13[%c0_85, %c0_86] : memref<32x128xf32, #tpu.memory_space<vmem>>, vector<32x128xf32>
    %c0_87 = arith.constant 0 : index
    %c0_88 = arith.constant 0 : index
    %234 = vector.load %arg14[%c0_87, %c0_88] : memref<1x128xf32, #tpu.memory_space<vmem>>, vector<1x128xf32>
    %cst_89 = arith.constant dense<0.000000e+00> : vector<1x128xf32>
    %235 = tpu.matmul %232, %233, %cst_89 {dimension_numbers = #tpu.dot_dimension_numbers<[1], [0], [0], [1], [0, 0, 1, 1], [], []>} : vector<1x32xf32>, vector<32x128xf32>, vector<1x128xf32> -> vector<1x128xf32>
    %236 = arith.addf %235, %234 : vector<1x128xf32>
    %cst_90 = arith.constant dense<0xFF800000> : vector<1xf32>
    %237 = vector.multi_reduction <maximumf>, %236, %cst_90 [1] : vector<1x128xf32> to vector<1xf32>
    %238 = vector.shape_cast %237 : vector<1xf32> to vector<1x1xf32>
    %239 = vector.broadcast %238 : vector<1x1xf32> to vector<1x128xf32>
    %240 = arith.subf %236, %239 : vector<1x128xf32>
    %241 = math.exp %240 : vector<1x128xf32>
    %cst_91 = arith.constant dense<0.000000e+00> : vector<1xf32>
    %242 = vector.multi_reduction <add>, %241, %cst_91 [1] : vector<1x128xf32> to vector<1xf32>
    %243 = vector.shape_cast %242 : vector<1xf32> to vector<1x1xf32>
    %244 = vector.broadcast %243 : vector<1x1xf32> to vector<1x128xf32>
    %245 = arith.divf %241, %244 : vector<1x128xf32>
    %c0_92 = arith.constant 0 : index
    %c0_93 = arith.constant 0 : index
    %c0_94 = arith.constant 0 : index
    %246 = vector.load %arg15[%c0_92, %c0_93, %c0_94] : memref<1x1x128xf32, #tpu.memory_space<vmem>>, vector<1x1x128xf32>
    %247 = vector.shape_cast %246 : vector<1x1x128xf32> to vector<1x128xf32>
    %248 = vector.shape_cast %245 : vector<1x128xf32> to vector<1x1x128xf32>
    tpu.vector_store %arg15[%c0_92, %c0_93, %c0_94], %248 {strides = array<i32>} : memref<1x1x128xf32, #tpu.memory_space<vmem>>, vector<1x1x128xf32>,
    return
  }
  func.func @transform_0(%arg0: i32) -> (i32, i32, i32) {
    %c0_i32 = arith.constant 0 : i32
    %c0_i32_0 = arith.constant 0 : i32
    %c0_i32_1 = arith.constant 0 : i32
    return %arg0, %c0_i32, %c0_i32_0 : i32, i32, i32
  }
  func.func @transform_1(%arg0: i32) -> (i32, i32, i32) {
    %c0_i32 = arith.constant 0 : i32
    %c0_i32_0 = arith.constant 0 : i32
    %c0_i32_1 = arith.constant 0 : i32
    return %arg0, %c0_i32, %c0_i32_0 : i32, i32, i32
  }
  func.func @transform_2(%arg0: i32) -> (i32, i32, i32) {
    %c0_i32 = arith.constant 0 : i32
    %c0_i32_0 = arith.constant 0 : i32
    %c0_i32_1 = arith.constant 0 : i32
    return %arg0, %c0_i32, %c0_i32_0 : i32, i32, i32
  }
  func.func @transform_3(%arg0: i32) -> (i32, i32, i32) {
    %c0_i32 = arith.constant 0 : i32
    %c0_i32_0 = arith.constant 0 : i32
    %c0_i32_1 = arith.constant 0 : i32
    return %arg0, %c0_i32, %c0_i32_0 : i32, i32, i32
  }
  func.func @transform_4(%arg0: i32) -> (i32, i32, i32) {
    %c0_i32 = arith.constant 0 : i32
    %c0_i32_0 = arith.constant 0 : i32
    %c0_i32_1 = arith.constant 0 : i32
    %c0_i32_2 = arith.constant 0 : i32
    return %c0_i32, %c0_i32_0, %c0_i32_1 : i32, i32, i32
  }
  func.func @transform_5(%arg0: i32) -> (i32, i32) {
    %c0_i32 = arith.constant 0 : i32
    %c0_i32_0 = arith.constant 0 : i32
    %c0_i32_1 = arith.constant 0 : i32
    return %c0_i32, %c0_i32_0 : i32, i32
  }
  func.func @transform_6(%arg0: i32) -> (i32, i32, i32) {
    %c0_i32 = arith.constant 0 : i32
    %c0_i32_0 = arith.constant 0 : i32
    %c0_i32_1 = arith.constant 0 : i32
    %c0_i32_2 = arith.constant 0 : i32
    return %c0_i32, %c0_i32_0, %c0_i32_1 : i32, i32, i32
  }
  func.func @transform_7(%arg0: i32) -> (i32, i32) {
    %c0_i32 = arith.constant 0 : i32
    %c0_i32_0 = arith.constant 0 : i32
    %c0_i32_1 = arith.constant 0 : i32
    return %c0_i32, %c0_i32_0 : i32, i32
  }
  func.func @transform_8(%arg0: i32) -> (i32, i32) {
    %c0_i32 = arith.constant 0 : i32
    %c0_i32_0 = arith.constant 0 : i32
    %c0_i32_1 = arith.constant 0 : i32
    return %c0_i32, %c0_i32_0 : i32, i32
  }
  func.func @transform_9(%arg0: i32) -> (i32, i32) {
    %c0_i32 = arith.constant 0 : i32
    %c0_i32_0 = arith.constant 0 : i32
    %c0_i32_1 = arith.constant 0 : i32
    return %c0_i32, %c0_i32_0 : i32, i32
  }
  func.func @transform_10(%arg0: i32) -> (i32, i32) {
    %c0_i32 = arith.constant 0 : i32
    %c0_i32_0 = arith.constant 0 : i32
    %c0_i32_1 = arith.constant 0 : i32
    return %c0_i32, %c0_i32_0 : i32, i32
  }
  func.func @transform_11(%arg0: i32) -> (i32, i32) {
    %c0_i32 = arith.constant 0 : i32
    %c0_i32_0 = arith.constant 0 : i32
    %c0_i32_1 = arith.constant 0 : i32
    return %c0_i32, %c0_i32_0 : i32, i32
  }
  func.func @transform_12(%arg0: i32) -> (i32, i32) {
    %c0_i32 = arith.constant 0 : i32
    %c0_i32_0 = arith.constant 0 : i32
    %c0_i32_1 = arith.constant 0 : i32
    return %c0_i32, %c0_i32_0 : i32, i32
  }
  func.func @transform_13(%arg0: i32) -> (i32, i32) {
    %c0_i32 = arith.constant 0 : i32
    %c0_i32_0 = arith.constant 0 : i32
    %c0_i32_1 = arith.constant 0 : i32
    return %c0_i32, %c0_i32_0 : i32, i32
  }
  func.func @transform_14(%arg0: i32) -> (i32, i32, i32) {
    %c0_i32 = arith.constant 0 : i32
    %c0_i32_0 = arith.constant 0 : i32
    %c0_i32_1 = arith.constant 0 : i32
    return %arg0, %c0_i32, %c0_i32_0 : i32, i32, i32
  }
}

</mosaic_0001>

<llo_original>
// kernel: tpu_custom_call.1
$region0: #{tpu_custom_call.1}
  #allocation0 [shape = 'u32[]', space=smem, size = 0x4, offset = 0x4, fixed_abs, tag = 'smem constant byte address 0x4 - core index']
  #allocation1 [shape = 'u32[144,128]{1,0:T(1,128)}', space=vmem, size = 0x12000, scoped, tag = 'internal scratch']
  %s0 = inlined_call_operand.vmem [shape: f32[2,8,32], index: 0, kind: input, shape index: {}]
  %s1 = inlined_call_operand.vmem [shape: f32[2,8,32], index: 1, kind: input, shape index: {}]
  %s2 = inlined_call_operand.hbm [shape: f32[2,8,32], index: 2, kind: input, shape index: {}]
  %s3 = inlined_call_operand.hbm [shape: f32[2,8,8], index: 3, kind: input, shape index: {}]
  %s4 = inlined_call_operand.hbm [shape: f32[4,32,32], index: 4, kind: input, shape index: {}]
  %s5 = inlined_call_operand.vmem [shape: f32[4,32], index: 5, kind: input, shape index: {}]
  %s6 = inlined_call_operand.hbm [shape: f32[4,32,32], index: 6, kind: input, shape index: {}]
  %s7 = inlined_call_operand.hbm [shape: f32[4,32], index: 7, kind: input, shape index: {}]
  %s8 = inlined_call_operand.vmem [shape: f32[32,64], index: 8, kind: input, shape index: {}]
  %s9 = inlined_call_operand.vmem [shape: f32[1,64], index: 9, kind: input, shape index: {}]
  %s10 = inlined_call_operand.vmem [shape: f32[64,32], index: 10, kind: input, shape index: {}]
  %s11 = inlined_call_operand.vmem [shape: f32[1,32], index: 11, kind: input, shape index: {}]
  %s12 = inlined_call_operand.vmem [shape: f32[32,128], index: 12, kind: input, shape index: {}]
  %s13 = inlined_call_operand.vmem [shape: f32[1,128], index: 13, kind: input, shape index: {}]
  %s14 = inlined_call_operand.hbm [shape: f32[2,1,128], index: 14, kind: output, shape index: {}]
  %s15 = sld [smem:[#allocation0]]
  $region109: #{tpu_custom_call.1} parent=0
    _
  %s17 = ssub.s32 1, %s15
  %s18 = scalar_select 0, %s17, %s15
  $region1: #{tpu_custom_call.1} parent=0
    #allocation2 [shape = 'u8[8192]{0}', space=vmem, size = 0x2000, scoped, tag = 'input window, operand 2']
    #allocation3 [shape = 's32[2]{0}', space=sflag, size = 0x8, scoped, tag = 'scoped memory for tpu_custom_call.1']
    #allocation4 [shape = 's32[2]{0}', space=sflag, size = 0x8, scoped, tag = 'scoped memory for tpu_custom_call.1']
    #allocation5 [shape = 'u8[8192]{0}', space=vmem, size = 0x2000, scoped, tag = 'input window, operand 3']
    #allocation6 [shape = 's32[2]{0}', space=sflag, size = 0x8, scoped, tag = 'scoped memory for tpu_custom_call.1']
    #allocation7 [shape = 'u8[65536]{0}', space=vmem, size = 0x10000, scoped, tag = 'input window, operand 4, single buffered']
    #allocation8 [shape = 'u8[65536]{0}', space=vmem, size = 0x10000, scoped, tag = 'input window, operand 6, single buffered']
    #allocation9 [shape = 's32[1]{0}', space=sflag, size = 0x4, scoped, tag = 'scoped memory for tpu_custom_call.1']
    #allocation10 [shape = 'u8[2048]{0}', space=vmem, size = 0x800, scoped, tag = 'input window, operand 7, single buffered']
    #allocation11 [shape = 'u8[1024]{0}', space=vmem, size = 0x400, scoped, tag = 'output window, operand 0']
    %19 = vsyncpa [#allocation3], 0
    %s20 = scalar_lea.sflag [#allocation3], 1
    %21 = vsyncpa %s20, 0
    %22 = vsyncpa [#allocation6], 0
    %s23 = scalar_lea.sflag [#allocation6], 1
    %24 = vsyncpa %s23, 0
    %25 = vsyncpa [#allocation9], 0
    %26 = vsyncpa [#allocation4], 0
    %s27 = scalar_lea.sflag [#allocation4], 1
    %28 = vsyncpa %s27, 0
    loop: start=0, step=1, limit=4
    $region2: #{tpu_custom_call.1} parent=1 // loop_pre_header
      _
    $region3: #{tpu_custom_call.1} parent=1 // loop_header
      %s30 = sphi 0, %s34
      %p31 = scmp.ge.s32.totalorder %s30, 4
      %s40 = sphi 0, %s42
      %s43 = sphi 0, %s40
      %s44 = sphi 0, %s43
      %s60 = sphi 0, %s44
      %s66 = sphi 0, %s68
      %s69 = sphi 0, %s66
      %s70 = sphi 0, %s69
      %s86 = sphi 0, %s70
      %s92 = sphi 0, %s94
      %s95 = sphi 0, %s92
      %s96 = sphi 0, %s95
      %s112 = sphi 0, %s96
      %s118 = sphi 0, %s120
      %s121 = sphi 0, %s118
      %s122 = sphi 0, %s121
      %s138 = sphi 0, %s122
      %s142 = sphi 0, %s142
      %s144 = sphi 0, %s142
      %s145 = sphi 0, %s144
      %s159 = sphi 0, %s145
      %s163 = sphi 0, %s163
      %s165 = sphi 0, %s163
      %s166 = sphi 0, %s165
      %s180 = sphi 0, %s166
      %s184 = sphi 0, %s184
      %s186 = sphi 0, %s184
      %s187 = sphi 0, %s186
      %s201 = sphi 0, %s187
      %s205 = sphi 0, %s205
      %s207 = sphi 0, %s205
      %s208 = sphi 0, %s207
      %s222 = sphi 0, %s208
      %s226 = sphi 0, %s226
      %s228 = sphi 0, %s226
      %s229 = sphi 0, %s228
      %s243 = sphi 0, %s229
      %s247 = sphi 0, %s247
      %s249 = sphi 0, %s247
      %s250 = sphi 0, %s249
      %s264 = sphi 0, %s250
      %s268 = sphi 0, %s268
      %s270 = sphi 0, %s268
      %s271 = sphi 0, %s270
      %s285 = sphi 0, %s271
      %s289 = sphi 0, %s289
      %s291 = sphi 0, %s289
      %s292 = sphi 0, %s291
      %s306 = sphi 0, %s292
      %s310 = sphi 0, %s310
      %s312 = sphi 0, %s310
      %s313 = sphi 0, %s312
      %s327 = sphi 0, %s313
      %s331 = sphi 0, %s331
      %s333 = sphi 0, %s331
      %s334 = sphi 0, %s333
      %s348 = sphi 0, %s334
      %s354 = sphi 0, %s356
      %s357 = sphi 0, %s354
      %s358 = sphi 0, %s357
      %s374 = sphi 0, %s358
    $region4: #{tpu_custom_call.1} parent=1 // loop_header_branch
      %33 = sbr.rel (%p31) target = $region8
    $region5: #{tpu_custom_call.1} parent=1 // loop_body
      %s35 = ssub.s32 %s30, 1
      %s36 = ssub.s32 %s30, 2
      %s37 = sadd.s32 %s30, 1
      %s38 = ssub.s32 %s30, %s37
      %p39 = scmp.eq.s32.totalorder %s38, 0
      %s41 = sadd.s32 %s40, 1
      %s42 = scalar_select %p39, %s40, %s41
      %p45 = pneg %p39
      %p46 = scmp.eq.s32.totalorder %s30, 1
      %p47 = por %p45, %p46
      %p48 = scmp.ne.s32.totalorder %s40, %s43
      %p49 = scmp.eq.s32.totalorder %s30, 0
      %p50 = por %p48, %p49
      %p51 = scmp.ne.s32.totalorder %s40, %s43
      %p52 = scmp.eq.s32.totalorder %s35, 1
      %p53 = por %p51, %p52
      %p54 = scmp.ne.s32.totalorder %s43, %s44
      %p55 = scmp.eq.s32.totalorder %s35, 0
      %p56 = por %p54, %p55
      %p57 = scmp.ne.s32.totalorder %s43, %s44
      %p58 = scmp.eq.s32.totalorder %s36, 1
      %p59 = por %p57, %p58
      %p61 = scmp.ne.s32.totalorder %s44, %s60
      %p62 = scmp.eq.s32.totalorder %s36, 0
      %p63 = por %p61, %p62
      %s64 = ssub.s32 %s30, %s37
      %p65 = scmp.eq.s32.totalorder %s64, 0
      %s67 = sadd.s32 %s66, 1
      %s68 = scalar_select %p65, %s66, %s67
      %p71 = pneg %p65
      %p72 = scmp.eq.s32.totalorder %s30, 1
      %p73 = por %p71, %p72
      %p74 = scmp.ne.s32.totalorder %s66, %s69
      %p75 = scmp.eq.s32.totalorder %s30, 0
      %p76 = por %p74, %p75
      %p77 = scmp.ne.s32.totalorder %s66, %s69
      %p78 = scmp.eq.s32.totalorder %s35, 1
      %p79 = por %p77, %p78
      %p80 = scmp.ne.s32.totalorder %s69, %s70
      %p81 = scmp.eq.s32.totalorder %s35, 0
      %p82 = por %p80, %p81
      %p83 = scmp.ne.s32.totalorder %s69, %s70
      %p84 = scmp.eq.s32.totalorder %s36, 1
      %p85 = por %p83, %p84
      %p87 = scmp.ne.s32.totalorder %s70, %s86
      %p88 = scmp.eq.s32.totalorder %s36, 0
      %p89 = por %p87, %p88
      %s90 = ssub.s32 %s30, %s37
      %p91 = scmp.eq.s32.totalorder %s90, 0
      %s93 = sadd.s32 %s92, 1
      %s94 = scalar_select %p91, %s92, %s93
      %p97 = pneg %p91
      %p98 = scmp.eq.s32.totalorder %s30, 1
      %p99 = por %p97, %p98
      %p100 = scmp.ne.s32.totalorder %s92, %s95
      %p101 = scmp.eq.s32.totalorder %s30, 0
      %p102 = por %p100, %p101
      %p103 = scmp.ne.s32.totalorder %s92, %s95
      %p104 = scmp.eq.s32.totalorder %s35, 1
      %p105 = por %p103, %p104
      %p106 = scmp.ne.s32.totalorder %s95, %s96
      %p107 = scmp.eq.s32.totalorder %s35, 0
      %p108 = por %p106, %p107
      %p109 = scmp.ne.s32.totalorder %s95, %s96
      %p110 = scmp.eq.s32.totalorder %s36, 1
      %p111 = por %p109, %p110
      %p113 = scmp.ne.s32.totalorder %s96, %s112
      %p114 = scmp.eq.s32.totalorder %s36, 0
      %p115 = por %p113, %p114
      %s116 = ssub.s32 %s30, %s37
      %p117 = scmp.eq.s32.totalorder %s116, 0
      %s119 = sadd.s32 %s118, 1
      %s120 = scalar_select %p117, %s118, %s119
      %p123 = pneg %p117
      %p124 = scmp.eq.s32.totalorder %s30, 1
      %p125 = por %p123, %p124
      %p126 = scmp.ne.s32.totalorder %s118, %s121
      %p127 = scmp.eq.s32.totalorder %s30, 0
      %p128 = por %p126, %p127
      %p129 = scmp.ne.s32.totalorder %s118, %s121
      %p130 = scmp.eq.s32.totalorder %s35, 1
      %p131 = por %p129, %p130
      %p132 = scmp.ne.s32.totalorder %s121, %s122
      %p133 = scmp.eq.s32.totalorder %s35, 0
      %p134 = por %p132, %p133
      %p135 = scmp.ne.s32.totalorder %s121, %s122
      %p136 = scmp.eq.s32.totalorder %s36, 1
      %p137 = por %p135, %p136
      %p139 = scmp.ne.s32.totalorder %s122, %s138
      %p140 = scmp.eq.s32.totalorder %s36, 0
      %p141 = por %p139, %p140
      %s143 = sadd.s32 %s142, 1
      %p146 = scmp.eq.s32.totalorder %s30, 1
      %p147 = scmp.ne.s32.totalorder %s142, %s144
      %p148 = scmp.eq.s32.totalorder %s30, 0
      %p149 = por %p147, %p148
      %p150 = scmp.ne.s32.totalorder %s142, %s144
      %p151 = scmp.eq.s32.totalorder %s35, 1
      %p152 = por %p150, %p151
      %p153 = scmp.ne.s32.totalorder %s144, %s145
      %p154 = scmp.eq.s32.totalorder %s35, 0
      %p155 = por %p153, %p154
      %p156 = scmp.ne.s32.totalorder %s144, %s145
      %p157 = scmp.eq.s32.totalorder %s36, 1
      %p158 = por %p156, %p157
      %p160 = scmp.ne.s32.totalorder %s145, %s159
      %p161 = scmp.eq.s32.totalorder %s36, 0
      %p162 = por %p160, %p161
      %s164 = sadd.s32 %s163, 1
      %p167 = scmp.eq.s32.totalorder %s30, 1
      %p168 = scmp.ne.s32.totalorder %s163, %s165
      %p169 = scmp.eq.s32.totalorder %s30, 0
      %p170 = por %p168, %p169
      %p171 = scmp.ne.s32.totalorder %s163, %s165
      %p172 = scmp.eq.s32.totalorder %s35, 1
      %p173 = por %p171, %p172
      %p174 = scmp.ne.s32.totalorder %s165, %s166
      %p175 = scmp.eq.s32.totalorder %s35, 0
      %p176 = por %p174, %p175
      %p177 = scmp.ne.s32.totalorder %s165, %s166
      %p178 = scmp.eq.s32.totalorder %s36, 1
      %p179 = por %p177, %p178
      %p181 = scmp.ne.s32.totalorder %s166, %s180
      %p182 = scmp.eq.s32.totalorder %s36, 0
      %p183 = por %p181, %p182
      %s185 = sadd.s32 %s184, 1
      %p188 = scmp.eq.s32.totalorder %s30, 1
      %p189 = scmp.ne.s32.totalorder %s184, %s186
      %p190 = scmp.eq.s32.totalorder %s30, 0
      %p191 = por %p189, %p190
      %p192 = scmp.ne.s32.totalorder %s184, %s186
      %p193 = scmp.eq.s32.totalorder %s35, 1
      %p194 = por %p192, %p193
      %p195 = scmp.ne.s32.totalorder %s186, %s187
      %p196 = scmp.eq.s32.totalorder %s35, 0
      %p197 = por %p195, %p196
      %p198 = scmp.ne.s32.totalorder %s186, %s187
      %p199 = scmp.eq.s32.totalorder %s36, 1
      %p200 = por %p198, %p199
      %p202 = scmp.ne.s32.totalorder %s187, %s201
      %p203 = scmp.eq.s32.totalorder %s36, 0
      %p204 = por %p202, %p203
      %s206 = sadd.s32 %s205, 1
      %p209 = scmp.eq.s32.totalorder %s30, 1
      %p210 = scmp.ne.s32.totalorder %s205, %s207
      %p211 = scmp.eq.s32.totalorder %s30, 0
      %p212 = por %p210, %p211
      %p213 = scmp.ne.s32.totalorder %s205, %s207
      %p214 = scmp.eq.s32.totalorder %s35, 1
      %p215 = por %p213, %p214
      %p216 = scmp.ne.s32.totalorder %s207, %s208
      %p217 = scmp.eq.s32.totalorder %s35, 0
      %p218 = por %p216, %p217
      %p219 = scmp.ne.s32.totalorder %s207, %s208
      %p220 = scmp.eq.s32.totalorder %s36, 1
      %p221 = por %p219, %p220
      %p223 = scmp.ne.s32.totalorder %s208, %s222
      %p224 = scmp.eq.s32.totalorder %s36, 0
      %p225 = por %p223, %p224
      %s227 = sadd.s32 %s226, 1
      %p230 = scmp.eq.s32.totalorder %s30, 1
      %p231 = scmp.ne.s32.totalorder %s226, %s228
      %p232 = scmp.eq.s32.totalorder %s30, 0
      %p233 = por %p231, %p232
      %p234 = scmp.ne.s32.totalorder %s226, %s228
      %p235 = scmp.eq.s32.totalorder %s35, 1
      %p236 = por %p234, %p235
      %p237 = scmp.ne.s32.totalorder %s228, %s229
      %p238 = scmp.eq.s32.totalorder %s35, 0
      %p239 = por %p237, %p238
      %p240 = scmp.ne.s32.totalorder %s228, %s229
      %p241 = scmp.eq.s32.totalorder %s36, 1
      %p242 = por %p240, %p241
      %p244 = scmp.ne.s32.totalorder %s229, %s243
      %p245 = scmp.eq.s32.totalorder %s36, 0
      %p246 = por %p244, %p245
      %s248 = sadd.s32 %s247, 1
      %p251 = scmp.eq.s32.totalorder %s30, 1
      %p252 = scmp.ne.s32.totalorder %s247, %s249
      %p253 = scmp.eq.s32.totalorder %s30, 0
      %p254 = por %p252, %p253
      %p255 = scmp.ne.s32.totalorder %s247, %s249
      %p256 = scmp.eq.s32.totalorder %s35, 1
      %p257 = por %p255, %p256
      %p258 = scmp.ne.s32.totalorder %s249, %s250
      %p259 = scmp.eq.s32.totalorder %s35, 0
      %p260 = por %p258, %p259
      %p261 = scmp.ne.s32.totalorder %s249, %s250
      %p262 = scmp.eq.s32.totalorder %s36, 1
      %p263 = por %p261, %p262
      %p265 = scmp.ne.s32.totalorder %s250, %s264
      %p266 = scmp.eq.s32.totalorder %s36, 0
      %p267 = por %p265, %p266
      %s269 = sadd.s32 %s268, 1
      %p272 = scmp.eq.s32.totalorder %s30, 1
      %p273 = scmp.ne.s32.totalorder %s268, %s270
      %p274 = scmp.eq.s32.totalorder %s30, 0
      %p275 = por %p273, %p274
      %p276 = scmp.ne.s32.totalorder %s268, %s270
      %p277 = scmp.eq.s32.totalorder %s35, 1
      %p278 = por %p276, %p277
      %p279 = scmp.ne.s32.totalorder %s270, %s271
      %p280 = scmp.eq.s32.totalorder %s35, 0
      %p281 = por %p279, %p280
      %p282 = scmp.ne.s32.totalorder %s270, %s271
      %p283 = scmp.eq.s32.totalorder %s36, 1
      %p284 = por %p282, %p283
      %p286 = scmp.ne.s32.totalorder %s271, %s285
      %p287 = scmp.eq.s32.totalorder %s36, 0
      %p288 = por %p286, %p287
      %s290 = sadd.s32 %s289, 1
      %p293 = scmp.eq.s32.totalorder %s30, 1
      %p294 = scmp.ne.s32.totalorder %s289, %s291
      %p295 = scmp.eq.s32.totalorder %s30, 0
      %p296 = por %p294, %p295
      %p297 = scmp.ne.s32.totalorder %s289, %s291
      %p298 = scmp.eq.s32.totalorder %s35, 1
      %p299 = por %p297, %p298
      %p300 = scmp.ne.s32.totalorder %s291, %s292
      %p301 = scmp.eq.s32.totalorder %s35, 0
      %p302 = por %p300, %p301
      %p303 = scmp.ne.s32.totalorder %s291, %s292
      %p304 = scmp.eq.s32.totalorder %s36, 1
      %p305 = por %p303, %p304
      %p307 = scmp.ne.s32.totalorder %s292, %s306
      %p308 = scmp.eq.s32.totalorder %s36, 0
      %p309 = por %p307, %p308
      %s311 = sadd.s32 %s310, 1
      %p314 = scmp.eq.s32.totalorder %s30, 1
      %p315 = scmp.ne.s32.totalorder %s310, %s312
      %p316 = scmp.eq.s32.totalorder %s30, 0
      %p317 = por %p315, %p316
      %p318 = scmp.ne.s32.totalorder %s310, %s312
      %p319 = scmp.eq.s32.totalorder %s35, 1
      %p320 = por %p318, %p319
      %p321 = scmp.ne.s32.totalorder %s312, %s313
      %p322 = scmp.eq.s32.totalorder %s35, 0
      %p323 = por %p321, %p322
      %p324 = scmp.ne.s32.totalorder %s312, %s313
      %p325 = scmp.eq.s32.totalorder %s36, 1
      %p326 = por %p324, %p325
      %p328 = scmp.ne.s32.totalorder %s313, %s327
      %p329 = scmp.eq.s32.totalorder %s36, 0
      %p330 = por %p328, %p329
      %s332 = sadd.s32 %s331, 1
      %p335 = scmp.eq.s32.totalorder %s30, 1
      %p336 = scmp.ne.s32.totalorder %s331, %s333
      %p337 = scmp.eq.s32.totalorder %s30, 0
      %p338 = por %p336, %p337
      %p339 = scmp.ne.s32.totalorder %s331, %s333
      %p340 = scmp.eq.s32.totalorder %s35, 1
      %p341 = por %p339, %p340
      %p342 = scmp.ne.s32.totalorder %s333, %s334
      %p343 = scmp.eq.s32.totalorder %s35, 0
      %p344 = por %p342, %p343
      %p345 = scmp.ne.s32.totalorder %s333, %s334
      %p346 = scmp.eq.s32.totalorder %s36, 1
      %p347 = por %p345, %p346
      %p349 = scmp.ne.s32.totalorder %s334, %s348
      %p350 = scmp.eq.s32.totalorder %s36, 0
      %p351 = por %p349, %p350
      %s352 = ssub.s32 %s30, %s37
      %p353 = scmp.eq.s32.totalorder %s352, 0
      %s355 = sadd.s32 %s354, 1
      %s356 = scalar_select %p353, %s354, %s355
      %p359 = pneg %p353
      %p360 = scmp.eq.s32.totalorder %s30, 1
      %p361 = por %p359, %p360
      %p362 = scmp.ne.s32.totalorder %s354, %s357
      %p363 = scmp.eq.s32.totalorder %s30, 0
      %p364 = por %p362, %p363
      %p365 = scmp.ne.s32.totalorder %s354, %s357
      %p366 = scmp.eq.s32.totalorder %s35, 1
      %p367 = por %p365, %p366
      %p368 = scmp.ne.s32.totalorder %s357, %s358
      %p369 = scmp.eq.s32.totalorder %s35, 0
      %p370 = por %p368, %p369
      %p371 = scmp.ne.s32.totalorder %s357, %s358
      %p372 = scmp.eq.s32.totalorder %s36, 1
      %p373 = por %p371, %p372
      %p375 = scmp.ne.s32.totalorder %s358, %s374
      %p376 = scmp.eq.s32.totalorder %s36, 0
      %p377 = por %p375, %p376
      %p378 = scmp.le.s32.totalorder 1, %s30
      %p379 = scmp.lt.s32.totalorder %s30, 3
      %p380 = pnand %p378, %p379
      %p381 = pneg %p380
      // Predicated region
      $region9: #{tpu_custom_call.1} parent=5 // pred_check
        _
      $region10: #{tpu_custom_call.1} parent=5 // pred_check_branch
        %383 = sbr.rel (%p380) target = $region12
      $region11: #{tpu_custom_call.1} parent=5 // pred_region
        %s384 = ssub.s32 %s30, 1
        // Predicated region
        $region13: #{tpu_custom_call.1} parent=11 // pred_check
          %p385 = pneg %p155
        $region14: #{tpu_custom_call.1} parent=11 // pred_check_branch
          %387 = sbr.rel (%p385) target = $region16
        $region15: #{tpu_custom_call.1} parent=11 // pred_region
          %s389 = ssub.s32 2048, 2048
          %390 = vsyncadd [#allocation6], %s389
          %s391 = sshll.u32 [#allocation7], 4
          %s392 = int_to_ptr.vmem [resolvable:$true] %s391
          %397 = dma.hbm_to_vmem [thread:$0]  %s4, 2048, %s392, [#allocation6], 128, 128, 8
        $region16: #{tpu_custom_call.1} parent=11 // pred_fallthru
          _
        // Predicated region
        $region17: #{tpu_custom_call.1} parent=11 // pred_check
          %p398 = pneg %p176
        $region18: #{tpu_custom_call.1} parent=11 // pred_check_branch
          %400 = sbr.rel (%p398) target = $region20
        $region19: #{tpu_custom_call.1} parent=11 // pred_region
          _
        $region20: #{tpu_custom_call.1} parent=11 // pred_fallthru
          _
        // Predicated region
        $region21: #{tpu_custom_call.1} parent=11 // pred_check
          %p401 = pneg %p197
        $region22: #{tpu_custom_call.1} parent=11 // pred_check_branch
          %403 = sbr.rel (%p401) target = $region24
        $region23: #{tpu_custom_call.1} parent=11 // pred_region
          %s405 = ssub.s32 2048, 2048
          %406 = vsyncadd [#allocation9], %s405
          %s407 = sshll.u32 [#allocation8], 4
          %s408 = int_to_ptr.vmem [resolvable:$true] %s407
          %413 = dma.hbm_to_vmem [thread:$0]  %s6, 2048, %s408, [#allocation9], 128, 128, 8
        $region24: #{tpu_custom_call.1} parent=11 // pred_fallthru
          _
        // Predicated region
        $region25: #{tpu_custom_call.1} parent=11 // pred_check
          %p414 = pneg %p218
        $region26: #{tpu_custom_call.1} parent=11 // pred_check_branch
          %416 = sbr.rel (%p414) target = $region28
        $region27: #{tpu_custom_call.1} parent=11 // pred_region
          %s418 = ssub.s32 64, 64
          %419 = vsyncadd [#allocation9], %s418
          %s421 = sshll.u32 [#allocation10], 4
          %s422 = int_to_ptr.vmem [resolvable:$true] %s421
          %424 = dma.hbm_to_vmem [thread:$0]  %s7, 64, %s422, [#allocation9]
        $region28: #{tpu_custom_call.1} parent=11 // pred_fallthru
          _
        // Predicated region
        $region29: #{tpu_custom_call.1} parent=11 // pred_check
          %p425 = pneg %p239
        $region30: #{tpu_custom_call.1} parent=11 // pred_check_branch
          %427 = sbr.rel (%p425) target = $region32
        $region31: #{tpu_custom_call.1} parent=11 // pred_region
          _
        $region32: #{tpu_custom_call.1} parent=11 // pred_fallthru
          _
        // Predicated region
        $region33: #{tpu_custom_call.1} parent=11 // pred_check
          %p428 = pneg %p260
        $region34: #{tpu_custom_call.1} parent=11 // pred_check_branch
          %430 = sbr.rel (%p428) target = $region36
        $region35: #{tpu_custom_call.1} parent=11 // pred_region
          _
        $region36: #{tpu_custom_call.1} parent=11 // pred_fallthru
          _
        // Predicated region
        $region37: #{tpu_custom_call.1} parent=11 // pred_check
          %p431 = pneg %p281
        $region38: #{tpu_custom_call.1} parent=11 // pred_check_branch
          %433 = sbr.rel (%p431) target = $region40
        $region39: #{tpu_custom_call.1} parent=11 // pred_region
          _
        $region40: #{tpu_custom_call.1} parent=11 // pred_fallthru
          _
        // Predicated region
        $region41: #{tpu_custom_call.1} parent=11 // pred_check
          %p434 = pneg %p302
        $region42: #{tpu_custom_call.1} parent=11 // pred_check_branch
          %436 = sbr.rel (%p434) target = $region44
        $region43: #{tpu_custom_call.1} parent=11 // pred_region
          _
        $region44: #{tpu_custom_call.1} parent=11 // pred_fallthru
          _
        // Predicated region
        $region45: #{tpu_custom_call.1} parent=11 // pred_check
          %p437 = pneg %p323
        $region46: #{tpu_custom_call.1} parent=11 // pred_check_branch
          %439 = sbr.rel (%p437) target = $region48
        $region47: #{tpu_custom_call.1} parent=11 // pred_region
          _
        $region48: #{tpu_custom_call.1} parent=11 // pred_fallthru
          _
        // Predicated region
        $region49: #{tpu_custom_call.1} parent=11 // pred_check
          %p440 = pneg %p344
        $region50: #{tpu_custom_call.1} parent=11 // pred_check_branch
          %442 = sbr.rel (%p440) target = $region52
        $region51: #{tpu_custom_call.1} parent=11 // pred_region
          _
        $region52: #{tpu_custom_call.1} parent=11 // pred_fallthru
          _
      $region12: #{tpu_custom_call.1} parent=5 // pred_fallthru
        _
      %p443 = scmp.lt.s32.totalorder %s30, 2
      // Predicated region
      $region53: #{tpu_custom_call.1} parent=5 // pred_check
        %p444 = pneg %p443
      $region54: #{tpu_custom_call.1} parent=5 // pred_check_branch
        %446 = sbr.rel (%p444) target = $region56
      $region55: #{tpu_custom_call.1} parent=5 // pred_region
        // Predicated region
        $region57: #{tpu_custom_call.1} parent=55 // pred_check
          %p447 = pneg %p50
        $region58: #{tpu_custom_call.1} parent=55 // pred_check_branch
          %449 = sbr.rel (%p447) target = $region60
        $region59: #{tpu_custom_call.1} parent=55 // pred_region
          %p450 = scmp.lt.s32.totalorder %s30, 1
          %s451 = scalar_select %p450, %s30, 1
          %s452 = smul.addr %s451, 8
          %s453 = scalar_lea.vmem %s0, %s452
        $region60: #{tpu_custom_call.1} parent=55 // pred_fallthru
          _
        // Predicated region
        $region61: #{tpu_custom_call.1} parent=55 // pred_check
          %p454 = pneg %p76
        $region62: #{tpu_custom_call.1} parent=55 // pred_check_branch
          %456 = sbr.rel (%p454) target = $region64
        $region63: #{tpu_custom_call.1} parent=55 // pred_region
          %p457 = scmp.lt.s32.totalorder %s30, 1
          %s458 = scalar_select %p457, %s30, 1
          %s459 = smul.addr %s458, 8
          %s460 = scalar_lea.vmem %s1, %s459
        $region64: #{tpu_custom_call.1} parent=55 // pred_fallthru
          _
        // Predicated region
        $region65: #{tpu_custom_call.1} parent=55 // pred_check
          %p461 = pneg %p102
        $region66: #{tpu_custom_call.1} parent=55 // pred_check_branch
          %463 = sbr.rel (%p461) target = $region68
        $region67: #{tpu_custom_call.1} parent=55 // pred_region
          %s464 = sand.u32 %s92, 1
          %s465 = scalar_lea.sflag [#allocation3], %s464
          %s466 = sand.u32 %s92, 1
          %s467 = smul.addr %s466, 8
          %s468 = scalar_lea.vmem [#allocation2], %s467
          %s470 = ssub.s32 128, 128
          %471 = vsyncadd %s465, %s470
          %s472 = smul.addr %s30, 128
          %s473 = scalar_lea.hbm %s2, %s472
          %s475 = sshll.u32 %s468, 4
          %s476 = int_to_ptr.vmem [resolvable:$true] %s475
          %478 = dma.hbm_to_vmem [thread:$0]  %s473, 128, %s476, %s465
        $region68: #{tpu_custom_call.1} parent=55 // pred_fallthru
          _
        // Predicated region
        $region69: #{tpu_custom_call.1} parent=55 // pred_check
          %p479 = pneg %p128
        $region70: #{tpu_custom_call.1} parent=55 // pred_check_branch
          %481 = sbr.rel (%p479) target = $region72
        $region71: #{tpu_custom_call.1} parent=55 // pred_region
          %s482 = sand.u32 %s30, 1
          %s483 = scalar_lea.sflag [#allocation6], %s482
          %s484 = sand.u32 %s118, 1
          %s485 = smul.addr %s484, 8
          %s486 = scalar_lea.vmem [#allocation5], %s485
          %s488 = ssub.s32 128, 128
          %489 = vsyncadd %s483, %s488
          %s490 = smul.addr %s30, 128
          %s491 = scalar_lea.hbm %s3, %s490
          %s493 = sshll.u32 %s486, 4
          %s494 = int_to_ptr.vmem [resolvable:$true] %s493
          %496 = dma.hbm_to_vmem [thread:$0]  %s491, 128, %s494, %s483
        $region72: #{tpu_custom_call.1} parent=55 // pred_fallthru
          _
      $region56: #{tpu_custom_call.1} parent=5 // pred_fallthru
        _
      %p497 = scmp.le.s32.totalorder 1, %s30
      %p498 = scmp.lt.s32.totalorder %s30, 3
      %p499 = pnand %p497, %p498
      %p500 = pneg %p499
      // Predicated region
      $region73: #{tpu_custom_call.1} parent=5 // pred_check
        _
      $region74: #{tpu_custom_call.1} parent=5 // pred_check_branch
        %502 = sbr.rel (%p499) target = $region76
      $region75: #{tpu_custom_call.1} parent=5 // pred_region
        %s503 = ssub.s32 %s30, 1
        %s504 = sand.u32 %s95, 1
        %s505 = scalar_lea.sflag [#allocation3], %s504
        %s506 = sand.u32 %s95, 1
        %s507 = smul.addr %s506, 8
        %s508 = scalar_lea.vmem [#allocation2], %s507
        // Predicated region
        $region77: #{tpu_custom_call.1} parent=75 // pred_check
          %p509 = pneg %p108
        $region78: #{tpu_custom_call.1} parent=75 // pred_check_branch
          %511 = sbr.rel (%p509) target = $region80
        $region79: #{tpu_custom_call.1} parent=75 // pred_region
          %512 = dma.done %s505, 128
        $region80: #{tpu_custom_call.1} parent=75 // pred_fallthru
          _
        %s513 = sand.u32 %s35, 1
        %s514 = scalar_lea.sflag [#allocation6], %s513
        %s515 = sand.u32 %s121, 1
        %s516 = smul.addr %s515, 8
        %s517 = scalar_lea.vmem [#allocation5], %s516
        // Predicated region
        $region81: #{tpu_custom_call.1} parent=75 // pred_check
          %p518 = pneg %p134
        $region82: #{tpu_custom_call.1} parent=75 // pred_check_branch
          %520 = sbr.rel (%p518) target = $region84
        $region83: #{tpu_custom_call.1} parent=75 // pred_region
          %521 = dma.done %s514, 128
        $region84: #{tpu_custom_call.1} parent=75 // pred_fallthru
          _
        // Predicated region
        $region85: #{tpu_custom_call.1} parent=75 // pred_check
          %p522 = pneg %p155
        $region86: #{tpu_custom_call.1} parent=75 // pred_check_branch
          %524 = sbr.rel (%p522) target = $region88
        $region87: #{tpu_custom_call.1} parent=75 // pred_region
          %525 = dma.done [#allocation6], 2048
        $region88: #{tpu_custom_call.1} parent=75 // pred_fallthru
          _
        // Predicated region
        $region89: #{tpu_custom_call.1} parent=75 // pred_check
          %p526 = pneg %p197
        $region90: #{tpu_custom_call.1} parent=75 // pred_check_branch
          %528 = sbr.rel (%p526) target = $region92
        $region91: #{tpu_custom_call.1} parent=75 // pred_region
          %529 = dma.done [#allocation9], 2048
        $region92: #{tpu_custom_call.1} parent=75 // pred_fallthru
          _
        // Predicated region
        $region93: #{tpu_custom_call.1} parent=75 // pred_check
          %p530 = pneg %p218
        $region94: #{tpu_custom_call.1} parent=75 // pred_check_branch
          %532 = sbr.rel (%p530) target = $region96
        $region95: #{tpu_custom_call.1} parent=75 // pred_region
          %533 = dma.done [#allocation9], 64
        $region96: #{tpu_custom_call.1} parent=75 // pred_fallthru
          _
        %p534 = scmp.lt.s32.totalorder %s35, 1
        %s535 = scalar_select %p534, %s35, 1
        %s536 = smul.addr %s535, 8
        %s537 = scalar_lea.vmem %s0, %s536
        %p538 = pneg %p56
        %p539 = pneg %p53
        %p540 = scmp.lt.s32.totalorder %s35, 1
        %s541 = scalar_select %p540, %s35, 1
        %s542 = smul.addr %s541, 8
        %s543 = scalar_lea.vmem %s1, %s542
        %p544 = pneg %p82
        %p545 = pneg %p79
        %s546 = sand.u32 %s95, 1
        %s547 = scalar_lea.sflag [#allocation3], %s546
        %s548 = sand.u32 %s95, 1
        %s549 = smul.addr %s548, 8
        %s550 = scalar_lea.vmem [#allocation2], %s549
        %p551 = pneg %p108
        %p552 = pneg %p105
        %s553 = sand.u32 %s35, 1
        %s554 = scalar_lea.sflag [#allocation6], %s553
        %s555 = sand.u32 %s121, 1
        %s556 = smul.addr %s555, 8
        %s557 = scalar_lea.vmem [#allocation5], %s556
        %p558 = pneg %p134
        %p559 = pneg %p131
        %p560 = pneg %p155
        %p561 = pneg %p152
        %p562 = pneg %p176
        %p563 = pneg %p173
        %p564 = pneg %p197
        %p565 = pneg %p194
        %p566 = pneg %p218
        %p567 = pneg %p215
        %p568 = pneg %p239
        %p569 = pneg %p236
        %p570 = pneg %p260
        %p571 = pneg %p257
        %p572 = pneg %p281
        %p573 = pneg %p278
        %p574 = pneg %p302
        %p575 = pneg %p299
        %p576 = pneg %p323
        %p577 = pneg %p320
        %p578 = pneg %p344
        %p579 = pneg %p341
        %p580 = pneg %p370
        %p581 = pneg %p367
        %s582 = sand.u32 %s357, 1
        %s583 = scalar_lea.sflag [#allocation4], %s582
        %s584 = sand.u32 %s357, 1
        %s585 = scalar_lea.vmem [#allocation11], %s584
        %p586 = scmp.lt.s32.totalorder %s35, 1
        %s587 = scalar_select %p586, %s35, 1
        %s588 = smul.addr %s587, 8
        %s589 = scalar_lea.vmem %s0, %s588
        %p590 = scmp.lt.s32.totalorder %s35, 1
        %s591 = scalar_select %p590, %s35, 1
        %s592 = smul.addr %s591, 8
        %s593 = scalar_lea.vmem %s1, %s592
        %v594 = vld [vmem:[%s589] sm:$0xff]
        %v595 = vld [vmem:[%s593] sm:$0xff]
        %v596 = vld [vmem:[%s508] sm:$0xff]
        %v597 = vld [vmem:[%s517] sm:$0xff]
        %v598 = vld [vmem:[#allocation7] sm:$0xff]
        %v599 = vld [vmem:[#allocation7 + $0x8] sm:$0xff]
        %v600 = vld [vmem:[#allocation7 + $0x10] sm:$0xff]
        %v601 = vld [vmem:[#allocation7 + $0x18] sm:$0xff]
        %v602 = vld [vmem:[#allocation7 + $0x20] sm:$0xff]
        %v603 = vld [vmem:[#allocation7 + $0x28] sm:$0xff]
        %v604 = vld [vmem:[#allocation7 + $0x30] sm:$0xff]
        %v605 = vld [vmem:[#allocation7 + $0x38] sm:$0xff]
        %v606 = vld [vmem:[#allocation7 + $0x40] sm:$0xff]
        %v607 = vld [vmem:[#allocation7 + $0x48] sm:$0xff]
        %v608 = vld [vmem:[#allocation7 + $0x50] sm:$0xff]
        %v609 = vld [vmem:[#allocation7 + $0x58] sm:$0xff]
        %v610 = vld [vmem:[#allocation7 + $0x60] sm:$0xff]
        %v611 = vld [vmem:[#allocation7 + $0x68] sm:$0xff]
        %v612 = vld [vmem:[#allocation7 + $0x70] sm:$0xff]
        %v613 = vld [vmem:[#allocation7 + $0x78] sm:$0xff]
        %v614 = vld [vmem:[%s5] sm:$0xf]
        %v615 = vld [vmem:[#allocation8] sm:$0xff]
        %v616 = vld [vmem:[#allocation8 + $0x8] sm:$0xff]
        %v617 = vld [vmem:[#allocation8 + $0x10] sm:$0xff]
        %v618 = vld [vmem:[#allocation8 + $0x18] sm:$0xff]
        %v619 = vld [vmem:[#allocation8 + $0x20] sm:$0xff]
        %v620 = vld [vmem:[#allocation8 + $0x28] sm:$0xff]
        %v621 = vld [vmem:[#allocation8 + $0x30] sm:$0xff]
        %v622 = vld [vmem:[#allocation8 + $0x38] sm:$0xff]
        %v623 = vld [vmem:[#allocation8 + $0x40] sm:$0xff]
        %v624 = vld [vmem:[#allocation8 + $0x48] sm:$0xff]
        %v625 = vld [vmem:[#allocation8 + $0x50] sm:$0xff]
        %v626 = vld [vmem:[#allocation8 + $0x58] sm:$0xff]
        %v627 = vld [vmem:[#allocation8 + $0x60] sm:$0xff]
        %v628 = vld [vmem:[#allocation8 + $0x68] sm:$0xff]
        %v629 = vld [vmem:[#allocation8 + $0x70] sm:$0xff]
        %v630 = vld [vmem:[#allocation8 + $0x78] sm:$0xff]
        %v631 = vld [vmem:[#allocation10] sm:$0xf]
        %v632 = vlaneseq
        %v633 = vshrl.u32 %v632, 7
        %v634 = vsub.s32 0, %v633
        %v635 = vrot.slane %v614, %v634
        %vm636 = vcmask 261120
        %v638 = vsel %vm636, %v594, 0
        %640 = vmatprep.subr.mxu0 0.0
        %641 = vmatpush1.msra.mxu0 %v598
        %642 = vmatprep.subr.mxu0 0.0
        %643 = vmatpush1.msra.mxu0 %v599
        %644 = vmatprep.subr.mxu0 0.0
        %645 = vmatpush1.msra.mxu0 %v600
        %646 = vmatprep.subr.mxu0 0.0
        %647 = vmatpush1.msra.mxu0 %v601
        %648 = vmatprep.subr.mxu0 0.0
        %649 = vmatpush1.msra.mxu0 0.0
        %650 = vmatprep.subr.mxu0 0.0
        %651 = vmatpush1.msra.mxu0 0.0
        %652 = vmatprep.subr.mxu0 0.0
        %653 = vmatpush1.msra.mxu0 0.0
        %654 = vmatprep.subr.mxu0 0.0
        %655 = vmatpush1.msra.mxu0 0.0
        %656 = vmatprep.subr.mxu0 0.0
        %657 = vmatpush1.msra.mxu0 0.0
        %658 = vmatprep.subr.mxu0 0.0
        %659 = vmatpush1.msra.mxu0 0.0
        %660 = vmatprep.subr.mxu0 0.0
        %661 = vmatpush1.msra.mxu0 0.0
        %662 = vmatprep.subr.mxu0 0.0
        %663 = vmatpush1.msra.mxu0 0.0
        %664 = vmatprep.subr.mxu0 0.0
        %665 = vmatpush1.msra.mxu0 0.0
        %666 = vmatprep.subr.mxu0 0.0
        %667 = vmatpush1.msra.mxu0 0.0
        %668 = vmatprep.subr.mxu0 0.0
        %669 = vmatpush1.msra.mxu0 0.0
        %670 = vmatprep.subr.mxu0 0.0
        %671 = vmatpush1.msra.mxu0 0.0
        %672 = vmatprep.subr.mxu0 0.0
        %673 = vmatpush1.msra.mxu0 0.0
        %674 = vmatprep.subr.mxu0 0.0
        %675 = vmatpush1.msra.mxu0 0.0
        %676 = vmatprep.subr.mxu0 0.0
        %677 = vmatpush1.msra.mxu0 0.0
        %678 = vmatprep.subr.mxu0 0.0
        %679 = vmatpush1.msra.mxu0 0.0
        %680 = vmatprep.subr.mxu0 0.0
        %681 = vmatpush1.msra.mxu0 0.0
        %682 = vmatprep.subr.mxu0 0.0
        %683 = vmatpush1.msra.mxu0 0.0
        %684 = vmatprep.subr.mxu0 0.0
        %685 = vmatpush1.msra.mxu0 0.0
        %686 = vmatprep.subr.mxu0 0.0
        %687 = vmatpush1.msra.mxu0 0.0
        %688 = vmatprep.subr.mxu0 0.0
        %689 = vmatpush1.msra.mxu0 0.0
        %690 = vmatprep.subr.mxu0 0.0
        %691 = vmatpush1.msra.mxu0 0.0
        %692 = vmatprep.subr.mxu0 0.0
        %693 = vmatpush1.msra.mxu0 0.0
        %694 = vmatprep.subr.mxu0 0.0
        %695 = vmatpush1.msra.mxu0 0.0
        %696 = vmatprep.subr.mxu0 0.0
        %697 = vmatpush1.msra.mxu0 0.0
        %698 = vmatprep.subr.mxu0 0.0
        %699 = vmatpush1.msra.mxu0 0.0
        %700 = vmatprep.subr.mxu0 0.0
        %701 = vmatpush1.msra.mxu0 0.0
        %702 = vmatprep.subr.mxu0 0.0
        %703 = vmatpush1.msra.mxu0 0.0
        %704 = vmatprep.mubr.f32.mxu0 0.0
        %705 = vmatmul.mubr.f32.gmra.mrb[0].mxu0 %v638
        %v706 = vpop.f32.mrb[0].mxu0
        %v707 = vadd.f32 %v635, %v706
        %v708 = vpop.f32.mrb[0].mxu0
        %709 = vdwg.mxu0
        %v710 = vlaneseq
        %v711 = vshrl.u32 %v710, 7
        %v712 = vsub.s32 1, %v711
        %v713 = vrot.slane %v614, %v712
        %v715 = vsel %vm636, %v595, 0
        %717 = vmatprep.subr.mxu0 0.0
        %718 = vmatpush1.msra.mxu0 %v602
        %719 = vmatprep.subr.mxu0 0.0
        %720 = vmatpush1.msra.mxu0 %v603
        %721 = vmatprep.subr.mxu0 0.0
        %722 = vmatpush1.msra.mxu0 %v604
        %723 = vmatprep.subr.mxu0 0.0
        %724 = vmatpush1.msra.mxu0 %v605
        %725 = vmatprep.subr.mxu0 0.0
        %726 = vmatpush1.msra.mxu0 0.0
        %727 = vmatprep.subr.mxu0 0.0
        %728 = vmatpush1.msra.mxu0 0.0
        %729 = vmatprep.subr.mxu0 0.0
        %730 = vmatpush1.msra.mxu0 0.0
        %731 = vmatprep.subr.mxu0 0.0
        %732 = vmatpush1.msra.mxu0 0.0
        %733 = vmatprep.subr.mxu0 0.0
        %734 = vmatpush1.msra.mxu0 0.0
        %735 = vmatprep.subr.mxu0 0.0
        %736 = vmatpush1.msra.mxu0 0.0
        %737 = vmatprep.subr.mxu0 0.0
        %738 = vmatpush1.msra.mxu0 0.0
        %739 = vmatprep.subr.mxu0 0.0
        %740 = vmatpush1.msra.mxu0 0.0
        %741 = vmatprep.subr.mxu0 0.0
        %742 = vmatpush1.msra.mxu0 0.0
        %743 = vmatprep.subr.mxu0 0.0
        %744 = vmatpush1.msra.mxu0 0.0
        %745 = vmatprep.subr.mxu0 0.0
        %746 = vmatpush1.msra.mxu0 0.0
        %747 = vmatprep.subr.mxu0 0.0
        %748 = vmatpush1.msra.mxu0 0.0
        %749 = vmatprep.subr.mxu0 0.0
        %750 = vmatpush1.msra.mxu0 0.0
        %751 = vmatprep.subr.mxu0 0.0
        %752 = vmatpush1.msra.mxu0 0.0
        %753 = vmatprep.subr.mxu0 0.0
        %754 = vmatpush1.msra.mxu0 0.0
        %755 = vmatprep.subr.mxu0 0.0
        %756 = vmatpush1.msra.mxu0 0.0
        %757 = vmatprep.subr.mxu0 0.0
        %758 = vmatpush1.msra.mxu0 0.0
        %759 = vmatprep.subr.mxu0 0.0
        %760 = vmatpush1.msra.mxu0 0.0
        %761 = vmatprep.subr.mxu0 0.0
        %762 = vmatpush1.msra.mxu0 0.0
        %763 = vmatprep.subr.mxu0 0.0
        %764 = vmatpush1.msra.mxu0 0.0
        %765 = vmatprep.subr.mxu0 0.0
        %766 = vmatpush1.msra.mxu0 0.0
        %767 = vmatprep.subr.mxu0 0.0
        %768 = vmatpush1.msra.mxu0 0.0
        %769 = vmatprep.subr.mxu0 0.0
        %770 = vmatpush1.msra.mxu0 0.0
        %771 = vmatprep.subr.mxu0 0.0
        %772 = vmatpush1.msra.mxu0 0.0
        %773 = vmatprep.subr.mxu0 0.0
        %774 = vmatpush1.msra.mxu0 0.0
        %775 = vmatprep.subr.mxu0 0.0
        %776 = vmatpush1.msra.mxu0 0.0
        %777 = vmatprep.subr.mxu0 0.0
        %778 = vmatpush1.msra.mxu0 0.0
        %779 = vmatprep.subr.mxu0 0.0
        %780 = vmatpush1.msra.mxu0 0.0
        %781 = vmatprep.mubr.f32.mxu0 0.0
        %782 = vmatmul.mubr.f32.gmra.mrb[0].mxu0 %v715
        %v783 = vpop.f32.mrb[0].mxu0
        %v784 = vadd.f32 %v713, %v783
        %v785 = vpop.f32.mrb[0].mxu0
        %786 = vdwg.mxu0
        %v787 = vlaneseq
        %v788 = vshrl.u32 %v787, 7
        %v789 = vsub.s32 2, %v788
        %v790 = vrot.slane %v614, %v789
        %v792 = vsel %vm636, %v596, 0
        %794 = vmatprep.subr.mxu0 0.0
        %795 = vmatpush1.msra.mxu0 %v606
        %796 = vmatprep.subr.mxu0 0.0
        %797 = vmatpush1.msra.mxu0 %v607
        %798 = vmatprep.subr.mxu0 0.0
        %799 = vmatpush1.msra.mxu0 %v608
        %800 = vmatprep.subr.mxu0 0.0
        %801 = vmatpush1.msra.mxu0 %v609
        %802 = vmatprep.subr.mxu0 0.0
        %803 = vmatpush1.msra.mxu0 0.0
        %804 = vmatprep.subr.mxu0 0.0
        %805 = vmatpush1.msra.mxu0 0.0
        %806 = vmatprep.subr.mxu0 0.0
        %807 = vmatpush1.msra.mxu0 0.0
        %808 = vmatprep.subr.mxu0 0.0
        %809 = vmatpush1.msra.mxu0 0.0
        %810 = vmatprep.subr.mxu0 0.0
        %811 = vmatpush1.msra.mxu0 0.0
        %812 = vmatprep.subr.mxu0 0.0
        %813 = vmatpush1.msra.mxu0 0.0
        %814 = vmatprep.subr.mxu0 0.0
        %815 = vmatpush1.msra.mxu0 0.0
        %816 = vmatprep.subr.mxu0 0.0
        %817 = vmatpush1.msra.mxu0 0.0
        %818 = vmatprep.subr.mxu0 0.0
        %819 = vmatpush1.msra.mxu0 0.0
        %820 = vmatprep.subr.mxu0 0.0
        %821 = vmatpush1.msra.mxu0 0.0
        %822 = vmatprep.subr.mxu0 0.0
        %823 = vmatpush1.msra.mxu0 0.0
        %824 = vmatprep.subr.mxu0 0.0
        %825 = vmatpush1.msra.mxu0 0.0
        %826 = vmatprep.subr.mxu0 0.0
        %827 = vmatpush1.msra.mxu0 0.0
        %828 = vmatprep.subr.mxu0 0.0
        %829 = vmatpush1.msra.mxu0 0.0
        %830 = vmatprep.subr.mxu0 0.0
        %831 = vmatpush1.msra.mxu0 0.0
        %832 = vmatprep.subr.mxu0 0.0
        %833 = vmatpush1.msra.mxu0 0.0
        %834 = vmatprep.subr.mxu0 0.0
        %835 = vmatpush1.msra.mxu0 0.0
        %836 = vmatprep.subr.mxu0 0.0
        %837 = vmatpush1.msra.mxu0 0.0
        %838 = vmatprep.subr.mxu0 0.0
        %839 = vmatpush1.msra.mxu0 0.0
        %840 = vmatprep.subr.mxu0 0.0
        %841 = vmatpush1.msra.mxu0 0.0
        %842 = vmatprep.subr.mxu0 0.0
        %843 = vmatpush1.msra.mxu0 0.0
        %844 = vmatprep.subr.mxu0 0.0
        %845 = vmatpush1.msra.mxu0 0.0
        %846 = vmatprep.subr.mxu0 0.0
        %847 = vmatpush1.msra.mxu0 0.0
        %848 = vmatprep.subr.mxu0 0.0
        %849 = vmatpush1.msra.mxu0 0.0
        %850 = vmatprep.subr.mxu0 0.0
        %851 = vmatpush1.msra.mxu0 0.0
        %852 = vmatprep.subr.mxu0 0.0
        %853 = vmatpush1.msra.mxu0 0.0
        %854 = vmatprep.subr.mxu0 0.0
        %855 = vmatpush1.msra.mxu0 0.0
        %856 = vmatprep.subr.mxu0 0.0
        %857 = vmatpush1.msra.mxu0 0.0
        %858 = vmatprep.mubr.f32.mxu0 0.0
        %859 = vmatmul.mubr.f32.gmra.mrb[0].mxu0 %v792
        %v860 = vpop.f32.mrb[0].mxu0
        %v861 = vadd.f32 %v790, %v860
        %v862 = vpop.f32.mrb[0].mxu0
        %863 = vdwg.mxu0
        %vm864 = vcmask 64512
        %v866 = vsel %vm864, %v707, 0
        %v869 = vsel %vm864, %v784, 0
        %871 = vmatprep.subr.mxu0 0.0
        %872 = vmatpush1.xpose.msra.mxu0 %v869
        %873 = vmatprep.subr.mxu0 0.0
        %874 = vmatpush1.xpose.msra.mxu0 0.0
        %875 = vmatprep.subr.mxu0 0.0
        %876 = vmatpush1.xpose.msra.mxu0 0.0
        %877 = vmatprep.subr.mxu0 0.0
        %878 = vmatpush1.xpose.msra.mxu0 0.0
        %879 = vmatprep.subr.mxu0 0.0
        %880 = vmatpush1.xpose.msra.mxu0 0.0
        %881 = vmatprep.subr.mxu0 0.0
        %882 = vmatpush1.xpose.msra.mxu0 0.0
        %883 = vmatprep.subr.mxu0 0.0
        %884 = vmatpush1.xpose.msra.mxu0 0.0
        %885 = vmatprep.subr.mxu0 0.0
        %886 = vmatpush1.xpose.msra.mxu0 0.0
        %887 = vmatprep.subr.mxu0 0.0
        %888 = vmatpush1.xpose.msra.mxu0 0.0
        %889 = vmatprep.subr.mxu0 0.0
        %890 = vmatpush1.xpose.msra.mxu0 0.0
        %891 = vmatprep.subr.mxu0 0.0
        %892 = vmatpush1.xpose.msra.mxu0 0.0
        %893 = vmatprep.subr.mxu0 0.0
        %894 = vmatpush1.xpose.msra.mxu0 0.0
        %895 = vmatprep.subr.mxu0 0.0
        %896 = vmatpush1.xpose.msra.mxu0 0.0
        %897 = vmatprep.subr.mxu0 0.0
        %898 = vmatpush1.xpose.msra.mxu0 0.0
        %899 = vmatprep.subr.mxu0 0.0
        %900 = vmatpush1.xpose.msra.mxu0 0.0
        %901 = vmatprep.subr.mxu0 0.0
        %902 = vmatpush1.xpose.msra.mxu0 0.0
        %903 = vmatprep.subr.mxu0 0.0
        %904 = vmatpush1.xpose.msra.mxu0 0.0
        %905 = vmatprep.subr.mxu0 0.0
        %906 = vmatpush1.xpose.msra.mxu0 0.0
        %907 = vmatprep.subr.mxu0 0.0
        %908 = vmatpush1.xpose.msra.mxu0 0.0
        %909 = vmatprep.subr.mxu0 0.0
        %910 = vmatpush1.xpose.msra.mxu0 0.0
        %911 = vmatprep.subr.mxu0 0.0
        %912 = vmatpush1.xpose.msra.mxu0 0.0
        %913 = vmatprep.subr.mxu0 0.0
        %914 = vmatpush1.xpose.msra.mxu0 0.0
        %915 = vmatprep.subr.mxu0 0.0
        %916 = vmatpush1.xpose.msra.mxu0 0.0
        %917 = vmatprep.subr.mxu0 0.0
        %918 = vmatpush1.xpose.msra.mxu0 0.0
        %919 = vmatprep.subr.mxu0 0.0
        %920 = vmatpush1.xpose.msra.mxu0 0.0
        %921 = vmatprep.subr.mxu0 0.0
        %922 = vmatpush1.xpose.msra.mxu0 0.0
        %923 = vmatprep.subr.mxu0 0.0
        %924 = vmatpush1.xpose.msra.mxu0 0.0
        %925 = vmatprep.subr.mxu0 0.0
        %926 = vmatpush1.xpose.msra.mxu0 0.0
        %927 = vmatprep.subr.mxu0 0.0
        %928 = vmatpush1.xpose.msra.mxu0 0.0
        %929 = vmatprep.subr.mxu0 0.0
        %930 = vmatpush1.xpose.msra.mxu0 0.0
        %931 = vmatprep.subr.mxu0 0.0
        %932 = vmatpush1.xpose.msra.mxu0 0.0
        %933 = vmatprep.subr.mxu0 0.0
        %934 = vmatpush1.xpose.msra.mxu0 0.0
        %935 = vmatprep.mubr.f32.mxu0 0.0
        %936 = vmatmul.mubr.f32.gmra.mrb[0].mxu0 %v866
        %v937 = vpop.f32.mrb[0].mxu0
        %v938 = vadd.f32 0.0, %v937
        %v939 = vpop.f32.mrb[0].mxu0
        %940 = vdwg.mxu0
        %v941 = vmul.f32 %v938, 0.35355338
        %v942 = vadd.f32 %v941, %v597
        %v943 = vsel %vm864, %v942, -inf
        %944 = vmax.xlane.f32.xlu0 %v943
        %v945 = vpop.xlane.xlu0 %944
        %v946 = vsub.f32 %v942, %v945
        %v947 = vmul.f32 %v946, 1.442695
        %v948 = vpow.pop %v947
        %v949 = vsel %vm864, %v948, 0.0
        %950 = vadd.xlane.f32.xlu0 %v949
        %v951 = vpop.xlane.xlu0 %950
        %v952 = vrcp.pop %v951
        %v953 = vmul.f32 %v948, %v952
        %v955 = vsel %vm864, %v953, 0
        %957 = vmatprep.subr.mxu0 0.0
        %958 = vmatpush1.msra.mxu0 %v861
        %959 = vmatprep.subr.mxu0 0.0
        %960 = vmatpush1.msra.mxu0 0.0
        %961 = vmatprep.subr.mxu0 0.0
        %962 = vmatpush1.msra.mxu0 0.0
        %963 = vmatprep.subr.mxu0 0.0
        %964 = vmatpush1.msra.mxu0 0.0
        %965 = vmatprep.subr.mxu0 0.0
        %966 = vmatpush1.msra.mxu0 0.0
        %967 = vmatprep.subr.mxu0 0.0
        %968 = vmatpush1.msra.mxu0 0.0
        %969 = vmatprep.subr.mxu0 0.0
        %970 = vmatpush1.msra.mxu0 0.0
        %971 = vmatprep.subr.mxu0 0.0
        %972 = vmatpush1.msra.mxu0 0.0
        %973 = vmatprep.subr.mxu0 0.0
        %974 = vmatpush1.msra.mxu0 0.0
        %975 = vmatprep.subr.mxu0 0.0
        %976 = vmatpush1.msra.mxu0 0.0
        %977 = vmatprep.subr.mxu0 0.0
        %978 = vmatpush1.msra.mxu0 0.0
        %979 = vmatprep.subr.mxu0 0.0
        %980 = vmatpush1.msra.mxu0 0.0
        %981 = vmatprep.subr.mxu0 0.0
        %982 = vmatpush1.msra.mxu0 0.0
        %983 = vmatprep.subr.mxu0 0.0
        %984 = vmatpush1.msra.mxu0 0.0
        %985 = vmatprep.subr.mxu0 0.0
        %986 = vmatpush1.msra.mxu0 0.0
        %987 = vmatprep.subr.mxu0 0.0
        %988 = vmatpush1.msra.mxu0 0.0
        %989 = vmatprep.subr.mxu0 0.0
        %990 = vmatpush1.msra.mxu0 0.0
        %991 = vmatprep.subr.mxu0 0.0
        %992 = vmatpush1.msra.mxu0 0.0
        %993 = vmatprep.subr.mxu0 0.0
        %994 = vmatpush1.msra.mxu0 0.0
        %995 = vmatprep.subr.mxu0 0.0
        %996 = vmatpush1.msra.mxu0 0.0
        %997 = vmatprep.subr.mxu0 0.0
        %998 = vmatpush1.msra.mxu0 0.0
        %999 = vmatprep.subr.mxu0 0.0
        %1000 = vmatpush1.msra.mxu0 0.0
        %1001 = vmatprep.subr.mxu0 0.0
        %1002 = vmatpush1.msra.mxu0 0.0
        %1003 = vmatprep.subr.mxu0 0.0
        %1004 = vmatpush1.msra.mxu0 0.0
        %1005 = vmatprep.subr.mxu0 0.0
        %1006 = vmatpush1.msra.mxu0 0.0
        %1007 = vmatprep.subr.mxu0 0.0
        %1008 = vmatpush1.msra.mxu0 0.0
        %1009 = vmatprep.subr.mxu0 0.0
        %1010 = vmatpush1.msra.mxu0 0.0
        %1011 = vmatprep.subr.mxu0 0.0
        %1012 = vmatpush1.msra.mxu0 0.0
        %1013 = vmatprep.subr.mxu0 0.0
        %1014 = vmatpush1.msra.mxu0 0.0
        %1015 = vmatprep.subr.mxu0 0.0
        %1016 = vmatpush1.msra.mxu0 0.0
        %1017 = vmatprep.subr.mxu0 0.0
        %1018 = vmatpush1.msra.mxu0 0.0
        %1019 = vmatprep.subr.mxu0 0.0
        %1020 = vmatpush1.msra.mxu0 0.0
        %1021 = vmatprep.mubr.f32.mxu0 0.0
        %1022 = vmatmul.mubr.f32.gmra.mrb[0].mxu0 %v955
        %v1023 = vpop.f32.mrb[0].mxu0
        %v1024 = vadd.f32 0.0, %v1023
        %v1025 = vpop.f32.mrb[0].mxu0
        %1026 = vdwg.mxu0
        %1027 = vrot.lane.b32.xlu0 %v707, 120
        %v1028 = vpop.permute.xlu0 %1027
        %1029 = vrot.lane.b32.xlu0 %v784, 120
        %v1030 = vpop.permute.xlu0 %1029
        %v1031 = vsel %vm864, %v1028, 0
        %v1033 = vsel %vm864, %v1030, 0
        %1035 = vmatprep.subr.mxu0 0.0
        %1036 = vmatpush1.xpose.msra.mxu0 %v1033
        %1037 = vmatprep.subr.mxu0 0.0
        %1038 = vmatpush1.xpose.msra.mxu0 0.0
        %1039 = vmatprep.subr.mxu0 0.0
        %1040 = vmatpush1.xpose.msra.mxu0 0.0
        %1041 = vmatprep.subr.mxu0 0.0
        %1042 = vmatpush1.xpose.msra.mxu0 0.0
        %1043 = vmatprep.subr.mxu0 0.0
        %1044 = vmatpush1.xpose.msra.mxu0 0.0
        %1045 = vmatprep.subr.mxu0 0.0
        %1046 = vmatpush1.xpose.msra.mxu0 0.0
        %1047 = vmatprep.subr.mxu0 0.0
        %1048 = vmatpush1.xpose.msra.mxu0 0.0
        %1049 = vmatprep.subr.mxu0 0.0
        %1050 = vmatpush1.xpose.msra.mxu0 0.0
        %1051 = vmatprep.subr.mxu0 0.0
        %1052 = vmatpush1.xpose.msra.mxu0 0.0
        %1053 = vmatprep.subr.mxu0 0.0
        %1054 = vmatpush1.xpose.msra.mxu0 0.0
        %1055 = vmatprep.subr.mxu0 0.0
        %1056 = vmatpush1.xpose.msra.mxu0 0.0
        %1057 = vmatprep.subr.mxu0 0.0
        %1058 = vmatpush1.xpose.msra.mxu0 0.0
        %1059 = vmatprep.subr.mxu0 0.0
        %1060 = vmatpush1.xpose.msra.mxu0 0.0
        %1061 = vmatprep.subr.mxu0 0.0
        %1062 = vmatpush1.xpose.msra.mxu0 0.0
        %1063 = vmatprep.subr.mxu0 0.0
        %1064 = vmatpush1.xpose.msra.mxu0 0.0
        %1065 = vmatprep.subr.mxu0 0.0
        %1066 = vmatpush1.xpose.msra.mxu0 0.0
        %1067 = vmatprep.subr.mxu0 0.0
        %1068 = vmatpush1.xpose.msra.mxu0 0.0
        %1069 = vmatprep.subr.mxu0 0.0
        %1070 = vmatpush1.xpose.msra.mxu0 0.0
        %1071 = vmatprep.subr.mxu0 0.0
        %1072 = vmatpush1.xpose.msra.mxu0 0.0
        %1073 = vmatprep.subr.mxu0 0.0
        %1074 = vmatpush1.xpose.msra.mxu0 0.0
        %1075 = vmatprep.subr.mxu0 0.0
        %1076 = vmatpush1.xpose.msra.mxu0 0.0
        %1077 = vmatprep.subr.mxu0 0.0
        %1078 = vmatpush1.xpose.msra.mxu0 0.0
        %1079 = vmatprep.subr.mxu0 0.0
        %1080 = vmatpush1.xpose.msra.mxu0 0.0
        %1081 = vmatprep.subr.mxu0 0.0
        %1082 = vmatpush1.xpose.msra.mxu0 0.0
        %1083 = vmatprep.subr.mxu0 0.0
        %1084 = vmatpush1.xpose.msra.mxu0 0.0
        %1085 = vmatprep.subr.mxu0 0.0
        %1086 = vmatpush1.xpose.msra.mxu0 0.0
        %1087 = vmatprep.subr.mxu0 0.0
        %1088 = vmatpush1.xpose.msra.mxu0 0.0
        %1089 = vmatprep.subr.mxu0 0.0
        %1090 = vmatpush1.xpose.msra.mxu0 0.0
        %1091 = vmatprep.subr.mxu0 0.0
        %1092 = vmatpush1.xpose.msra.mxu0 0.0
        %1093 = vmatprep.subr.mxu0 0.0
        %1094 = vmatpush1.xpose.msra.mxu0 0.0
        %1095 = vmatprep.subr.mxu0 0.0
        %1096 = vmatpush1.xpose.msra.mxu0 0.0
        %1097 = vmatprep.subr.mxu0 0.0
        %1098 = vmatpush1.xpose.msra.mxu0 0.0
        %1099 = vmatprep.mubr.f32.mxu0 0.0
        %1100 = vmatmul.mubr.f32.gmra.mrb[0].mxu0 %v1031
        %v1101 = vpop.f32.mrb[0].mxu0
        %v1102 = vadd.f32 0.0, %v1101
        %v1103 = vpop.f32.mrb[0].mxu0
        %1104 = vdwg.mxu0
        %v1105 = vmul.f32 %v1102, 0.35355338
        %v1106 = vadd.f32 %v1105, %v597
        %v1107 = vsel %vm864, %v1106, -inf
        %1108 = vmax.xlane.f32.xlu0 %v1107
        %v1109 = vpop.xlane.xlu0 %1108
        %v1110 = vsub.f32 %v1106, %v1109
        %v1111 = vmul.f32 %v1110, 1.442695
        %v1112 = vpow.pop %v1111
        %v1113 = vsel %vm864, %v1112, 0.0
        %1114 = vadd.xlane.f32.xlu0 %v1113
        %v1115 = vpop.xlane.xlu0 %1114
        %v1116 = vrcp.pop %v1115
        %v1117 = vmul.f32 %v1112, %v1116
        %1119 = vrot.lane.b32.xlu0 %v861, 120
        %v1120 = vpop.permute.xlu0 %1119
        %v1123 = vsel %vm864, %v1117, 0
        %1125 = vmatprep.subr.mxu0 0.0
        %1126 = vmatpush1.msra.mxu0 %v1120
        %1127 = vmatprep.subr.mxu0 0.0
        %1128 = vmatpush1.msra.mxu0 0.0
        %1129 = vmatprep.subr.mxu0 0.0
        %1130 = vmatpush1.msra.mxu0 0.0
        %1131 = vmatprep.subr.mxu0 0.0
        %1132 = vmatpush1.msra.mxu0 0.0
        %1133 = vmatprep.subr.mxu0 0.0
        %1134 = vmatpush1.msra.mxu0 0.0
        %1135 = vmatprep.subr.mxu0 0.0
        %1136 = vmatpush1.msra.mxu0 0.0
        %1137 = vmatprep.subr.mxu0 0.0
        %1138 = vmatpush1.msra.mxu0 0.0
        %1139 = vmatprep.subr.mxu0 0.0
        %1140 = vmatpush1.msra.mxu0 0.0
        %1141 = vmatprep.subr.mxu0 0.0
        %1142 = vmatpush1.msra.mxu0 0.0
        %1143 = vmatprep.subr.mxu0 0.0
        %1144 = vmatpush1.msra.mxu0 0.0
        %1145 = vmatprep.subr.mxu0 0.0
        %1146 = vmatpush1.msra.mxu0 0.0
        %1147 = vmatprep.subr.mxu0 0.0
        %1148 = vmatpush1.msra.mxu0 0.0
        %1149 = vmatprep.subr.mxu0 0.0
        %1150 = vmatpush1.msra.mxu0 0.0
        %1151 = vmatprep.subr.mxu0 0.0
        %1152 = vmatpush1.msra.mxu0 0.0
        %1153 = vmatprep.subr.mxu0 0.0
        %1154 = vmatpush1.msra.mxu0 0.0
        %1155 = vmatprep.subr.mxu0 0.0
        %1156 = vmatpush1.msra.mxu0 0.0
        %1157 = vmatprep.subr.mxu0 0.0
        %1158 = vmatpush1.msra.mxu0 0.0
        %1159 = vmatprep.subr.mxu0 0.0
        %1160 = vmatpush1.msra.mxu0 0.0
        %1161 = vmatprep.subr.mxu0 0.0
        %1162 = vmatpush1.msra.mxu0 0.0
        %1163 = vmatprep.subr.mxu0 0.0
        %1164 = vmatpush1.msra.mxu0 0.0
        %1165 = vmatprep.subr.mxu0 0.0
        %1166 = vmatpush1.msra.mxu0 0.0
        %1167 = vmatprep.subr.mxu0 0.0
        %1168 = vmatpush1.msra.mxu0 0.0
        %1169 = vmatprep.subr.mxu0 0.0
        %1170 = vmatpush1.msra.mxu0 0.0
        %1171 = vmatprep.subr.mxu0 0.0
        %1172 = vmatpush1.msra.mxu0 0.0
        %1173 = vmatprep.subr.mxu0 0.0
        %1174 = vmatpush1.msra.mxu0 0.0
        %1175 = vmatprep.subr.mxu0 0.0
        %1176 = vmatpush1.msra.mxu0 0.0
        %1177 = vmatprep.subr.mxu0 0.0
        %1178 = vmatpush1.msra.mxu0 0.0
        %1179 = vmatprep.subr.mxu0 0.0
        %1180 = vmatpush1.msra.mxu0 0.0
        %1181 = vmatprep.subr.mxu0 0.0
        %1182 = vmatpush1.msra.mxu0 0.0
        %1183 = vmatprep.subr.mxu0 0.0
        %1184 = vmatpush1.msra.mxu0 0.0
        %1185 = vmatprep.subr.mxu0 0.0
        %1186 = vmatpush1.msra.mxu0 0.0
        %1187 = vmatprep.subr.mxu0 0.0
        %1188 = vmatpush1.msra.mxu0 0.0
        %1189 = vmatprep.mubr.f32.mxu0 0.0
        %1190 = vmatmul.mubr.f32.gmra.mrb[0].mxu0 %v1123
        %v1191 = vpop.f32.mrb[0].mxu0
        %v1192 = vadd.f32 0.0, %v1191
        %v1193 = vpop.f32.mrb[0].mxu0
        %1194 = vdwg.mxu0
        %v1196 = vsel %vm864, %v1192, 0
        %1198 = vmatprep.subr.mxu0 0.0
        %1199 = vmatpush1.msra.mxu0 %v611
        %1200 = vmatprep.subr.mxu0 0.0
        %1201 = vmatpush1.msra.mxu0 0.0
        %1202 = vmatprep.subr.mxu0 0.0
        %1203 = vmatpush1.msra.mxu0 0.0
        %1204 = vmatprep.subr.mxu0 0.0
        %1205 = vmatpush1.msra.mxu0 0.0
        %1206 = vmatprep.subr.mxu0 0.0
        %1207 = vmatpush1.msra.mxu0 0.0
        %1208 = vmatprep.subr.mxu0 0.0
        %1209 = vmatpush1.msra.mxu0 0.0
        %1210 = vmatprep.subr.mxu0 0.0
        %1211 = vmatpush1.msra.mxu0 0.0
        %1212 = vmatprep.subr.mxu0 0.0
        %1213 = vmatpush1.msra.mxu0 0.0
        %1214 = vmatprep.subr.mxu0 0.0
        %1215 = vmatpush1.msra.mxu0 0.0
        %1216 = vmatprep.subr.mxu0 0.0
        %1217 = vmatpush1.msra.mxu0 0.0
        %1218 = vmatprep.subr.mxu0 0.0
        %1219 = vmatpush1.msra.mxu0 0.0
        %1220 = vmatprep.subr.mxu0 0.0
        %1221 = vmatpush1.msra.mxu0 0.0
        %1222 = vmatprep.subr.mxu0 0.0
        %1223 = vmatpush1.msra.mxu0 0.0
        %1224 = vmatprep.subr.mxu0 0.0
        %1225 = vmatpush1.msra.mxu0 0.0
        %1226 = vmatprep.subr.mxu0 0.0
        %1227 = vmatpush1.msra.mxu0 0.0
        %1228 = vmatprep.subr.mxu0 0.0
        %1229 = vmatpush1.msra.mxu0 0.0
        %1230 = vmatprep.subr.mxu0 0.0
        %1231 = vmatpush1.msra.mxu0 0.0
        %1232 = vmatprep.subr.mxu0 0.0
        %1233 = vmatpush1.msra.mxu0 0.0
        %1234 = vmatprep.subr.mxu0 0.0
        %1235 = vmatpush1.msra.mxu0 0.0
        %1236 = vmatprep.subr.mxu0 0.0
        %1237 = vmatpush1.msra.mxu0 0.0
        %1238 = vmatprep.subr.mxu0 0.0
        %1239 = vmatpush1.msra.mxu0 0.0
        %1240 = vmatprep.subr.mxu0 0.0
        %1241 = vmatpush1.msra.mxu0 0.0
        %1242 = vmatprep.subr.mxu0 0.0
        %1243 = vmatpush1.msra.mxu0 0.0
        %1244 = vmatprep.subr.mxu0 0.0
        %1245 = vmatpush1.msra.mxu0 0.0
        %1246 = vmatprep.subr.mxu0 0.0
        %1247 = vmatpush1.msra.mxu0 0.0
        %1248 = vmatprep.subr.mxu0 0.0
        %1249 = vmatpush1.msra.mxu0 0.0
        %1250 = vmatprep.subr.mxu0 0.0
        %1251 = vmatpush1.msra.mxu0 0.0
        %1252 = vmatprep.subr.mxu0 0.0
        %1253 = vmatpush1.msra.mxu0 0.0
        %1254 = vmatprep.subr.mxu0 0.0
        %1255 = vmatpush1.msra.mxu0 0.0
        %1256 = vmatprep.subr.mxu0 0.0
        %1257 = vmatpush1.msra.mxu0 0.0
        %1258 = vmatprep.subr.mxu0 0.0
        %1259 = vmatpush1.msra.mxu0 0.0
        %1260 = vmatprep.subr.mxu0 0.0
        %1261 = vmatpush1.msra.mxu0 0.0
        %1262 = vmatprep.mubr.f32.mxu0 0.0
        %1263 = vmatmul.mubr.f32.gmra.mrb[0].mxu0 %v1196
        %v1264 = vpop.f32.mrb[0].mxu0
        %v1265 = vadd.f32 0.0, %v1264
        %v1266 = vpop.f32.mrb[0].mxu0
        %1267 = vdwg.mxu0
        %v1269 = vsel %vm864, %v1024, 0
        %1271 = vmatprep.subr.mxu0 0.0
        %1272 = vmatpush1.msra.mxu0 %v610
        %1273 = vmatprep.subr.mxu0 0.0
        %1274 = vmatpush1.msra.mxu0 0.0
        %1275 = vmatprep.subr.mxu0 0.0
        %1276 = vmatpush1.msra.mxu0 0.0
        %1277 = vmatprep.subr.mxu0 0.0
        %1278 = vmatpush1.msra.mxu0 0.0
        %1279 = vmatprep.subr.mxu0 0.0
        %1280 = vmatpush1.msra.mxu0 0.0
        %1281 = vmatprep.subr.mxu0 0.0
        %1282 = vmatpush1.msra.mxu0 0.0
        %1283 = vmatprep.subr.mxu0 0.0
        %1284 = vmatpush1.msra.mxu0 0.0
        %1285 = vmatprep.subr.mxu0 0.0
        %1286 = vmatpush1.msra.mxu0 0.0
        %1287 = vmatprep.subr.mxu0 0.0
        %1288 = vmatpush1.msra.mxu0 0.0
        %1289 = vmatprep.subr.mxu0 0.0
        %1290 = vmatpush1.msra.mxu0 0.0
        %1291 = vmatprep.subr.mxu0 0.0
        %1292 = vmatpush1.msra.mxu0 0.0
        %1293 = vmatprep.subr.mxu0 0.0
        %1294 = vmatpush1.msra.mxu0 0.0
        %1295 = vmatprep.subr.mxu0 0.0
        %1296 = vmatpush1.msra.mxu0 0.0
        %1297 = vmatprep.subr.mxu0 0.0
        %1298 = vmatpush1.msra.mxu0 0.0
        %1299 = vmatprep.subr.mxu0 0.0
        %1300 = vmatpush1.msra.mxu0 0.0
        %1301 = vmatprep.subr.mxu0 0.0
        %1302 = vmatpush1.msra.mxu0 0.0
        %1303 = vmatprep.subr.mxu0 0.0
        %1304 = vmatpush1.msra.mxu0 0.0
        %1305 = vmatprep.subr.mxu0 0.0
        %1306 = vmatpush1.msra.mxu0 0.0
        %1307 = vmatprep.subr.mxu0 0.0
        %1308 = vmatpush1.msra.mxu0 0.0
        %1309 = vmatprep.subr.mxu0 0.0
        %1310 = vmatpush1.msra.mxu0 0.0
        %1311 = vmatprep.subr.mxu0 0.0
        %1312 = vmatpush1.msra.mxu0 0.0
        %1313 = vmatprep.subr.mxu0 0.0
        %1314 = vmatpush1.msra.mxu0 0.0
        %1315 = vmatprep.subr.mxu0 0.0
        %1316 = vmatpush1.msra.mxu0 0.0
        %1317 = vmatprep.subr.mxu0 0.0
        %1318 = vmatpush1.msra.mxu0 0.0
        %1319 = vmatprep.subr.mxu0 0.0
        %1320 = vmatpush1.msra.mxu0 0.0
        %1321 = vmatprep.subr.mxu0 0.0
        %1322 = vmatpush1.msra.mxu0 0.0
        %1323 = vmatprep.subr.mxu0 0.0
        %1324 = vmatpush1.msra.mxu0 0.0
        %1325 = vmatprep.subr.mxu0 0.0
        %1326 = vmatpush1.msra.mxu0 0.0
        %1327 = vmatprep.subr.mxu0 0.0
        %1328 = vmatpush1.msra.mxu0 0.0
        %1329 = vmatprep.subr.mxu0 0.0
        %1330 = vmatpush1.msra.mxu0 0.0
        %1331 = vmatprep.subr.mxu0 0.0
        %1332 = vmatpush1.msra.mxu0 0.0
        %1333 = vmatprep.subr.mxu0 0.0
        %1334 = vmatpush1.msra.mxu0 0.0
        %1335 = vmatprep.mubr.f32.mxu0 0.0
        %1336 = vmatmul.mubr.f32.gmra.mrb[0].mxu0 %v1269
        %v1337 = vpop.f32.mrb[0].mxu0
        %v1338 = vadd.f32 %v1265, %v1337
        %v1339 = vpop.f32.mrb[0].mxu0
        %1340 = vdwg.mxu0
        %1341 = vrot.lane.b32.xlu0 %v707, 112
        %v1342 = vpop.permute.xlu0 %1341
        %1343 = vrot.lane.b32.xlu0 %v784, 112
        %v1344 = vpop.permute.xlu0 %1343
        %v1345 = vsel %vm864, %v1342, 0
        %v1347 = vsel %vm864, %v1344, 0
        %1349 = vmatprep.subr.mxu0 0.0
        %1350 = vmatpush1.xpose.msra.mxu0 %v1347
        %1351 = vmatprep.subr.mxu0 0.0
        %1352 = vmatpush1.xpose.msra.mxu0 0.0
        %1353 = vmatprep.subr.mxu0 0.0
        %1354 = vmatpush1.xpose.msra.mxu0 0.0
        %1355 = vmatprep.subr.mxu0 0.0
        %1356 = vmatpush1.xpose.msra.mxu0 0.0
        %1357 = vmatprep.subr.mxu0 0.0
        %1358 = vmatpush1.xpose.msra.mxu0 0.0
        %1359 = vmatprep.subr.mxu0 0.0
        %1360 = vmatpush1.xpose.msra.mxu0 0.0
        %1361 = vmatprep.subr.mxu0 0.0
        %1362 = vmatpush1.xpose.msra.mxu0 0.0
        %1363 = vmatprep.subr.mxu0 0.0
        %1364 = vmatpush1.xpose.msra.mxu0 0.0
        %1365 = vmatprep.subr.mxu0 0.0
        %1366 = vmatpush1.xpose.msra.mxu0 0.0
        %1367 = vmatprep.subr.mxu0 0.0
        %1368 = vmatpush1.xpose.msra.mxu0 0.0
        %1369 = vmatprep.subr.mxu0 0.0
        %1370 = vmatpush1.xpose.msra.mxu0 0.0
        %1371 = vmatprep.subr.mxu0 0.0
        %1372 = vmatpush1.xpose.msra.mxu0 0.0
        %1373 = vmatprep.subr.mxu0 0.0
        %1374 = vmatpush1.xpose.msra.mxu0 0.0
        %1375 = vmatprep.subr.mxu0 0.0
        %1376 = vmatpush1.xpose.msra.mxu0 0.0
        %1377 = vmatprep.subr.mxu0 0.0
        %1378 = vmatpush1.xpose.msra.mxu0 0.0
        %1379 = vmatprep.subr.mxu0 0.0
        %1380 = vmatpush1.xpose.msra.mxu0 0.0
        %1381 = vmatprep.subr.mxu0 0.0
        %1382 = vmatpush1.xpose.msra.mxu0 0.0
        %1383 = vmatprep.subr.mxu0 0.0
        %1384 = vmatpush1.xpose.msra.mxu0 0.0
        %1385 = vmatprep.subr.mxu0 0.0
        %1386 = vmatpush1.xpose.msra.mxu0 0.0
        %1387 = vmatprep.subr.mxu0 0.0
        %1388 = vmatpush1.xpose.msra.mxu0 0.0
        %1389 = vmatprep.subr.mxu0 0.0
        %1390 = vmatpush1.xpose.msra.mxu0 0.0
        %1391 = vmatprep.subr.mxu0 0.0
        %1392 = vmatpush1.xpose.msra.mxu0 0.0
        %1393 = vmatprep.subr.mxu0 0.0
        %1394 = vmatpush1.xpose.msra.mxu0 0.0
        %1395 = vmatprep.subr.mxu0 0.0
        %1396 = vmatpush1.xpose.msra.mxu0 0.0
        %1397 = vmatprep.subr.mxu0 0.0
        %1398 = vmatpush1.xpose.msra.mxu0 0.0
        %1399 = vmatprep.subr.mxu0 0.0
        %1400 = vmatpush1.xpose.msra.mxu0 0.0
        %1401 = vmatprep.subr.mxu0 0.0
        %1402 = vmatpush1.xpose.msra.mxu0 0.0
        %1403 = vmatprep.subr.mxu0 0.0
        %1404 = vmatpush1.xpose.msra.mxu0 0.0
        %1405 = vmatprep.subr.mxu0 0.0
        %1406 = vmatpush1.xpose.msra.mxu0 0.0
        %1407 = vmatprep.subr.mxu0 0.0
        %1408 = vmatpush1.xpose.msra.mxu0 0.0
        %1409 = vmatprep.subr.mxu0 0.0
        %1410 = vmatpush1.xpose.msra.mxu0 0.0
        %1411 = vmatprep.subr.mxu0 0.0
        %1412 = vmatpush1.xpose.msra.mxu0 0.0
        %1413 = vmatprep.mubr.f32.mxu0 0.0
        %1414 = vmatmul.mubr.f32.gmra.mrb[0].mxu0 %v1345
        %v1415 = vpop.f32.mrb[0].mxu0
        %v1416 = vadd.f32 0.0, %v1415
        %v1417 = vpop.f32.mrb[0].mxu0
        %1418 = vdwg.mxu0
        %v1419 = vmul.f32 %v1416, 0.35355338
        %v1420 = vadd.f32 %v1419, %v597
        %v1421 = vsel %vm864, %v1420, -inf
        %1422 = vmax.xlane.f32.xlu0 %v1421
        %v1423 = vpop.xlane.xlu0 %1422
        %v1424 = vsub.f32 %v1420, %v1423
        %v1425 = vmul.f32 %v1424, 1.442695
        %v1426 = vpow.pop %v1425
        %v1427 = vsel %vm864, %v1426, 0.0
        %1428 = vadd.xlane.f32.xlu0 %v1427
        %v1429 = vpop.xlane.xlu0 %1428
        %v1430 = vrcp.pop %v1429
        %v1431 = vmul.f32 %v1426, %v1430
        %1432 = vrot.lane.b32.xlu0 %v861, 112
        %v1433 = vpop.permute.xlu0 %1432
        %v1436 = vsel %vm864, %v1431, 0
        %1438 = vmatprep.subr.mxu0 0.0
        %1439 = vmatpush1.msra.mxu0 %v1433
        %1440 = vmatprep.subr.mxu0 0.0
        %1441 = vmatpush1.msra.mxu0 0.0
        %1442 = vmatprep.subr.mxu0 0.0
        %1443 = vmatpush1.msra.mxu0 0.0
        %1444 = vmatprep.subr.mxu0 0.0
        %1445 = vmatpush1.msra.mxu0 0.0
        %1446 = vmatprep.subr.mxu0 0.0
        %1447 = vmatpush1.msra.mxu0 0.0
        %1448 = vmatprep.subr.mxu0 0.0
        %1449 = vmatpush1.msra.mxu0 0.0
        %1450 = vmatprep.subr.mxu0 0.0
        %1451 = vmatpush1.msra.mxu0 0.0
        %1452 = vmatprep.subr.mxu0 0.0
        %1453 = vmatpush1.msra.mxu0 0.0
        %1454 = vmatprep.subr.mxu0 0.0
        %1455 = vmatpush1.msra.mxu0 0.0
        %1456 = vmatprep.subr.mxu0 0.0
        %1457 = vmatpush1.msra.mxu0 0.0
        %1458 = vmatprep.subr.mxu0 0.0
        %1459 = vmatpush1.msra.mxu0 0.0
        %1460 = vmatprep.subr.mxu0 0.0
        %1461 = vmatpush1.msra.mxu0 0.0
        %1462 = vmatprep.subr.mxu0 0.0
        %1463 = vmatpush1.msra.mxu0 0.0
        %1464 = vmatprep.subr.mxu0 0.0
        %1465 = vmatpush1.msra.mxu0 0.0
        %1466 = vmatprep.subr.mxu0 0.0
        %1467 = vmatpush1.msra.mxu0 0.0
        %1468 = vmatprep.subr.mxu0 0.0
        %1469 = vmatpush1.msra.mxu0 0.0
        %1470 = vmatprep.subr.mxu0 0.0
        %1471 = vmatpush1.msra.mxu0 0.0
        %1472 = vmatprep.subr.mxu0 0.0
        %1473 = vmatpush1.msra.mxu0 0.0
        %1474 = vmatprep.subr.mxu0 0.0
        %1475 = vmatpush1.msra.mxu0 0.0
        %1476 = vmatprep.subr.mxu0 0.0
        %1477 = vmatpush1.msra.mxu0 0.0
        %1478 = vmatprep.subr.mxu0 0.0
        %1479 = vmatpush1.msra.mxu0 0.0
        %1480 = vmatprep.subr.mxu0 0.0
        %1481 = vmatpush1.msra.mxu0 0.0
        %1482 = vmatprep.subr.mxu0 0.0
        %1483 = vmatpush1.msra.mxu0 0.0
        %1484 = vmatprep.subr.mxu0 0.0
        %1485 = vmatpush1.msra.mxu0 0.0
        %1486 = vmatprep.subr.mxu0 0.0
        %1487 = vmatpush1.msra.mxu0 0.0
        %1488 = vmatprep.subr.mxu0 0.0
        %1489 = vmatpush1.msra.mxu0 0.0
        %1490 = vmatprep.subr.mxu0 0.0
        %1491 = vmatpush1.msra.mxu0 0.0
        %1492 = vmatprep.subr.mxu0 0.0
        %1493 = vmatpush1.msra.mxu0 0.0
        %1494 = vmatprep.subr.mxu0 0.0
        %1495 = vmatpush1.msra.mxu0 0.0
        %1496 = vmatprep.subr.mxu0 0.0
        %1497 = vmatpush1.msra.mxu0 0.0
        %1498 = vmatprep.subr.mxu0 0.0
        %1499 = vmatpush1.msra.mxu0 0.0
        %1500 = vmatprep.subr.mxu0 0.0
        %1501 = vmatpush1.msra.mxu0 0.0
        %1502 = vmatprep.mubr.f32.mxu0 0.0
        %1503 = vmatmul.mubr.f32.gmra.mrb[0].mxu0 %v1436
        %v1504 = vpop.f32.mrb[0].mxu0
        %v1505 = vadd.f32 0.0, %v1504
        %v1506 = vpop.f32.mrb[0].mxu0
        %1507 = vdwg.mxu0
        %v1509 = vsel %vm864, %v1505, 0
        %1511 = vmatprep.subr.mxu0 0.0
        %1512 = vmatpush1.msra.mxu0 %v612
        %1513 = vmatprep.subr.mxu0 0.0
        %1514 = vmatpush1.msra.mxu0 0.0
        %1515 = vmatprep.subr.mxu0 0.0
        %1516 = vmatpush1.msra.mxu0 0.0
        %1517 = vmatprep.subr.mxu0 0.0
        %1518 = vmatpush1.msra.mxu0 0.0
        %1519 = vmatprep.subr.mxu0 0.0
        %1520 = vmatpush1.msra.mxu0 0.0
        %1521 = vmatprep.subr.mxu0 0.0
        %1522 = vmatpush1.msra.mxu0 0.0
        %1523 = vmatprep.subr.mxu0 0.0
        %1524 = vmatpush1.msra.mxu0 0.0
        %1525 = vmatprep.subr.mxu0 0.0
        %1526 = vmatpush1.msra.mxu0 0.0
        %1527 = vmatprep.subr.mxu0 0.0
        %1528 = vmatpush1.msra.mxu0 0.0
        %1529 = vmatprep.subr.mxu0 0.0
        %1530 = vmatpush1.msra.mxu0 0.0
        %1531 = vmatprep.subr.mxu0 0.0
        %1532 = vmatpush1.msra.mxu0 0.0
        %1533 = vmatprep.subr.mxu0 0.0
        %1534 = vmatpush1.msra.mxu0 0.0
        %1535 = vmatprep.subr.mxu0 0.0
        %1536 = vmatpush1.msra.mxu0 0.0
        %1537 = vmatprep.subr.mxu0 0.0
        %1538 = vmatpush1.msra.mxu0 0.0
        %1539 = vmatprep.subr.mxu0 0.0
        %1540 = vmatpush1.msra.mxu0 0.0
        %1541 = vmatprep.subr.mxu0 0.0
        %1542 = vmatpush1.msra.mxu0 0.0
        %1543 = vmatprep.subr.mxu0 0.0
        %1544 = vmatpush1.msra.mxu0 0.0
        %1545 = vmatprep.subr.mxu0 0.0
        %1546 = vmatpush1.msra.mxu0 0.0
        %1547 = vmatprep.subr.mxu0 0.0
        %1548 = vmatpush1.msra.mxu0 0.0
        %1549 = vmatprep.subr.mxu0 0.0
        %1550 = vmatpush1.msra.mxu0 0.0
        %1551 = vmatprep.subr.mxu0 0.0
        %1552 = vmatpush1.msra.mxu0 0.0
        %1553 = vmatprep.subr.mxu0 0.0
        %1554 = vmatpush1.msra.mxu0 0.0
        %1555 = vmatprep.subr.mxu0 0.0
        %1556 = vmatpush1.msra.mxu0 0.0
        %1557 = vmatprep.subr.mxu0 0.0
        %1558 = vmatpush1.msra.mxu0 0.0
        %1559 = vmatprep.subr.mxu0 0.0
        %1560 = vmatpush1.msra.mxu0 0.0
        %1561 = vmatprep.subr.mxu0 0.0
        %1562 = vmatpush1.msra.mxu0 0.0
        %1563 = vmatprep.subr.mxu0 0.0
        %1564 = vmatpush1.msra.mxu0 0.0
        %1565 = vmatprep.subr.mxu0 0.0
        %1566 = vmatpush1.msra.mxu0 0.0
        %1567 = vmatprep.subr.mxu0 0.0
        %1568 = vmatpush1.msra.mxu0 0.0
        %1569 = vmatprep.subr.mxu0 0.0
        %1570 = vmatpush1.msra.mxu0 0.0
        %1571 = vmatprep.subr.mxu0 0.0
        %1572 = vmatpush1.msra.mxu0 0.0
        %1573 = vmatprep.subr.mxu0 0.0
        %1574 = vmatpush1.msra.mxu0 0.0
        %1575 = vmatprep.mubr.f32.mxu0 0.0
        %1576 = vmatmul.mubr.f32.gmra.mrb[0].mxu0 %v1509
        %v1577 = vpop.f32.mrb[0].mxu0
        %v1578 = vadd.f32 0.0, %v1577
        %v1579 = vpop.f32.mrb[0].mxu0
        %1580 = vdwg.mxu0
        %v1581 = vadd.f32 %v1338, %v1578
        %1582 = vrot.lane.b32.xlu0 %v707, 104
        %v1583 = vpop.permute.xlu0 %1582
        %1584 = vrot.lane.b32.xlu0 %v784, 104
        %v1585 = vpop.permute.xlu0 %1584
        %v1586 = vsel %vm864, %v1583, 0
        %v1588 = vsel %vm864, %v1585, 0
        %1590 = vmatprep.subr.mxu0 0.0
        %1591 = vmatpush1.xpose.msra.mxu0 %v1588
        %1592 = vmatprep.subr.mxu0 0.0
        %1593 = vmatpush1.xpose.msra.mxu0 0.0
        %1594 = vmatprep.subr.mxu0 0.0
        %1595 = vmatpush1.xpose.msra.mxu0 0.0
        %1596 = vmatprep.subr.mxu0 0.0
        %1597 = vmatpush1.xpose.msra.mxu0 0.0
        %1598 = vmatprep.subr.mxu0 0.0
        %1599 = vmatpush1.xpose.msra.mxu0 0.0
        %1600 = vmatprep.subr.mxu0 0.0
        %1601 = vmatpush1.xpose.msra.mxu0 0.0
        %1602 = vmatprep.subr.mxu0 0.0
        %1603 = vmatpush1.xpose.msra.mxu0 0.0
        %1604 = vmatprep.subr.mxu0 0.0
        %1605 = vmatpush1.xpose.msra.mxu0 0.0
        %1606 = vmatprep.subr.mxu0 0.0
        %1607 = vmatpush1.xpose.msra.mxu0 0.0
        %1608 = vmatprep.subr.mxu0 0.0
        %1609 = vmatpush1.xpose.msra.mxu0 0.0
        %1610 = vmatprep.subr.mxu0 0.0
        %1611 = vmatpush1.xpose.msra.mxu0 0.0
        %1612 = vmatprep.subr.mxu0 0.0
        %1613 = vmatpush1.xpose.msra.mxu0 0.0
        %1614 = vmatprep.subr.mxu0 0.0
        %1615 = vmatpush1.xpose.msra.mxu0 0.0
        %1616 = vmatprep.subr.mxu0 0.0
        %1617 = vmatpush1.xpose.msra.mxu0 0.0
        %1618 = vmatprep.subr.mxu0 0.0
        %1619 = vmatpush1.xpose.msra.mxu0 0.0
        %1620 = vmatprep.subr.mxu0 0.0
        %1621 = vmatpush1.xpose.msra.mxu0 0.0
        %1622 = vmatprep.subr.mxu0 0.0
        %1623 = vmatpush1.xpose.msra.mxu0 0.0
        %1624 = vmatprep.subr.mxu0 0.0
        %1625 = vmatpush1.xpose.msra.mxu0 0.0
        %1626 = vmatprep.subr.mxu0 0.0
        %1627 = vmatpush1.xpose.msra.mxu0 0.0
        %1628 = vmatprep.subr.mxu0 0.0
        %1629 = vmatpush1.xpose.msra.mxu0 0.0
        %1630 = vmatprep.subr.mxu0 0.0
        %1631 = vmatpush1.xpose.msra.mxu0 0.0
        %1632 = vmatprep.subr.mxu0 0.0
        %1633 = vmatpush1.xpose.msra.mxu0 0.0
        %1634 = vmatprep.subr.mxu0 0.0
        %1635 = vmatpush1.xpose.msra.mxu0 0.0
        %1636 = vmatprep.subr.mxu0 0.0
        %1637 = vmatpush1.xpose.msra.mxu0 0.0
        %1638 = vmatprep.subr.mxu0 0.0
        %1639 = vmatpush1.xpose.msra.mxu0 0.0
        %1640 = vmatprep.subr.mxu0 0.0
        %1641 = vmatpush1.xpose.msra.mxu0 0.0
        %1642 = vmatprep.subr.mxu0 0.0
        %1643 = vmatpush1.xpose.msra.mxu0 0.0
        %1644 = vmatprep.subr.mxu0 0.0
        %1645 = vmatpush1.xpose.msra.mxu0 0.0
        %1646 = vmatprep.subr.mxu0 0.0
        %1647 = vmatpush1.xpose.msra.mxu0 0.0
        %1648 = vmatprep.subr.mxu0 0.0
        %1649 = vmatpush1.xpose.msra.mxu0 0.0
        %1650 = vmatprep.subr.mxu0 0.0
        %1651 = vmatpush1.xpose.msra.mxu0 0.0
        %1652 = vmatprep.subr.mxu0 0.0
        %1653 = vmatpush1.xpose.msra.mxu0 0.0
        %1654 = vmatprep.mubr.f32.mxu0 0.0
        %1655 = vmatmul.mubr.f32.gmra.mrb[0].mxu0 %v1586
        %v1656 = vpop.f32.mrb[0].mxu0
        %v1657 = vadd.f32 0.0, %v1656
        %v1658 = vpop.f32.mrb[0].mxu0
        %1659 = vdwg.mxu0
        %v1660 = vmul.f32 %v1657, 0.35355338
        %v1661 = vadd.f32 %v1660, %v597
        %v1662 = vsel %vm864, %v1661, -inf
        %1663 = vmax.xlane.f32.xlu0 %v1662
        %v1664 = vpop.xlane.xlu0 %1663
        %v1665 = vsub.f32 %v1661, %v1664
        %v1666 = vmul.f32 %v1665, 1.442695
        %v1667 = vpow.pop %v1666
        %v1668 = vsel %vm864, %v1667, 0.0
        %1669 = vadd.xlane.f32.xlu0 %v1668
        %v1670 = vpop.xlane.xlu0 %1669
        %v1671 = vrcp.pop %v1670
        %v1672 = vmul.f32 %v1667, %v1671
        %1673 = vrot.lane.b32.xlu0 %v861, 104
        %v1674 = vpop.permute.xlu0 %1673
        %v1677 = vsel %vm864, %v1672, 0
        %1679 = vmatprep.subr.mxu0 0.0
        %1680 = vmatpush1.msra.mxu0 %v1674
        %1681 = vmatprep.subr.mxu0 0.0
        %1682 = vmatpush1.msra.mxu0 0.0
        %1683 = vmatprep.subr.mxu0 0.0
        %1684 = vmatpush1.msra.mxu0 0.0
        %1685 = vmatprep.subr.mxu0 0.0
        %1686 = vmatpush1.msra.mxu0 0.0
        %1687 = vmatprep.subr.mxu0 0.0
        %1688 = vmatpush1.msra.mxu0 0.0
        %1689 = vmatprep.subr.mxu0 0.0
        %1690 = vmatpush1.msra.mxu0 0.0
        %1691 = vmatprep.subr.mxu0 0.0
        %1692 = vmatpush1.msra.mxu0 0.0
        %1693 = vmatprep.subr.mxu0 0.0
        %1694 = vmatpush1.msra.mxu0 0.0
        %1695 = vmatprep.subr.mxu0 0.0
        %1696 = vmatpush1.msra.mxu0 0.0
        %1697 = vmatprep.subr.mxu0 0.0
        %1698 = vmatpush1.msra.mxu0 0.0
        %1699 = vmatprep.subr.mxu0 0.0
        %1700 = vmatpush1.msra.mxu0 0.0
        %1701 = vmatprep.subr.mxu0 0.0
        %1702 = vmatpush1.msra.mxu0 0.0
        %1703 = vmatprep.subr.mxu0 0.0
        %1704 = vmatpush1.msra.mxu0 0.0
        %1705 = vmatprep.subr.mxu0 0.0
        %1706 = vmatpush1.msra.mxu0 0.0
        %1707 = vmatprep.subr.mxu0 0.0
        %1708 = vmatpush1.msra.mxu0 0.0
        %1709 = vmatprep.subr.mxu0 0.0
        %1710 = vmatpush1.msra.mxu0 0.0
        %1711 = vmatprep.subr.mxu0 0.0
        %1712 = vmatpush1.msra.mxu0 0.0
        %1713 = vmatprep.subr.mxu0 0.0
        %1714 = vmatpush1.msra.mxu0 0.0
        %1715 = vmatprep.subr.mxu0 0.0
        %1716 = vmatpush1.msra.mxu0 0.0
        %1717 = vmatprep.subr.mxu0 0.0
        %1718 = vmatpush1.msra.mxu0 0.0
        %1719 = vmatprep.subr.mxu0 0.0
        %1720 = vmatpush1.msra.mxu0 0.0
        %1721 = vmatprep.subr.mxu0 0.0
        %1722 = vmatpush1.msra.mxu0 0.0
        %1723 = vmatprep.subr.mxu0 0.0
        %1724 = vmatpush1.msra.mxu0 0.0
        %1725 = vmatprep.subr.mxu0 0.0
        %1726 = vmatpush1.msra.mxu0 0.0
        %1727 = vmatprep.subr.mxu0 0.0
        %1728 = vmatpush1.msra.mxu0 0.0
        %1729 = vmatprep.subr.mxu0 0.0
        %1730 = vmatpush1.msra.mxu0 0.0
        %1731 = vmatprep.subr.mxu0 0.0
        %1732 = vmatpush1.msra.mxu0 0.0
        %1733 = vmatprep.subr.mxu0 0.0
        %1734 = vmatpush1.msra.mxu0 0.0
        %1735 = vmatprep.subr.mxu0 0.0
        %1736 = vmatpush1.msra.mxu0 0.0
        %1737 = vmatprep.subr.mxu0 0.0
        %1738 = vmatpush1.msra.mxu0 0.0
        %1739 = vmatprep.subr.mxu0 0.0
        %1740 = vmatpush1.msra.mxu0 0.0
        %1741 = vmatprep.subr.mxu0 0.0
        %1742 = vmatpush1.msra.mxu0 0.0
        %1743 = vmatprep.mubr.f32.mxu0 0.0
        %1744 = vmatmul.mubr.f32.gmra.mrb[0].mxu0 %v1677
        %v1745 = vpop.f32.mrb[0].mxu0
        %v1746 = vadd.f32 0.0, %v1745
        %v1747 = vpop.f32.mrb[0].mxu0
        %1748 = vdwg.mxu0
        %v1750 = vsel %vm864, %v1746, 0
        %1752 = vmatprep.subr.mxu0 0.0
        %1753 = vmatpush1.msra.mxu0 %v613
        %1754 = vmatprep.subr.mxu0 0.0
        %1755 = vmatpush1.msra.mxu0 0.0
        %1756 = vmatprep.subr.mxu0 0.0
        %1757 = vmatpush1.msra.mxu0 0.0
        %1758 = vmatprep.subr.mxu0 0.0
        %1759 = vmatpush1.msra.mxu0 0.0
        %1760 = vmatprep.subr.mxu0 0.0
        %1761 = vmatpush1.msra.mxu0 0.0
        %1762 = vmatprep.subr.mxu0 0.0
        %1763 = vmatpush1.msra.mxu0 0.0
        %1764 = vmatprep.subr.mxu0 0.0
        %1765 = vmatpush1.msra.mxu0 0.0
        %1766 = vmatprep.subr.mxu0 0.0
        %1767 = vmatpush1.msra.mxu0 0.0
        %1768 = vmatprep.subr.mxu0 0.0
        %1769 = vmatpush1.msra.mxu0 0.0
        %1770 = vmatprep.subr.mxu0 0.0
        %1771 = vmatpush1.msra.mxu0 0.0
        %1772 = vmatprep.subr.mxu0 0.0
        %1773 = vmatpush1.msra.mxu0 0.0
        %1774 = vmatprep.subr.mxu0 0.0
        %1775 = vmatpush1.msra.mxu0 0.0
        %1776 = vmatprep.subr.mxu0 0.0
        %1777 = vmatpush1.msra.mxu0 0.0
        %1778 = vmatprep.subr.mxu0 0.0
        %1779 = vmatpush1.msra.mxu0 0.0
        %1780 = vmatprep.subr.mxu0 0.0
        %1781 = vmatpush1.msra.mxu0 0.0
        %1782 = vmatprep.subr.mxu0 0.0
        %1783 = vmatpush1.msra.mxu0 0.0
        %1784 = vmatprep.subr.mxu0 0.0
        %1785 = vmatpush1.msra.mxu0 0.0
        %1786 = vmatprep.subr.mxu0 0.0
        %1787 = vmatpush1.msra.mxu0 0.0
        %1788 = vmatprep.subr.mxu0 0.0
        %1789 = vmatpush1.msra.mxu0 0.0
        %1790 = vmatprep.subr.mxu0 0.0
        %1791 = vmatpush1.msra.mxu0 0.0
        %1792 = vmatprep.subr.mxu0 0.0
        %1793 = vmatpush1.msra.mxu0 0.0
        %1794 = vmatprep.subr.mxu0 0.0
        %1795 = vmatpush1.msra.mxu0 0.0
        %1796 = vmatprep.subr.mxu0 0.0
        %1797 = vmatpush1.msra.mxu0 0.0
        %1798 = vmatprep.subr.mxu0 0.0
        %1799 = vmatpush1.msra.mxu0 0.0
        %1800 = vmatprep.subr.mxu0 0.0
        %1801 = vmatpush1.msra.mxu0 0.0
        %1802 = vmatprep.subr.mxu0 0.0
        %1803 = vmatpush1.msra.mxu0 0.0
        %1804 = vmatprep.subr.mxu0 0.0
        %1805 = vmatpush1.msra.mxu0 0.0
        %1806 = vmatprep.subr.mxu0 0.0
        %1807 = vmatpush1.msra.mxu0 0.0
        %1808 = vmatprep.subr.mxu0 0.0
        %1809 = vmatpush1.msra.mxu0 0.0
        %1810 = vmatprep.subr.mxu0 0.0
        %1811 = vmatpush1.msra.mxu0 0.0
        %1812 = vmatprep.subr.mxu0 0.0
        %1813 = vmatpush1.msra.mxu0 0.0
        %1814 = vmatprep.subr.mxu0 0.0
        %1815 = vmatpush1.msra.mxu0 0.0
        %1816 = vmatprep.mubr.f32.mxu0 0.0
        %1817 = vmatmul.mubr.f32.gmra.mrb[0].mxu0 %v1750
        %v1818 = vpop.f32.mrb[0].mxu0
        %v1819 = vadd.f32 0.0, %v1818
        %v1820 = vpop.f32.mrb[0].mxu0
        %1821 = vdwg.mxu0
        %v1822 = vadd.f32 %v1581, %v1819
        %v1823 = vlaneseq
        %v1824 = vshrl.u32 %v1823, 7
        %v1825 = vsub.s32 3, %v1824
        %v1826 = vrot.slane %v614, %v1825
        %v1827 = vadd.f32 %v1822, %v1826
        %v1828 = vlaneseq
        %v1829 = vshrl.u32 %v1828, 7
        %v1830 = vsub.s32 0, %v1829
        %v1831 = vrot.slane %v631, %v1830
        %v1833 = vsel %vm636, %v1827, 0
        %1835 = vmatprep.subr.mxu0 0.0
        %1836 = vmatpush1.msra.mxu0 %v615
        %1837 = vmatprep.subr.mxu0 0.0
        %1838 = vmatpush1.msra.mxu0 %v616
        %1839 = vmatprep.subr.mxu0 0.0
        %1840 = vmatpush1.msra.mxu0 %v617
        %1841 = vmatprep.subr.mxu0 0.0
        %1842 = vmatpush1.msra.mxu0 %v618
        %1843 = vmatprep.subr.mxu0 0.0
        %1844 = vmatpush1.msra.mxu0 0.0
        %1845 = vmatprep.subr.mxu0 0.0
        %1846 = vmatpush1.msra.mxu0 0.0
        %1847 = vmatprep.subr.mxu0 0.0
        %1848 = vmatpush1.msra.mxu0 0.0
        %1849 = vmatprep.subr.mxu0 0.0
        %1850 = vmatpush1.msra.mxu0 0.0
        %1851 = vmatprep.subr.mxu0 0.0
        %1852 = vmatpush1.msra.mxu0 0.0
        %1853 = vmatprep.subr.mxu0 0.0
        %1854 = vmatpush1.msra.mxu0 0.0
        %1855 = vmatprep.subr.mxu0 0.0
        %1856 = vmatpush1.msra.mxu0 0.0
        %1857 = vmatprep.subr.mxu0 0.0
        %1858 = vmatpush1.msra.mxu0 0.0
        %1859 = vmatprep.subr.mxu0 0.0
        %1860 = vmatpush1.msra.mxu0 0.0
        %1861 = vmatprep.subr.mxu0 0.0
        %1862 = vmatpush1.msra.mxu0 0.0
        %1863 = vmatprep.subr.mxu0 0.0
        %1864 = vmatpush1.msra.mxu0 0.0
        %1865 = vmatprep.subr.mxu0 0.0
        %1866 = vmatpush1.msra.mxu0 0.0
        %1867 = vmatprep.subr.mxu0 0.0
        %1868 = vmatpush1.msra.mxu0 0.0
        %1869 = vmatprep.subr.mxu0 0.0
        %1870 = vmatpush1.msra.mxu0 0.0
        %1871 = vmatprep.subr.mxu0 0.0
        %1872 = vmatpush1.msra.mxu0 0.0
        %1873 = vmatprep.subr.mxu0 0.0
        %1874 = vmatpush1.msra.mxu0 0.0
        %1875 = vmatprep.subr.mxu0 0.0
        %1876 = vmatpush1.msra.mxu0 0.0
        %1877 = vmatprep.subr.mxu0 0.0
        %1878 = vmatpush1.msra.mxu0 0.0
        %1879 = vmatprep.subr.mxu0 0.0
        %1880 = vmatpush1.msra.mxu0 0.0
        %1881 = vmatprep.subr.mxu0 0.0
        %1882 = vmatpush1.msra.mxu0 0.0
        %1883 = vmatprep.subr.mxu0 0.0
        %1884 = vmatpush1.msra.mxu0 0.0
        %1885 = vmatprep.subr.mxu0 0.0
        %1886 = vmatpush1.msra.mxu0 0.0
        %1887 = vmatprep.subr.mxu0 0.0
        %1888 = vmatpush1.msra.mxu0 0.0
        %1889 = vmatprep.subr.mxu0 0.0
        %1890 = vmatpush1.msra.mxu0 0.0
        %1891 = vmatprep.subr.mxu0 0.0
        %1892 = vmatpush1.msra.mxu0 0.0
        %1893 = vmatprep.subr.mxu0 0.0
        %1894 = vmatpush1.msra.mxu0 0.0
        %1895 = vmatprep.subr.mxu0 0.0
        %1896 = vmatpush1.msra.mxu0 0.0
        %1897 = vmatprep.subr.mxu0 0.0
        %1898 = vmatpush1.msra.mxu0 0.0
        %1899 = vmatprep.mubr.f32.mxu0 0.0
        %1900 = vmatmul.mubr.f32.gmra.mrb[0].mxu0 %v1833
        %v1901 = vpop.f32.mrb[0].mxu0
        %v1902 = vadd.f32 %v1831, %v1901
        %v1903 = vpop.f32.mrb[0].mxu0
        %1904 = vdwg.mxu0
        %v1905 = vlaneseq
        %v1906 = vshrl.u32 %v1905, 7
        %v1907 = vsub.s32 1, %v1906
        %v1908 = vrot.slane %v631, %v1907
        %1909 = vmatprep.subr.mxu0 0.0
        %1910 = vmatpush1.msra.mxu0 %v619
        %1911 = vmatprep.subr.mxu0 0.0
        %1912 = vmatpush1.msra.mxu0 %v620
        %1913 = vmatprep.subr.mxu0 0.0
        %1914 = vmatpush1.msra.mxu0 %v621
        %1915 = vmatprep.subr.mxu0 0.0
        %1916 = vmatpush1.msra.mxu0 %v622
        %1917 = vmatprep.subr.mxu0 0.0
        %1918 = vmatpush1.msra.mxu0 0.0
        %1919 = vmatprep.subr.mxu0 0.0
        %1920 = vmatpush1.msra.mxu0 0.0
        %1921 = vmatprep.subr.mxu0 0.0
        %1922 = vmatpush1.msra.mxu0 0.0
        %1923 = vmatprep.subr.mxu0 0.0
        %1924 = vmatpush1.msra.mxu0 0.0
        %1925 = vmatprep.subr.mxu0 0.0
        %1926 = vmatpush1.msra.mxu0 0.0
        %1927 = vmatprep.subr.mxu0 0.0
        %1928 = vmatpush1.msra.mxu0 0.0
        %1929 = vmatprep.subr.mxu0 0.0
        %1930 = vmatpush1.msra.mxu0 0.0
        %1931 = vmatprep.subr.mxu0 0.0
        %1932 = vmatpush1.msra.mxu0 0.0
        %1933 = vmatprep.subr.mxu0 0.0
        %1934 = vmatpush1.msra.mxu0 0.0
        %1935 = vmatprep.subr.mxu0 0.0
        %1936 = vmatpush1.msra.mxu0 0.0
        %1937 = vmatprep.subr.mxu0 0.0
        %1938 = vmatpush1.msra.mxu0 0.0
        %1939 = vmatprep.subr.mxu0 0.0
        %1940 = vmatpush1.msra.mxu0 0.0
        %1941 = vmatprep.subr.mxu0 0.0
        %1942 = vmatpush1.msra.mxu0 0.0
        %1943 = vmatprep.subr.mxu0 0.0
        %1944 = vmatpush1.msra.mxu0 0.0
        %1945 = vmatprep.subr.mxu0 0.0
        %1946 = vmatpush1.msra.mxu0 0.0
        %1947 = vmatprep.subr.mxu0 0.0
        %1948 = vmatpush1.msra.mxu0 0.0
        %1949 = vmatprep.subr.mxu0 0.0
        %1950 = vmatpush1.msra.mxu0 0.0
        %1951 = vmatprep.subr.mxu0 0.0
        %1952 = vmatpush1.msra.mxu0 0.0
        %1953 = vmatprep.subr.mxu0 0.0
        %1954 = vmatpush1.msra.mxu0 0.0
        %1955 = vmatprep.subr.mxu0 0.0
        %1956 = vmatpush1.msra.mxu0 0.0
        %1957 = vmatprep.subr.mxu0 0.0
        %1958 = vmatpush1.msra.mxu0 0.0
        %1959 = vmatprep.subr.mxu0 0.0
        %1960 = vmatpush1.msra.mxu0 0.0
        %1961 = vmatprep.subr.mxu0 0.0
        %1962 = vmatpush1.msra.mxu0 0.0
        %1963 = vmatprep.subr.mxu0 0.0
        %1964 = vmatpush1.msra.mxu0 0.0
        %1965 = vmatprep.subr.mxu0 0.0
        %1966 = vmatpush1.msra.mxu0 0.0
        %1967 = vmatprep.subr.mxu0 0.0
        %1968 = vmatpush1.msra.mxu0 0.0
        %1969 = vmatprep.subr.mxu0 0.0
        %1970 = vmatpush1.msra.mxu0 0.0
        %1971 = vmatprep.subr.mxu0 0.0
        %1972 = vmatpush1.msra.mxu0 0.0
        %1973 = vmatprep.mubr.f32.mxu0 0.0
        %1974 = vmatmul.mubr.f32.gmra.mrb[0].mxu0 %v715
        %v1975 = vpop.f32.mrb[0].mxu0
        %v1976 = vadd.f32 %v1908, %v1975
        %v1977 = vpop.f32.mrb[0].mxu0
        %1978 = vdwg.mxu0
        %v1979 = vlaneseq
        %v1980 = vshrl.u32 %v1979, 7
        %v1981 = vsub.s32 2, %v1980
        %v1982 = vrot.slane %v631, %v1981
        %1983 = vmatprep.subr.mxu0 0.0
        %1984 = vmatpush1.msra.mxu0 %v623
        %1985 = vmatprep.subr.mxu0 0.0
        %1986 = vmatpush1.msra.mxu0 %v624
        %1987 = vmatprep.subr.mxu0 0.0
        %1988 = vmatpush1.msra.mxu0 %v625
        %1989 = vmatprep.subr.mxu0 0.0
        %1990 = vmatpush1.msra.mxu0 %v626
        %1991 = vmatprep.subr.mxu0 0.0
        %1992 = vmatpush1.msra.mxu0 0.0
        %1993 = vmatprep.subr.mxu0 0.0
        %1994 = vmatpush1.msra.mxu0 0.0
        %1995 = vmatprep.subr.mxu0 0.0
        %1996 = vmatpush1.msra.mxu0 0.0
        %1997 = vmatprep.subr.mxu0 0.0
        %1998 = vmatpush1.msra.mxu0 0.0
        %1999 = vmatprep.subr.mxu0 0.0
        %2000 = vmatpush1.msra.mxu0 0.0
        %2001 = vmatprep.subr.mxu0 0.0
        %2002 = vmatpush1.msra.mxu0 0.0
        %2003 = vmatprep.subr.mxu0 0.0
        %2004 = vmatpush1.msra.mxu0 0.0
        %2005 = vmatprep.subr.mxu0 0.0
        %2006 = vmatpush1.msra.mxu0 0.0
        %2007 = vmatprep.subr.mxu0 0.0
        %2008 = vmatpush1.msra.mxu0 0.0
        %2009 = vmatprep.subr.mxu0 0.0
        %2010 = vmatpush1.msra.mxu0 0.0
        %2011 = vmatprep.subr.mxu0 0.0
        %2012 = vmatpush1.msra.mxu0 0.0
        %2013 = vmatprep.subr.mxu0 0.0
        %2014 = vmatpush1.msra.mxu0 0.0
        %2015 = vmatprep.subr.mxu0 0.0
        %2016 = vmatpush1.msra.mxu0 0.0
        %2017 = vmatprep.subr.mxu0 0.0
        %2018 = vmatpush1.msra.mxu0 0.0
        %2019 = vmatprep.subr.mxu0 0.0
        %2020 = vmatpush1.msra.mxu0 0.0
        %2021 = vmatprep.subr.mxu0 0.0
        %2022 = vmatpush1.msra.mxu0 0.0
        %2023 = vmatprep.subr.mxu0 0.0
        %2024 = vmatpush1.msra.mxu0 0.0
        %2025 = vmatprep.subr.mxu0 0.0
        %2026 = vmatpush1.msra.mxu0 0.0
        %2027 = vmatprep.subr.mxu0 0.0
        %2028 = vmatpush1.msra.mxu0 0.0
        %2029 = vmatprep.subr.mxu0 0.0
        %2030 = vmatpush1.msra.mxu0 0.0
        %2031 = vmatprep.subr.mxu0 0.0
        %2032 = vmatpush1.msra.mxu0 0.0
        %2033 = vmatprep.subr.mxu0 0.0
        %2034 = vmatpush1.msra.mxu0 0.0
        %2035 = vmatprep.subr.mxu0 0.0
        %2036 = vmatpush1.msra.mxu0 0.0
        %2037 = vmatprep.subr.mxu0 0.0
        %2038 = vmatpush1.msra.mxu0 0.0
        %2039 = vmatprep.subr.mxu0 0.0
        %2040 = vmatpush1.msra.mxu0 0.0
        %2041 = vmatprep.subr.mxu0 0.0
        %2042 = vmatpush1.msra.mxu0 0.0
        %2043 = vmatprep.subr.mxu0 0.0
        %2044 = vmatpush1.msra.mxu0 0.0
        %2045 = vmatprep.subr.mxu0 0.0
        %2046 = vmatpush1.msra.mxu0 0.0
        %2047 = vmatprep.mubr.f32.mxu0 0.0
        %2048 = vmatmul.mubr.f32.gmra.mrb[0].mxu0 %v792
        %v2049 = vpop.f32.mrb[0].mxu0
        %v2050 = vadd.f32 %v1982, %v2049
        %v2051 = vpop.f32.mrb[0].mxu0
        %2052 = vdwg.mxu0
        %v2054 = vsel %vm864, %v1902, 0
        %v2057 = vsel %vm864, %v1976, 0
        %2059 = vmatprep.subr.mxu0 0.0
        %2060 = vmatpush1.xpose.msra.mxu0 %v2057
        %2061 = vmatprep.subr.mxu0 0.0
        %2062 = vmatpush1.xpose.msra.mxu0 0.0
        %2063 = vmatprep.subr.mxu0 0.0
        %2064 = vmatpush1.xpose.msra.mxu0 0.0
        %2065 = vmatprep.subr.mxu0 0.0
        %2066 = vmatpush1.xpose.msra.mxu0 0.0
        %2067 = vmatprep.subr.mxu0 0.0
        %2068 = vmatpush1.xpose.msra.mxu0 0.0
        %2069 = vmatprep.subr.mxu0 0.0
        %2070 = vmatpush1.xpose.msra.mxu0 0.0
        %2071 = vmatprep.subr.mxu0 0.0
        %2072 = vmatpush1.xpose.msra.mxu0 0.0
        %2073 = vmatprep.subr.mxu0 0.0
        %2074 = vmatpush1.xpose.msra.mxu0 0.0
        %2075 = vmatprep.subr.mxu0 0.0
        %2076 = vmatpush1.xpose.msra.mxu0 0.0
        %2077 = vmatprep.subr.mxu0 0.0
        %2078 = vmatpush1.xpose.msra.mxu0 0.0
        %2079 = vmatprep.subr.mxu0 0.0
        %2080 = vmatpush1.xpose.msra.mxu0 0.0
        %2081 = vmatprep.subr.mxu0 0.0
        %2082 = vmatpush1.xpose.msra.mxu0 0.0
        %2083 = vmatprep.subr.mxu0 0.0
        %2084 = vmatpush1.xpose.msra.mxu0 0.0
        %2085 = vmatprep.subr.mxu0 0.0
        %2086 = vmatpush1.xpose.msra.mxu0 0.0
        %2087 = vmatprep.subr.mxu0 0.0
        %2088 = vmatpush1.xpose.msra.mxu0 0.0
        %2089 = vmatprep.subr.mxu0 0.0
        %2090 = vmatpush1.xpose.msra.mxu0 0.0
        %2091 = vmatprep.subr.mxu0 0.0
        %2092 = vmatpush1.xpose.msra.mxu0 0.0
        %2093 = vmatprep.subr.mxu0 0.0
        %2094 = vmatpush1.xpose.msra.mxu0 0.0
        %2095 = vmatprep.subr.mxu0 0.0
        %2096 = vmatpush1.xpose.msra.mxu0 0.0
        %2097 = vmatprep.subr.mxu0 0.0
        %2098 = vmatpush1.xpose.msra.mxu0 0.0
        %2099 = vmatprep.subr.mxu0 0.0
        %2100 = vmatpush1.xpose.msra.mxu0 0.0
        %2101 = vmatprep.subr.mxu0 0.0
        %2102 = vmatpush1.xpose.msra.mxu0 0.0
        %2103 = vmatprep.subr.mxu0 0.0
        %2104 = vmatpush1.xpose.msra.mxu0 0.0
        %2105 = vmatprep.subr.mxu0 0.0
        %2106 = vmatpush1.xpose.msra.mxu0 0.0
        %2107 = vmatprep.subr.mxu0 0.0
        %2108 = vmatpush1.xpose.msra.mxu0 0.0
        %2109 = vmatprep.subr.mxu0 0.0
        %2110 = vmatpush1.xpose.msra.mxu0 0.0
        %2111 = vmatprep.subr.mxu0 0.0
        %2112 = vmatpush1.xpose.msra.mxu0 0.0
        %2113 = vmatprep.subr.mxu0 0.0
        %2114 = vmatpush1.xpose.msra.mxu0 0.0
        %2115 = vmatprep.subr.mxu0 0.0
        %2116 = vmatpush1.xpose.msra.mxu0 0.0
        %2117 = vmatprep.subr.mxu0 0.0
        %2118 = vmatpush1.xpose.msra.mxu0 0.0
        %2119 = vmatprep.subr.mxu0 0.0
        %2120 = vmatpush1.xpose.msra.mxu0 0.0
        %2121 = vmatprep.subr.mxu0 0.0
        %2122 = vmatpush1.xpose.msra.mxu0 0.0
        %2123 = vmatprep.mubr.f32.mxu0 0.0
        %2124 = vmatmul.mubr.f32.gmra.mrb[0].mxu0 %v2054
        %v2125 = vpop.f32.mrb[0].mxu0
        %v2126 = vadd.f32 0.0, %v2125
        %v2127 = vpop.f32.mrb[0].mxu0
        %2128 = vdwg.mxu0
        %v2129 = vmul.f32 %v2126, 0.35355338
        %v2130 = vsel %vm864, %v2129, -inf
        %2131 = vmax.xlane.f32.xlu0 %v2130
        %v2132 = vpop.xlane.xlu0 %2131
        %v2133 = vsub.f32 %v2129, %v2132
        %v2134 = vmul.f32 %v2133, 1.442695
        %v2135 = vpow.pop %v2134
        %v2136 = vsel %vm864, %v2135, 0.0
        %2137 = vadd.xlane.f32.xlu0 %v2136
        %v2138 = vpop.xlane.xlu0 %2137
        %v2139 = vrcp.pop %v2138
        %v2140 = vmul.f32 %v2135, %v2139
        %v2142 = vsel %vm864, %v2140, 0
        %2144 = vmatprep.subr.mxu0 0.0
        %2145 = vmatpush1.msra.mxu0 %v2050
        %2146 = vmatprep.subr.mxu0 0.0
        %2147 = vmatpush1.msra.mxu0 0.0
        %2148 = vmatprep.subr.mxu0 0.0
        %2149 = vmatpush1.msra.mxu0 0.0
        %2150 = vmatprep.subr.mxu0 0.0
        %2151 = vmatpush1.msra.mxu0 0.0
        %2152 = vmatprep.subr.mxu0 0.0
        %2153 = vmatpush1.msra.mxu0 0.0
        %2154 = vmatprep.subr.mxu0 0.0
        %2155 = vmatpush1.msra.mxu0 0.0
        %2156 = vmatprep.subr.mxu0 0.0
        %2157 = vmatpush1.msra.mxu0 0.0
        %2158 = vmatprep.subr.mxu0 0.0
        %2159 = vmatpush1.msra.mxu0 0.0
        %2160 = vmatprep.subr.mxu0 0.0
        %2161 = vmatpush1.msra.mxu0 0.0
        %2162 = vmatprep.subr.mxu0 0.0
        %2163 = vmatpush1.msra.mxu0 0.0
        %2164 = vmatprep.subr.mxu0 0.0
        %2165 = vmatpush1.msra.mxu0 0.0
        %2166 = vmatprep.subr.mxu0 0.0
        %2167 = vmatpush1.msra.mxu0 0.0
        %2168 = vmatprep.subr.mxu0 0.0
        %2169 = vmatpush1.msra.mxu0 0.0
        %2170 = vmatprep.subr.mxu0 0.0
        %2171 = vmatpush1.msra.mxu0 0.0
        %2172 = vmatprep.subr.mxu0 0.0
        %2173 = vmatpush1.msra.mxu0 0.0
        %2174 = vmatprep.subr.mxu0 0.0
        %2175 = vmatpush1.msra.mxu0 0.0
        %2176 = vmatprep.subr.mxu0 0.0
        %2177 = vmatpush1.msra.mxu0 0.0
        %2178 = vmatprep.subr.mxu0 0.0
        %2179 = vmatpush1.msra.mxu0 0.0
        %2180 = vmatprep.subr.mxu0 0.0
        %2181 = vmatpush1.msra.mxu0 0.0
        %2182 = vmatprep.subr.mxu0 0.0
        %2183 = vmatpush1.msra.mxu0 0.0
        %2184 = vmatprep.subr.mxu0 0.0
        %2185 = vmatpush1.msra.mxu0 0.0
        %2186 = vmatprep.subr.mxu0 0.0
        %2187 = vmatpush1.msra.mxu0 0.0
        %2188 = vmatprep.subr.mxu0 0.0
        %2189 = vmatpush1.msra.mxu0 0.0
        %2190 = vmatprep.subr.mxu0 0.0
        %2191 = vmatpush1.msra.mxu0 0.0
        %2192 = vmatprep.subr.mxu0 0.0
        %2193 = vmatpush1.msra.mxu0 0.0
        %2194 = vmatprep.subr.mxu0 0.0
        %2195 = vmatpush1.msra.mxu0 0.0
        %2196 = vmatprep.subr.mxu0 0.0
        %2197 = vmatpush1.msra.mxu0 0.0
        %2198 = vmatprep.subr.mxu0 0.0
        %2199 = vmatpush1.msra.mxu0 0.0
        %2200 = vmatprep.subr.mxu0 0.0
        %2201 = vmatpush1.msra.mxu0 0.0
        %2202 = vmatprep.subr.mxu0 0.0
        %2203 = vmatpush1.msra.mxu0 0.0
        %2204 = vmatprep.subr.mxu0 0.0
        %2205 = vmatpush1.msra.mxu0 0.0
        %2206 = vmatprep.subr.mxu0 0.0
        %2207 = vmatpush1.msra.mxu0 0.0
        %2208 = vmatprep.mubr.f32.mxu0 0.0
        %2209 = vmatmul.mubr.f32.gmra.mrb[0].mxu0 %v2142
        %v2210 = vpop.f32.mrb[0].mxu0
        %v2211 = vadd.f32 0.0, %v2210
        %v2212 = vpop.f32.mrb[0].mxu0
        %2213 = vdwg.mxu0
        %2214 = vrot.lane.b32.xlu0 %v1902, 120
        %v2215 = vpop.permute.xlu0 %2214
        %2216 = vrot.lane.b32.xlu0 %v1976, 120
        %v2217 = vpop.permute.xlu0 %2216
        %v2218 = vsel %vm864, %v2215, 0
        %v2220 = vsel %vm864, %v2217, 0
        %2222 = vmatprep.subr.mxu0 0.0
        %2223 = vmatpush1.xpose.msra.mxu0 %v2220
        %2224 = vmatprep.subr.mxu0 0.0
        %2225 = vmatpush1.xpose.msra.mxu0 0.0
        %2226 = vmatprep.subr.mxu0 0.0
        %2227 = vmatpush1.xpose.msra.mxu0 0.0
        %2228 = vmatprep.subr.mxu0 0.0
        %2229 = vmatpush1.xpose.msra.mxu0 0.0
        %2230 = vmatprep.subr.mxu0 0.0
        %2231 = vmatpush1.xpose.msra.mxu0 0.0
        %2232 = vmatprep.subr.mxu0 0.0
        %2233 = vmatpush1.xpose.msra.mxu0 0.0
        %2234 = vmatprep.subr.mxu0 0.0
        %2235 = vmatpush1.xpose.msra.mxu0 0.0
        %2236 = vmatprep.subr.mxu0 0.0
        %2237 = vmatpush1.xpose.msra.mxu0 0.0
        %2238 = vmatprep.subr.mxu0 0.0
        %2239 = vmatpush1.xpose.msra.mxu0 0.0
        %2240 = vmatprep.subr.mxu0 0.0
        %2241 = vmatpush1.xpose.msra.mxu0 0.0
        %2242 = vmatprep.subr.mxu0 0.0
        %2243 = vmatpush1.xpose.msra.mxu0 0.0
        %2244 = vmatprep.subr.mxu0 0.0
        %2245 = vmatpush1.xpose.msra.mxu0 0.0
        %2246 = vmatprep.subr.mxu0 0.0
        %2247 = vmatpush1.xpose.msra.mxu0 0.0
        %2248 = vmatprep.subr.mxu0 0.0
        %2249 = vmatpush1.xpose.msra.mxu0 0.0
        %2250 = vmatprep.subr.mxu0 0.0
        %2251 = vmatpush1.xpose.msra.mxu0 0.0
        %2252 = vmatprep.subr.mxu0 0.0
        %2253 = vmatpush1.xpose.msra.mxu0 0.0
        %2254 = vmatprep.subr.mxu0 0.0
        %2255 = vmatpush1.xpose.msra.mxu0 0.0
        %2256 = vmatprep.subr.mxu0 0.0
        %2257 = vmatpush1.xpose.msra.mxu0 0.0
        %2258 = vmatprep.subr.mxu0 0.0
        %2259 = vmatpush1.xpose.msra.mxu0 0.0
        %2260 = vmatprep.subr.mxu0 0.0
        %2261 = vmatpush1.xpose.msra.mxu0 0.0
        %2262 = vmatprep.subr.mxu0 0.0
        %2263 = vmatpush1.xpose.msra.mxu0 0.0
        %2264 = vmatprep.subr.mxu0 0.0
        %2265 = vmatpush1.xpose.msra.mxu0 0.0
        %2266 = vmatprep.subr.mxu0 0.0
        %2267 = vmatpush1.xpose.msra.mxu0 0.0
        %2268 = vmatprep.subr.mxu0 0.0
        %2269 = vmatpush1.xpose.msra.mxu0 0.0
        %2270 = vmatprep.subr.mxu0 0.0
        %2271 = vmatpush1.xpose.msra.mxu0 0.0
        %2272 = vmatprep.subr.mxu0 0.0
        %2273 = vmatpush1.xpose.msra.mxu0 0.0
        %2274 = vmatprep.subr.mxu0 0.0
        %2275 = vmatpush1.xpose.msra.mxu0 0.0
        %2276 = vmatprep.subr.mxu0 0.0
        %2277 = vmatpush1.xpose.msra.mxu0 0.0
        %2278 = vmatprep.subr.mxu0 0.0
        %2279 = vmatpush1.xpose.msra.mxu0 0.0
        %2280 = vmatprep.subr.mxu0 0.0
        %2281 = vmatpush1.xpose.msra.mxu0 0.0
        %2282 = vmatprep.subr.mxu0 0.0
        %2283 = vmatpush1.xpose.msra.mxu0 0.0
        %2284 = vmatprep.subr.mxu0 0.0
        %2285 = vmatpush1.xpose.msra.mxu0 0.0
        %2286 = vmatprep.mubr.f32.mxu0 0.0
        %2287 = vmatmul.mubr.f32.gmra.mrb[0].mxu0 %v2218
        %v2288 = vpop.f32.mrb[0].mxu0
        %v2289 = vadd.f32 0.0, %v2288
        %v2290 = vpop.f32.mrb[0].mxu0
        %2291 = vdwg.mxu0
        %v2292 = vmul.f32 %v2289, 0.35355338
        %v2293 = vsel %vm864, %v2292, -inf
        %2294 = vmax.xlane.f32.xlu0 %v2293
        %v2295 = vpop.xlane.xlu0 %2294
        %v2296 = vsub.f32 %v2292, %v2295
        %v2297 = vmul.f32 %v2296, 1.442695
        %v2298 = vpow.pop %v2297
        %v2299 = vsel %vm864, %v2298, 0.0
        %2300 = vadd.xlane.f32.xlu0 %v2299
        %v2301 = vpop.xlane.xlu0 %2300
        %v2302 = vrcp.pop %v2301
        %v2303 = vmul.f32 %v2298, %v2302
        %2305 = vrot.lane.b32.xlu0 %v2050, 120
        %v2306 = vpop.permute.xlu0 %2305
        %v2309 = vsel %vm864, %v2303, 0
        %2311 = vmatprep.subr.mxu0 0.0
        %2312 = vmatpush1.msra.mxu0 %v2306
        %2313 = vmatprep.subr.mxu0 0.0
        %2314 = vmatpush1.msra.mxu0 0.0
        %2315 = vmatprep.subr.mxu0 0.0
        %2316 = vmatpush1.msra.mxu0 0.0
        %2317 = vmatprep.subr.mxu0 0.0
        %2318 = vmatpush1.msra.mxu0 0.0
        %2319 = vmatprep.subr.mxu0 0.0
        %2320 = vmatpush1.msra.mxu0 0.0
        %2321 = vmatprep.subr.mxu0 0.0
        %2322 = vmatpush1.msra.mxu0 0.0
        %2323 = vmatprep.subr.mxu0 0.0
        %2324 = vmatpush1.msra.mxu0 0.0
        %2325 = vmatprep.subr.mxu0 0.0
        %2326 = vmatpush1.msra.mxu0 0.0
        %2327 = vmatprep.subr.mxu0 0.0
        %2328 = vmatpush1.msra.mxu0 0.0
        %2329 = vmatprep.subr.mxu0 0.0
        %2330 = vmatpush1.msra.mxu0 0.0
        %2331 = vmatprep.subr.mxu0 0.0
        %2332 = vmatpush1.msra.mxu0 0.0
        %2333 = vmatprep.subr.mxu0 0.0
        %2334 = vmatpush1.msra.mxu0 0.0
        %2335 = vmatprep.subr.mxu0 0.0
        %2336 = vmatpush1.msra.mxu0 0.0
        %2337 = vmatprep.subr.mxu0 0.0
        %2338 = vmatpush1.msra.mxu0 0.0
        %2339 = vmatprep.subr.mxu0 0.0
        %2340 = vmatpush1.msra.mxu0 0.0
        %2341 = vmatprep.subr.mxu0 0.0
        %2342 = vmatpush1.msra.mxu0 0.0
        %2343 = vmatprep.subr.mxu0 0.0
        %2344 = vmatpush1.msra.mxu0 0.0
        %2345 = vmatprep.subr.mxu0 0.0
        %2346 = vmatpush1.msra.mxu0 0.0
        %2347 = vmatprep.subr.mxu0 0.0
        %2348 = vmatpush1.msra.mxu0 0.0
        %2349 = vmatprep.subr.mxu0 0.0
        %2350 = vmatpush1.msra.mxu0 0.0
        %2351 = vmatprep.subr.mxu0 0.0
        %2352 = vmatpush1.msra.mxu0 0.0
        %2353 = vmatprep.subr.mxu0 0.0
        %2354 = vmatpush1.msra.mxu0 0.0
        %2355 = vmatprep.subr.mxu0 0.0
        %2356 = vmatpush1.msra.mxu0 0.0
        %2357 = vmatprep.subr.mxu0 0.0
        %2358 = vmatpush1.msra.mxu0 0.0
        %2359 = vmatprep.subr.mxu0 0.0
        %2360 = vmatpush1.msra.mxu0 0.0
        %2361 = vmatprep.subr.mxu0 0.0
        %2362 = vmatpush1.msra.mxu0 0.0
        %2363 = vmatprep.subr.mxu0 0.0
        %2364 = vmatpush1.msra.mxu0 0.0
        %2365 = vmatprep.subr.mxu0 0.0
        %2366 = vmatpush1.msra.mxu0 0.0
        %2367 = vmatprep.subr.mxu0 0.0
        %2368 = vmatpush1.msra.mxu0 0.0
        %2369 = vmatprep.subr.mxu0 0.0
        %2370 = vmatpush1.msra.mxu0 0.0
        %2371 = vmatprep.subr.mxu0 0.0
        %2372 = vmatpush1.msra.mxu0 0.0
        %2373 = vmatprep.subr.mxu0 0.0
        %2374 = vmatpush1.msra.mxu0 0.0
        %2375 = vmatprep.mubr.f32.mxu0 0.0
        %2376 = vmatmul.mubr.f32.gmra.mrb[0].mxu0 %v2309
        %v2377 = vpop.f32.mrb[0].mxu0
        %v2378 = vadd.f32 0.0, %v2377
        %v2379 = vpop.f32.mrb[0].mxu0
        %2380 = vdwg.mxu0
        %v2382 = vsel %vm864, %v2378, 0
        %2384 = vmatprep.subr.mxu0 0.0
        %2385 = vmatpush1.msra.mxu0 %v628
        %2386 = vmatprep.subr.mxu0 0.0
        %2387 = vmatpush1.msra.mxu0 0.0
        %2388 = vmatprep.subr.mxu0 0.0
        %2389 = vmatpush1.msra.mxu0 0.0
        %2390 = vmatprep.subr.mxu0 0.0
        %2391 = vmatpush1.msra.mxu0 0.0
        %2392 = vmatprep.subr.mxu0 0.0
        %2393 = vmatpush1.msra.mxu0 0.0
        %2394 = vmatprep.subr.mxu0 0.0
        %2395 = vmatpush1.msra.mxu0 0.0
        %2396 = vmatprep.subr.mxu0 0.0
        %2397 = vmatpush1.msra.mxu0 0.0
        %2398 = vmatprep.subr.mxu0 0.0
        %2399 = vmatpush1.msra.mxu0 0.0
        %2400 = vmatprep.subr.mxu0 0.0
        %2401 = vmatpush1.msra.mxu0 0.0
        %2402 = vmatprep.subr.mxu0 0.0
        %2403 = vmatpush1.msra.mxu0 0.0
        %2404 = vmatprep.subr.mxu0 0.0
        %2405 = vmatpush1.msra.mxu0 0.0
        %2406 = vmatprep.subr.mxu0 0.0
        %2407 = vmatpush1.msra.mxu0 0.0
        %2408 = vmatprep.subr.mxu0 0.0
        %2409 = vmatpush1.msra.mxu0 0.0
        %2410 = vmatprep.subr.mxu0 0.0
        %2411 = vmatpush1.msra.mxu0 0.0
        %2412 = vmatprep.subr.mxu0 0.0
        %2413 = vmatpush1.msra.mxu0 0.0
        %2414 = vmatprep.subr.mxu0 0.0
        %2415 = vmatpush1.msra.mxu0 0.0
        %2416 = vmatprep.subr.mxu0 0.0
        %2417 = vmatpush1.msra.mxu0 0.0
        %2418 = vmatprep.subr.mxu0 0.0
        %2419 = vmatpush1.msra.mxu0 0.0
        %2420 = vmatprep.subr.mxu0 0.0
        %2421 = vmatpush1.msra.mxu0 0.0
        %2422 = vmatprep.subr.mxu0 0.0
        %2423 = vmatpush1.msra.mxu0 0.0
        %2424 = vmatprep.subr.mxu0 0.0
        %2425 = vmatpush1.msra.mxu0 0.0
        %2426 = vmatprep.subr.mxu0 0.0
        %2427 = vmatpush1.msra.mxu0 0.0
        %2428 = vmatprep.subr.mxu0 0.0
        %2429 = vmatpush1.msra.mxu0 0.0
        %2430 = vmatprep.subr.mxu0 0.0
        %2431 = vmatpush1.msra.mxu0 0.0
        %2432 = vmatprep.subr.mxu0 0.0
        %2433 = vmatpush1.msra.mxu0 0.0
        %2434 = vmatprep.subr.mxu0 0.0
        %2435 = vmatpush1.msra.mxu0 0.0
        %2436 = vmatprep.subr.mxu0 0.0
        %2437 = vmatpush1.msra.mxu0 0.0
        %2438 = vmatprep.subr.mxu0 0.0
        %2439 = vmatpush1.msra.mxu0 0.0
        %2440 = vmatprep.subr.mxu0 0.0
        %2441 = vmatpush1.msra.mxu0 0.0
        %2442 = vmatprep.subr.mxu0 0.0
        %2443 = vmatpush1.msra.mxu0 0.0
        %2444 = vmatprep.subr.mxu0 0.0
        %2445 = vmatpush1.msra.mxu0 0.0
        %2446 = vmatprep.subr.mxu0 0.0
        %2447 = vmatpush1.msra.mxu0 0.0
        %2448 = vmatprep.mubr.f32.mxu0 0.0
        %2449 = vmatmul.mubr.f32.gmra.mrb[0].mxu0 %v2382
        %v2450 = vpop.f32.mrb[0].mxu0
        %v2451 = vadd.f32 0.0, %v2450
        %v2452 = vpop.f32.mrb[0].mxu0
        %2453 = vdwg.mxu0
        %v2455 = vsel %vm864, %v2211, 0
        %2457 = vmatprep.subr.mxu0 0.0
        %2458 = vmatpush1.msra.mxu0 %v627
        %2459 = vmatprep.subr.mxu0 0.0
        %2460 = vmatpush1.msra.mxu0 0.0
        %2461 = vmatprep.subr.mxu0 0.0
        %2462 = vmatpush1.msra.mxu0 0.0
        %2463 = vmatprep.subr.mxu0 0.0
        %2464 = vmatpush1.msra.mxu0 0.0
        %2465 = vmatprep.subr.mxu0 0.0
        %2466 = vmatpush1.msra.mxu0 0.0
        %2467 = vmatprep.subr.mxu0 0.0
        %2468 = vmatpush1.msra.mxu0 0.0
        %2469 = vmatprep.subr.mxu0 0.0
        %2470 = vmatpush1.msra.mxu0 0.0
        %2471 = vmatprep.subr.mxu0 0.0
        %2472 = vmatpush1.msra.mxu0 0.0
        %2473 = vmatprep.subr.mxu0 0.0
        %2474 = vmatpush1.msra.mxu0 0.0
        %2475 = vmatprep.subr.mxu0 0.0
        %2476 = vmatpush1.msra.mxu0 0.0
        %2477 = vmatprep.subr.mxu0 0.0
        %2478 = vmatpush1.msra.mxu0 0.0
        %2479 = vmatprep.subr.mxu0 0.0
        %2480 = vmatpush1.msra.mxu0 0.0
        %2481 = vmatprep.subr.mxu0 0.0
        %2482 = vmatpush1.msra.mxu0 0.0
        %2483 = vmatprep.subr.mxu0 0.0
        %2484 = vmatpush1.msra.mxu0 0.0
        %2485 = vmatprep.subr.mxu0 0.0
        %2486 = vmatpush1.msra.mxu0 0.0
        %2487 = vmatprep.subr.mxu0 0.0
        %2488 = vmatpush1.msra.mxu0 0.0
        %2489 = vmatprep.subr.mxu0 0.0
        %2490 = vmatpush1.msra.mxu0 0.0
        %2491 = vmatprep.subr.mxu0 0.0
        %2492 = vmatpush1.msra.mxu0 0.0
        %2493 = vmatprep.subr.mxu0 0.0
        %2494 = vmatpush1.msra.mxu0 0.0
        %2495 = vmatprep.subr.mxu0 0.0
        %2496 = vmatpush1.msra.mxu0 0.0
        %2497 = vmatprep.subr.mxu0 0.0
        %2498 = vmatpush1.msra.mxu0 0.0
        %2499 = vmatprep.subr.mxu0 0.0
        %2500 = vmatpush1.msra.mxu0 0.0
        %2501 = vmatprep.subr.mxu0 0.0
        %2502 = vmatpush1.msra.mxu0 0.0
        %2503 = vmatprep.subr.mxu0 0.0
        %2504 = vmatpush1.msra.mxu0 0.0
        %2505 = vmatprep.subr.mxu0 0.0
        %2506 = vmatpush1.msra.mxu0 0.0
        %2507 = vmatprep.subr.mxu0 0.0
        %2508 = vmatpush1.msra.mxu0 0.0
        %2509 = vmatprep.subr.mxu0 0.0
        %2510 = vmatpush1.msra.mxu0 0.0
        %2511 = vmatprep.subr.mxu0 0.0
        %2512 = vmatpush1.msra.mxu0 0.0
        %2513 = vmatprep.subr.mxu0 0.0
        %2514 = vmatpush1.msra.mxu0 0.0
        %2515 = vmatprep.subr.mxu0 0.0
        %2516 = vmatpush1.msra.mxu0 0.0
        %2517 = vmatprep.subr.mxu0 0.0
        %2518 = vmatpush1.msra.mxu0 0.0
        %2519 = vmatprep.subr.mxu0 0.0
        %2520 = vmatpush1.msra.mxu0 0.0
        %2521 = vmatprep.mubr.f32.mxu0 0.0
        %2522 = vmatmul.mubr.f32.gmra.mrb[0].mxu0 %v2455
        %v2523 = vpop.f32.mrb[0].mxu0
        %v2524 = vadd.f32 %v2451, %v2523
        %v2525 = vpop.f32.mrb[0].mxu0
        %2526 = vdwg.mxu0
        %2527 = vrot.lane.b32.xlu0 %v1902, 112
        %v2528 = vpop.permute.xlu0 %2527
        %2529 = vrot.lane.b32.xlu0 %v1976, 112
        %v2530 = vpop.permute.xlu0 %2529
        %v2531 = vsel %vm864, %v2528, 0
        %v2533 = vsel %vm864, %v2530, 0
        %2535 = vmatprep.subr.mxu0 0.0
        %2536 = vmatpush1.xpose.msra.mxu0 %v2533
        %2537 = vmatprep.subr.mxu0 0.0
        %2538 = vmatpush1.xpose.msra.mxu0 0.0
        %2539 = vmatprep.subr.mxu0 0.0
        %2540 = vmatpush1.xpose.msra.mxu0 0.0
        %2541 = vmatprep.subr.mxu0 0.0
        %2542 = vmatpush1.xpose.msra.mxu0 0.0
        %2543 = vmatprep.subr.mxu0 0.0
        %2544 = vmatpush1.xpose.msra.mxu0 0.0
        %2545 = vmatprep.subr.mxu0 0.0
        %2546 = vmatpush1.xpose.msra.mxu0 0.0
        %2547 = vmatprep.subr.mxu0 0.0
        %2548 = vmatpush1.xpose.msra.mxu0 0.0
        %2549 = vmatprep.subr.mxu0 0.0
        %2550 = vmatpush1.xpose.msra.mxu0 0.0
        %2551 = vmatprep.subr.mxu0 0.0
        %2552 = vmatpush1.xpose.msra.mxu0 0.0
        %2553 = vmatprep.subr.mxu0 0.0
        %2554 = vmatpush1.xpose.msra.mxu0 0.0
        %2555 = vmatprep.subr.mxu0 0.0
        %2556 = vmatpush1.xpose.msra.mxu0 0.0
        %2557 = vmatprep.subr.mxu0 0.0
        %2558 = vmatpush1.xpose.msra.mxu0 0.0
        %2559 = vmatprep.subr.mxu0 0.0
        %2560 = vmatpush1.xpose.msra.mxu0 0.0
        %2561 = vmatprep.subr.mxu0 0.0
        %2562 = vmatpush1.xpose.msra.mxu0 0.0
        %2563 = vmatprep.subr.mxu0 0.0
        %2564 = vmatpush1.xpose.msra.mxu0 0.0
        %2565 = vmatprep.subr.mxu0 0.0
        %2566 = vmatpush1.xpose.msra.mxu0 0.0
        %2567 = vmatprep.subr.mxu0 0.0
        %2568 = vmatpush1.xpose.msra.mxu0 0.0
        %2569 = vmatprep.subr.mxu0 0.0
        %2570 = vmatpush1.xpose.msra.mxu0 0.0
        %2571 = vmatprep.subr.mxu0 0.0
        %2572 = vmatpush1.xpose.msra.mxu0 0.0
        %2573 = vmatprep.subr.mxu0 0.0
        %2574 = vmatpush1.xpose.msra.mxu0 0.0
        %2575 = vmatprep.subr.mxu0 0.0
        %2576 = vmatpush1.xpose.msra.mxu0 0.0
        %2577 = vmatprep.subr.mxu0 0.0
        %2578 = vmatpush1.xpose.msra.mxu0 0.0
        %2579 = vmatprep.subr.mxu0 0.0
        %2580 = vmatpush1.xpose.msra.mxu0 0.0
        %2581 = vmatprep.subr.mxu0 0.0
        %2582 = vmatpush1.xpose.msra.mxu0 0.0
        %2583 = vmatprep.subr.mxu0 0.0
        %2584 = vmatpush1.xpose.msra.mxu0 0.0
        %2585 = vmatprep.subr.mxu0 0.0
        %2586 = vmatpush1.xpose.msra.mxu0 0.0
        %2587 = vmatprep.subr.mxu0 0.0
        %2588 = vmatpush1.xpose.msra.mxu0 0.0
        %2589 = vmatprep.subr.mxu0 0.0
        %2590 = vmatpush1.xpose.msra.mxu0 0.0
        %2591 = vmatprep.subr.mxu0 0.0
        %2592 = vmatpush1.xpose.msra.mxu0 0.0
        %2593 = vmatprep.subr.mxu0 0.0
        %2594 = vmatpush1.xpose.msra.mxu0 0.0
        %2595 = vmatprep.subr.mxu0 0.0
        %2596 = vmatpush1.xpose.msra.mxu0 0.0
        %2597 = vmatprep.subr.mxu0 0.0
        %2598 = vmatpush1.xpose.msra.mxu0 0.0
        %2599 = vmatprep.mubr.f32.mxu0 0.0
        %2600 = vmatmul.mubr.f32.gmra.mrb[0].mxu0 %v2531
        %v2601 = vpop.f32.mrb[0].mxu0
        %v2602 = vadd.f32 0.0, %v2601
        %v2603 = vpop.f32.mrb[0].mxu0
        %2604 = vdwg.mxu0
        %v2605 = vmul.f32 %v2602, 0.35355338
        %v2606 = vsel %vm864, %v2605, -inf
        %2607 = vmax.xlane.f32.xlu0 %v2606
        %v2608 = vpop.xlane.xlu0 %2607
        %v2609 = vsub.f32 %v2605, %v2608
        %v2610 = vmul.f32 %v2609, 1.442695
        %v2611 = vpow.pop %v2610
        %v2612 = vsel %vm864, %v2611, 0.0
        %2613 = vadd.xlane.f32.xlu0 %v2612
        %v2614 = vpop.xlane.xlu0 %2613
        %v2615 = vrcp.pop %v2614
        %v2616 = vmul.f32 %v2611, %v2615
        %2617 = vrot.lane.b32.xlu0 %v2050, 112
        %v2618 = vpop.permute.xlu0 %2617
        %v2621 = vsel %vm864, %v2616, 0
        %2623 = vmatprep.subr.mxu0 0.0
        %2624 = vmatpush1.msra.mxu0 %v2618
        %2625 = vmatprep.subr.mxu0 0.0
        %2626 = vmatpush1.msra.mxu0 0.0
        %2627 = vmatprep.subr.mxu0 0.0
        %2628 = vmatpush1.msra.mxu0 0.0
        %2629 = vmatprep.subr.mxu0 0.0
        %2630 = vmatpush1.msra.mxu0 0.0
        %2631 = vmatprep.subr.mxu0 0.0
        %2632 = vmatpush1.msra.mxu0 0.0
        %2633 = vmatprep.subr.mxu0 0.0
        %2634 = vmatpush1.msra.mxu0 0.0
        %2635 = vmatprep.subr.mxu0 0.0
        %2636 = vmatpush1.msra.mxu0 0.0
        %2637 = vmatprep.subr.mxu0 0.0
        %2638 = vmatpush1.msra.mxu0 0.0
        %2639 = vmatprep.subr.mxu0 0.0
        %2640 = vmatpush1.msra.mxu0 0.0
        %2641 = vmatprep.subr.mxu0 0.0
        %2642 = vmatpush1.msra.mxu0 0.0
        %2643 = vmatprep.subr.mxu0 0.0
        %2644 = vmatpush1.msra.mxu0 0.0
        %2645 = vmatprep.subr.mxu0 0.0
        %2646 = vmatpush1.msra.mxu0 0.0
        %2647 = vmatprep.subr.mxu0 0.0
        %2648 = vmatpush1.msra.mxu0 0.0
        %2649 = vmatprep.subr.mxu0 0.0
        %2650 = vmatpush1.msra.mxu0 0.0
        %2651 = vmatprep.subr.mxu0 0.0
        %2652 = vmatpush1.msra.mxu0 0.0
        %2653 = vmatprep.subr.mxu0 0.0
        %2654 = vmatpush1.msra.mxu0 0.0
        %2655 = vmatprep.subr.mxu0 0.0
        %2656 = vmatpush1.msra.mxu0 0.0
        %2657 = vmatprep.subr.mxu0 0.0
        %2658 = vmatpush1.msra.mxu0 0.0
        %2659 = vmatprep.subr.mxu0 0.0
        %2660 = vmatpush1.msra.mxu0 0.0
        %2661 = vmatprep.subr.mxu0 0.0
        %2662 = vmatpush1.msra.mxu0 0.0
        %2663 = vmatprep.subr.mxu0 0.0
        %2664 = vmatpush1.msra.mxu0 0.0
        %2665 = vmatprep.subr.mxu0 0.0
        %2666 = vmatpush1.msra.mxu0 0.0
        %2667 = vmatprep.subr.mxu0 0.0
        %2668 = vmatpush1.msra.mxu0 0.0
        %2669 = vmatprep.subr.mxu0 0.0
        %2670 = vmatpush1.msra.mxu0 0.0
        %2671 = vmatprep.subr.mxu0 0.0
        %2672 = vmatpush1.msra.mxu0 0.0
        %2673 = vmatprep.subr.mxu0 0.0
        %2674 = vmatpush1.msra.mxu0 0.0
        %2675 = vmatprep.subr.mxu0 0.0
        %2676 = vmatpush1.msra.mxu0 0.0
        %2677 = vmatprep.subr.mxu0 0.0
        %2678 = vmatpush1.msra.mxu0 0.0
        %2679 = vmatprep.subr.mxu0 0.0
        %2680 = vmatpush1.msra.mxu0 0.0
        %2681 = vmatprep.subr.mxu0 0.0
        %2682 = vmatpush1.msra.mxu0 0.0
        %2683 = vmatprep.subr.mxu0 0.0
        %2684 = vmatpush1.msra.mxu0 0.0
        %2685 = vmatprep.subr.mxu0 0.0
        %2686 = vmatpush1.msra.mxu0 0.0
        %2687 = vmatprep.mubr.f32.mxu0 0.0
        %2688 = vmatmul.mubr.f32.gmra.mrb[0].mxu0 %v2621
        %v2689 = vpop.f32.mrb[0].mxu0
        %v2690 = vadd.f32 0.0, %v2689
        %v2691 = vpop.f32.mrb[0].mxu0
        %2692 = vdwg.mxu0
        %v2694 = vsel %vm864, %v2690, 0
        %2696 = vmatprep.subr.mxu0 0.0
        %2697 = vmatpush1.msra.mxu0 %v629
        %2698 = vmatprep.subr.mxu0 0.0
        %2699 = vmatpush1.msra.mxu0 0.0
        %2700 = vmatprep.subr.mxu0 0.0
        %2701 = vmatpush1.msra.mxu0 0.0
        %2702 = vmatprep.subr.mxu0 0.0
        %2703 = vmatpush1.msra.mxu0 0.0
        %2704 = vmatprep.subr.mxu0 0.0
        %2705 = vmatpush1.msra.mxu0 0.0
        %2706 = vmatprep.subr.mxu0 0.0
        %2707 = vmatpush1.msra.mxu0 0.0
        %2708 = vmatprep.subr.mxu0 0.0
        %2709 = vmatpush1.msra.mxu0 0.0
        %2710 = vmatprep.subr.mxu0 0.0
        %2711 = vmatpush1.msra.mxu0 0.0
        %2712 = vmatprep.subr.mxu0 0.0
        %2713 = vmatpush1.msra.mxu0 0.0
        %2714 = vmatprep.subr.mxu0 0.0
        %2715 = vmatpush1.msra.mxu0 0.0
        %2716 = vmatprep.subr.mxu0 0.0
        %2717 = vmatpush1.msra.mxu0 0.0
        %2718 = vmatprep.subr.mxu0 0.0
        %2719 = vmatpush1.msra.mxu0 0.0
        %2720 = vmatprep.subr.mxu0 0.0
        %2721 = vmatpush1.msra.mxu0 0.0
        %2722 = vmatprep.subr.mxu0 0.0
        %2723 = vmatpush1.msra.mxu0 0.0
        %2724 = vmatprep.subr.mxu0 0.0
        %2725 = vmatpush1.msra.mxu0 0.0
        %2726 = vmatprep.subr.mxu0 0.0
        %2727 = vmatpush1.msra.mxu0 0.0
        %2728 = vmatprep.subr.mxu0 0.0
        %2729 = vmatpush1.msra.mxu0 0.0
        %2730 = vmatprep.subr.mxu0 0.0
        %2731 = vmatpush1.msra.mxu0 0.0
        %2732 = vmatprep.subr.mxu0 0.0
        %2733 = vmatpush1.msra.mxu0 0.0
        %2734 = vmatprep.subr.mxu0 0.0
        %2735 = vmatpush1.msra.mxu0 0.0
        %2736 = vmatprep.subr.mxu0 0.0
        %2737 = vmatpush1.msra.mxu0 0.0
        %2738 = vmatprep.subr.mxu0 0.0
        %2739 = vmatpush1.msra.mxu0 0.0
        %2740 = vmatprep.subr.mxu0 0.0
        %2741 = vmatpush1.msra.mxu0 0.0
        %2742 = vmatprep.subr.mxu0 0.0
        %2743 = vmatpush1.msra.mxu0 0.0
        %2744 = vmatprep.subr.mxu0 0.0
        %2745 = vmatpush1.msra.mxu0 0.0
        %2746 = vmatprep.subr.mxu0 0.0
        %2747 = vmatpush1.msra.mxu0 0.0
        %2748 = vmatprep.subr.mxu0 0.0
        %2749 = vmatpush1.msra.mxu0 0.0
        %2750 = vmatprep.subr.mxu0 0.0
        %2751 = vmatpush1.msra.mxu0 0.0
        %2752 = vmatprep.subr.mxu0 0.0
        %2753 = vmatpush1.msra.mxu0 0.0
        %2754 = vmatprep.subr.mxu0 0.0
        %2755 = vmatpush1.msra.mxu0 0.0
        %2756 = vmatprep.subr.mxu0 0.0
        %2757 = vmatpush1.msra.mxu0 0.0
        %2758 = vmatprep.subr.mxu0 0.0
        %2759 = vmatpush1.msra.mxu0 0.0
        %2760 = vmatprep.mubr.f32.mxu0 0.0
        %2761 = vmatmul.mubr.f32.gmra.mrb[0].mxu0 %v2694
        %v2762 = vpop.f32.mrb[0].mxu0
        %v2763 = vadd.f32 0.0, %v2762
        %v2764 = vpop.f32.mrb[0].mxu0
        %2765 = vdwg.mxu0
        %v2766 = vadd.f32 %v2524, %v2763
        %2767 = vrot.lane.b32.xlu0 %v1902, 104
        %v2768 = vpop.permute.xlu0 %2767
        %2769 = vrot.lane.b32.xlu0 %v1976, 104
        %v2770 = vpop.permute.xlu0 %2769
        %v2771 = vsel %vm864, %v2768, 0
        %v2773 = vsel %vm864, %v2770, 0
        %2775 = vmatprep.subr.mxu0 0.0
        %2776 = vmatpush1.xpose.msra.mxu0 %v2773
        %2777 = vmatprep.subr.mxu0 0.0
        %2778 = vmatpush1.xpose.msra.mxu0 0.0
        %2779 = vmatprep.subr.mxu0 0.0
        %2780 = vmatpush1.xpose.msra.mxu0 0.0
        %2781 = vmatprep.subr.mxu0 0.0
        %2782 = vmatpush1.xpose.msra.mxu0 0.0
        %2783 = vmatprep.subr.mxu0 0.0
        %2784 = vmatpush1.xpose.msra.mxu0 0.0
        %2785 = vmatprep.subr.mxu0 0.0
        %2786 = vmatpush1.xpose.msra.mxu0 0.0
        %2787 = vmatprep.subr.mxu0 0.0
        %2788 = vmatpush1.xpose.msra.mxu0 0.0
        %2789 = vmatprep.subr.mxu0 0.0
        %2790 = vmatpush1.xpose.msra.mxu0 0.0
        %2791 = vmatprep.subr.mxu0 0.0
        %2792 = vmatpush1.xpose.msra.mxu0 0.0
        %2793 = vmatprep.subr.mxu0 0.0
        %2794 = vmatpush1.xpose.msra.mxu0 0.0
        %2795 = vmatprep.subr.mxu0 0.0
        %2796 = vmatpush1.xpose.msra.mxu0 0.0
        %2797 = vmatprep.subr.mxu0 0.0
        %2798 = vmatpush1.xpose.msra.mxu0 0.0
        %2799 = vmatprep.subr.mxu0 0.0
        %2800 = vmatpush1.xpose.msra.mxu0 0.0
        %2801 = vmatprep.subr.mxu0 0.0
        %2802 = vmatpush1.xpose.msra.mxu0 0.0
        %2803 = vmatprep.subr.mxu0 0.0
        %2804 = vmatpush1.xpose.msra.mxu0 0.0
        %2805 = vmatprep.subr.mxu0 0.0
        %2806 = vmatpush1.xpose.msra.mxu0 0.0
        %2807 = vmatprep.subr.mxu0 0.0
        %2808 = vmatpush1.xpose.msra.mxu0 0.0
        %2809 = vmatprep.subr.mxu0 0.0
        %2810 = vmatpush1.xpose.msra.mxu0 0.0
        %2811 = vmatprep.subr.mxu0 0.0
        %2812 = vmatpush1.xpose.msra.mxu0 0.0
        %2813 = vmatprep.subr.mxu0 0.0
        %2814 = vmatpush1.xpose.msra.mxu0 0.0
        %2815 = vmatprep.subr.mxu0 0.0
        %2816 = vmatpush1.xpose.msra.mxu0 0.0
        %2817 = vmatprep.subr.mxu0 0.0
        %2818 = vmatpush1.xpose.msra.mxu0 0.0
        %2819 = vmatprep.subr.mxu0 0.0
        %2820 = vmatpush1.xpose.msra.mxu0 0.0
        %2821 = vmatprep.subr.mxu0 0.0
        %2822 = vmatpush1.xpose.msra.mxu0 0.0
        %2823 = vmatprep.subr.mxu0 0.0
        %2824 = vmatpush1.xpose.msra.mxu0 0.0
        %2825 = vmatprep.subr.mxu0 0.0
        %2826 = vmatpush1.xpose.msra.mxu0 0.0
        %2827 = vmatprep.subr.mxu0 0.0
        %2828 = vmatpush1.xpose.msra.mxu0 0.0
        %2829 = vmatprep.subr.mxu0 0.0
        %2830 = vmatpush1.xpose.msra.mxu0 0.0
        %2831 = vmatprep.subr.mxu0 0.0
        %2832 = vmatpush1.xpose.msra.mxu0 0.0
        %2833 = vmatprep.subr.mxu0 0.0
        %2834 = vmatpush1.xpose.msra.mxu0 0.0
        %2835 = vmatprep.subr.mxu0 0.0
        %2836 = vmatpush1.xpose.msra.mxu0 0.0
        %2837 = vmatprep.subr.mxu0 0.0
        %2838 = vmatpush1.xpose.msra.mxu0 0.0
        %2839 = vmatprep.mubr.f32.mxu0 0.0
        %2840 = vmatmul.mubr.f32.gmra.mrb[0].mxu0 %v2771
        %v2841 = vpop.f32.mrb[0].mxu0
        %v2842 = vadd.f32 0.0, %v2841
        %v2843 = vpop.f32.mrb[0].mxu0
        %2844 = vdwg.mxu0
        %v2845 = vmul.f32 %v2842, 0.35355338
        %v2846 = vsel %vm864, %v2845, -inf
        %2847 = vmax.xlane.f32.xlu0 %v2846
        %v2848 = vpop.xlane.xlu0 %2847
        %v2849 = vsub.f32 %v2845, %v2848
        %v2850 = vmul.f32 %v2849, 1.442695
        %v2851 = vpow.pop %v2850
        %v2852 = vsel %vm864, %v2851, 0.0
        %2853 = vadd.xlane.f32.xlu0 %v2852
        %v2854 = vpop.xlane.xlu0 %2853
        %v2855 = vrcp.pop %v2854
        %v2856 = vmul.f32 %v2851, %v2855
        %2857 = vrot.lane.b32.xlu0 %v2050, 104
        %v2858 = vpop.permute.xlu0 %2857
        %v2861 = vsel %vm864, %v2856, 0
        %2863 = vmatprep.subr.mxu0 0.0
        %2864 = vmatpush1.msra.mxu0 %v2858
        %2865 = vmatprep.subr.mxu0 0.0
        %2866 = vmatpush1.msra.mxu0 0.0
        %2867 = vmatprep.subr.mxu0 0.0
        %2868 = vmatpush1.msra.mxu0 0.0
        %2869 = vmatprep.subr.mxu0 0.0
        %2870 = vmatpush1.msra.mxu0 0.0
        %2871 = vmatprep.subr.mxu0 0.0
        %2872 = vmatpush1.msra.mxu0 0.0
        %2873 = vmatprep.subr.mxu0 0.0
        %2874 = vmatpush1.msra.mxu0 0.0
        %2875 = vmatprep.subr.mxu0 0.0
        %2876 = vmatpush1.msra.mxu0 0.0
        %2877 = vmatprep.subr.mxu0 0.0
        %2878 = vmatpush1.msra.mxu0 0.0
        %2879 = vmatprep.subr.mxu0 0.0
        %2880 = vmatpush1.msra.mxu0 0.0
        %2881 = vmatprep.subr.mxu0 0.0
        %2882 = vmatpush1.msra.mxu0 0.0
        %2883 = vmatprep.subr.mxu0 0.0
        %2884 = vmatpush1.msra.mxu0 0.0
        %2885 = vmatprep.subr.mxu0 0.0
        %2886 = vmatpush1.msra.mxu0 0.0
        %2887 = vmatprep.subr.mxu0 0.0
        %2888 = vmatpush1.msra.mxu0 0.0
        %2889 = vmatprep.subr.mxu0 0.0
        %2890 = vmatpush1.msra.mxu0 0.0
        %2891 = vmatprep.subr.mxu0 0.0
        %2892 = vmatpush1.msra.mxu0 0.0
        %2893 = vmatprep.subr.mxu0 0.0
        %2894 = vmatpush1.msra.mxu0 0.0
        %2895 = vmatprep.subr.mxu0 0.0
        %2896 = vmatpush1.msra.mxu0 0.0
        %2897 = vmatprep.subr.mxu0 0.0
        %2898 = vmatpush1.msra.mxu0 0.0
        %2899 = vmatprep.subr.mxu0 0.0
        %2900 = vmatpush1.msra.mxu0 0.0
        %2901 = vmatprep.subr.mxu0 0.0
        %2902 = vmatpush1.msra.mxu0 0.0
        %2903 = vmatprep.subr.mxu0 0.0
        %2904 = vmatpush1.msra.mxu0 0.0
        %2905 = vmatprep.subr.mxu0 0.0
        %2906 = vmatpush1.msra.mxu0 0.0
        %2907 = vmatprep.subr.mxu0 0.0
        %2908 = vmatpush1.msra.mxu0 0.0
        %2909 = vmatprep.subr.mxu0 0.0
        %2910 = vmatpush1.msra.mxu0 0.0
        %2911 = vmatprep.subr.mxu0 0.0
        %2912 = vmatpush1.msra.mxu0 0.0
        %2913 = vmatprep.subr.mxu0 0.0
        %2914 = vmatpush1.msra.mxu0 0.0
        %2915 = vmatprep.subr.mxu0 0.0
        %2916 = vmatpush1.msra.mxu0 0.0
        %2917 = vmatprep.subr.mxu0 0.0
        %2918 = vmatpush1.msra.mxu0 0.0
        %2919 = vmatprep.subr.mxu0 0.0
        %2920 = vmatpush1.msra.mxu0 0.0
        %2921 = vmatprep.subr.mxu0 0.0
        %2922 = vmatpush1.msra.mxu0 0.0
        %2923 = vmatprep.subr.mxu0 0.0
        %2924 = vmatpush1.msra.mxu0 0.0
        %2925 = vmatprep.subr.mxu0 0.0
        %2926 = vmatpush1.msra.mxu0 0.0
        %2927 = vmatprep.mubr.f32.mxu0 0.0
        %2928 = vmatmul.mubr.f32.gmra.mrb[0].mxu0 %v2861
        %v2929 = vpop.f32.mrb[0].mxu0
        %v2930 = vadd.f32 0.0, %v2929
        %v2931 = vpop.f32.mrb[0].mxu0
        %2932 = vdwg.mxu0
        %v2934 = vsel %vm864, %v2930, 0
        %2936 = vmatprep.subr.mxu0 0.0
        %2937 = vmatpush1.msra.mxu0 %v630
        %2938 = vmatprep.subr.mxu0 0.0
        %2939 = vmatpush1.msra.mxu0 0.0
        %2940 = vmatprep.subr.mxu0 0.0
        %2941 = vmatpush1.msra.mxu0 0.0
        %2942 = vmatprep.subr.mxu0 0.0
        %2943 = vmatpush1.msra.mxu0 0.0
        %2944 = vmatprep.subr.mxu0 0.0
        %2945 = vmatpush1.msra.mxu0 0.0
        %2946 = vmatprep.subr.mxu0 0.0
        %2947 = vmatpush1.msra.mxu0 0.0
        %2948 = vmatprep.subr.mxu0 0.0
        %2949 = vmatpush1.msra.mxu0 0.0
        %2950 = vmatprep.subr.mxu0 0.0
        %2951 = vmatpush1.msra.mxu0 0.0
        %2952 = vmatprep.subr.mxu0 0.0
        %2953 = vmatpush1.msra.mxu0 0.0
        %2954 = vmatprep.subr.mxu0 0.0
        %2955 = vmatpush1.msra.mxu0 0.0
        %2956 = vmatprep.subr.mxu0 0.0
        %2957 = vmatpush1.msra.mxu0 0.0
        %2958 = vmatprep.subr.mxu0 0.0
        %2959 = vmatpush1.msra.mxu0 0.0
        %2960 = vmatprep.subr.mxu0 0.0
        %2961 = vmatpush1.msra.mxu0 0.0
        %2962 = vmatprep.subr.mxu0 0.0
        %2963 = vmatpush1.msra.mxu0 0.0
        %2964 = vmatprep.subr.mxu0 0.0
        %2965 = vmatpush1.msra.mxu0 0.0
        %2966 = vmatprep.subr.mxu0 0.0
        %2967 = vmatpush1.msra.mxu0 0.0
        %2968 = vmatprep.subr.mxu0 0.0
        %2969 = vmatpush1.msra.mxu0 0.0
        %2970 = vmatprep.subr.mxu0 0.0
        %2971 = vmatpush1.msra.mxu0 0.0
        %2972 = vmatprep.subr.mxu0 0.0
        %2973 = vmatpush1.msra.mxu0 0.0
        %2974 = vmatprep.subr.mxu0 0.0
        %2975 = vmatpush1.msra.mxu0 0.0
        %2976 = vmatprep.subr.mxu0 0.0
        %2977 = vmatpush1.msra.mxu0 0.0
        %2978 = vmatprep.subr.mxu0 0.0
        %2979 = vmatpush1.msra.mxu0 0.0
        %2980 = vmatprep.subr.mxu0 0.0
        %2981 = vmatpush1.msra.mxu0 0.0
        %2982 = vmatprep.subr.mxu0 0.0
        %2983 = vmatpush1.msra.mxu0 0.0
        %2984 = vmatprep.subr.mxu0 0.0
        %2985 = vmatpush1.msra.mxu0 0.0
        %2986 = vmatprep.subr.mxu0 0.0
        %2987 = vmatpush1.msra.mxu0 0.0
        %2988 = vmatprep.subr.mxu0 0.0
        %2989 = vmatpush1.msra.mxu0 0.0
        %2990 = vmatprep.subr.mxu0 0.0
        %2991 = vmatpush1.msra.mxu0 0.0
        %2992 = vmatprep.subr.mxu0 0.0
        %2993 = vmatpush1.msra.mxu0 0.0
        %2994 = vmatprep.subr.mxu0 0.0
        %2995 = vmatpush1.msra.mxu0 0.0
        %2996 = vmatprep.subr.mxu0 0.0
        %2997 = vmatpush1.msra.mxu0 0.0
        %2998 = vmatprep.subr.mxu0 0.0
        %2999 = vmatpush1.msra.mxu0 0.0
        %3000 = vmatprep.mubr.f32.mxu0 0.0
        %3001 = vmatmul.mubr.f32.gmra.mrb[0].mxu0 %v2934
        %v3002 = vpop.f32.mrb[0].mxu0
        %v3003 = vadd.f32 0.0, %v3002
        %v3004 = vpop.f32.mrb[0].mxu0
        %3005 = vdwg.mxu0
        %v3006 = vadd.f32 %v2766, %v3003
        %v3007 = vlaneseq
        %v3008 = vshrl.u32 %v3007, 7
        %v3009 = vsub.s32 3, %v3008
        %v3010 = vrot.slane %v631, %v3009
        %v3011 = vadd.f32 %v3006, %v3010
        %v3012 = vld [vmem:[%s8] sm:$0xff]
        %v3013 = vld [vmem:[%s8 + $0x8] sm:$0xff]
        %v3014 = vld [vmem:[%s8 + $0x10] sm:$0xff]
        %v3015 = vld [vmem:[%s8 + $0x18] sm:$0xff]
        %v3016 = vld [vmem:[%s9] sm:$0x1]
        %v3018 = vlaneseq
        %v3019 = vshrl.u32 %v3018, 7
        %v3020 = vsub.s32 0, %v3019
        %v3021 = vrot.slane %v3016, %v3020
        %v3024 = vsel %vm636, %v3011, 0
        %3026 = vmatprep.subr.mxu0 0.0
        %3027 = vmatpush1.msra.mxu0 %v3012
        %3028 = vmatprep.subr.mxu0 0.0
        %3029 = vmatpush1.msra.mxu0 %v3013
        %3030 = vmatprep.subr.mxu0 0.0
        %3031 = vmatpush1.msra.mxu0 %v3014
        %3032 = vmatprep.subr.mxu0 0.0
        %3033 = vmatpush1.msra.mxu0 %v3015
        %3034 = vmatprep.subr.mxu0 0.0
        %3035 = vmatpush1.msra.mxu0 0.0
        %3036 = vmatprep.subr.mxu0 0.0
        %3037 = vmatpush1.msra.mxu0 0.0
        %3038 = vmatprep.subr.mxu0 0.0
        %3039 = vmatpush1.msra.mxu0 0.0
        %3040 = vmatprep.subr.mxu0 0.0
        %3041 = vmatpush1.msra.mxu0 0.0
        %3042 = vmatprep.subr.mxu0 0.0
        %3043 = vmatpush1.msra.mxu0 0.0
        %3044 = vmatprep.subr.mxu0 0.0
        %3045 = vmatpush1.msra.mxu0 0.0
        %3046 = vmatprep.subr.mxu0 0.0
        %3047 = vmatpush1.msra.mxu0 0.0
        %3048 = vmatprep.subr.mxu0 0.0
        %3049 = vmatpush1.msra.mxu0 0.0
        %3050 = vmatprep.subr.mxu0 0.0
        %3051 = vmatpush1.msra.mxu0 0.0
        %3052 = vmatprep.subr.mxu0 0.0
        %3053 = vmatpush1.msra.mxu0 0.0
        %3054 = vmatprep.subr.mxu0 0.0
        %3055 = vmatpush1.msra.mxu0 0.0
        %3056 = vmatprep.subr.mxu0 0.0
        %3057 = vmatpush1.msra.mxu0 0.0
        %3058 = vmatprep.subr.mxu0 0.0
        %3059 = vmatpush1.msra.mxu0 0.0
        %3060 = vmatprep.subr.mxu0 0.0
        %3061 = vmatpush1.msra.mxu0 0.0
        %3062 = vmatprep.subr.mxu0 0.0
        %3063 = vmatpush1.msra.mxu0 0.0
        %3064 = vmatprep.subr.mxu0 0.0
        %3065 = vmatpush1.msra.mxu0 0.0
        %3066 = vmatprep.subr.mxu0 0.0
        %3067 = vmatpush1.msra.mxu0 0.0
        %3068 = vmatprep.subr.mxu0 0.0
        %3069 = vmatpush1.msra.mxu0 0.0
        %3070 = vmatprep.subr.mxu0 0.0
        %3071 = vmatpush1.msra.mxu0 0.0
        %3072 = vmatprep.subr.mxu0 0.0
        %3073 = vmatpush1.msra.mxu0 0.0
        %3074 = vmatprep.subr.mxu0 0.0
        %3075 = vmatpush1.msra.mxu0 0.0
        %3076 = vmatprep.subr.mxu0 0.0
        %3077 = vmatpush1.msra.mxu0 0.0
        %3078 = vmatprep.subr.mxu0 0.0
        %3079 = vmatpush1.msra.mxu0 0.0
        %3080 = vmatprep.subr.mxu0 0.0
        %3081 = vmatpush1.msra.mxu0 0.0
        %3082 = vmatprep.subr.mxu0 0.0
        %3083 = vmatpush1.msra.mxu0 0.0
        %3084 = vmatprep.subr.mxu0 0.0
        %3085 = vmatpush1.msra.mxu0 0.0
        %3086 = vmatprep.subr.mxu0 0.0
        %3087 = vmatpush1.msra.mxu0 0.0
        %3088 = vmatprep.subr.mxu0 0.0
        %3089 = vmatpush1.msra.mxu0 0.0
        %3090 = vmatprep.mubr.f32.mxu0 0.0
        %3091 = vmatmul.mubr.f32.gmra.mrb[0].mxu0 %v3024
        %v3092 = vpop.f32.mrb[0].mxu0
        %v3093 = vadd.f32 %v3021, %v3092
        %v3094 = vpop.f32.mrb[0].mxu0
        %3095 = vdwg.mxu0
        %v3096 = vmax.f32 %v3093, 0.0
        %v3097 = vld [vmem:[%s10] sm:$0xff]
        %v3098 = vld [vmem:[%s10 + $0x8] sm:$0xff]
        %v3099 = vld [vmem:[%s10 + $0x10] sm:$0xff]
        %v3100 = vld [vmem:[%s10 + $0x18] sm:$0xff]
        %v3101 = vld [vmem:[%s10 + $0x20] sm:$0xff]
        %v3102 = vld [vmem:[%s10 + $0x28] sm:$0xff]
        %v3103 = vld [vmem:[%s10 + $0x30] sm:$0xff]
        %v3104 = vld [vmem:[%s10 + $0x38] sm:$0xff]
        %v3105 = vld [vmem:[%s11] sm:$0x1]
        %v3107 = vlaneseq
        %v3108 = vshrl.u32 %v3107, 7
        %v3109 = vsub.s32 0, %v3108
        %v3110 = vrot.slane %v3105, %v3109
        %vm3112 = vcmask 523264
        %v3114 = vsel %vm3112, %v3096, 0
        %3116 = vmatprep.subr.mxu0 0.0
        %3117 = vmatpush1.msra.mxu0 %v3097
        %3118 = vmatprep.subr.mxu0 0.0
        %3119 = vmatpush1.msra.mxu0 %v3098
        %3120 = vmatprep.subr.mxu0 0.0
        %3121 = vmatpush1.msra.mxu0 %v3099
        %3122 = vmatprep.subr.mxu0 0.0
        %3123 = vmatpush1.msra.mxu0 %v3100
        %3124 = vmatprep.subr.mxu0 0.0
        %3125 = vmatpush1.msra.mxu0 %v3101
        %3126 = vmatprep.subr.mxu0 0.0
        %3127 = vmatpush1.msra.mxu0 %v3102
        %3128 = vmatprep.subr.mxu0 0.0
        %3129 = vmatpush1.msra.mxu0 %v3103
        %3130 = vmatprep.subr.mxu0 0.0
        %3131 = vmatpush1.msra.mxu0 %v3104
        %3132 = vmatprep.subr.mxu0 0.0
        %3133 = vmatpush1.msra.mxu0 0.0
        %3134 = vmatprep.subr.mxu0 0.0
        %3135 = vmatpush1.msra.mxu0 0.0
        %3136 = vmatprep.subr.mxu0 0.0
        %3137 = vmatpush1.msra.mxu0 0.0
        %3138 = vmatprep.subr.mxu0 0.0
        %3139 = vmatpush1.msra.mxu0 0.0
        %3140 = vmatprep.subr.mxu0 0.0
        %3141 = vmatpush1.msra.mxu0 0.0
        %3142 = vmatprep.subr.mxu0 0.0
        %3143 = vmatpush1.msra.mxu0 0.0
        %3144 = vmatprep.subr.mxu0 0.0
        %3145 = vmatpush1.msra.mxu0 0.0
        %3146 = vmatprep.subr.mxu0 0.0
        %3147 = vmatpush1.msra.mxu0 0.0
        %3148 = vmatprep.subr.mxu0 0.0
        %3149 = vmatpush1.msra.mxu0 0.0
        %3150 = vmatprep.subr.mxu0 0.0
        %3151 = vmatpush1.msra.mxu0 0.0
        %3152 = vmatprep.subr.mxu0 0.0
        %3153 = vmatpush1.msra.mxu0 0.0
        %3154 = vmatprep.subr.mxu0 0.0
        %3155 = vmatpush1.msra.mxu0 0.0
        %3156 = vmatprep.subr.mxu0 0.0
        %3157 = vmatpush1.msra.mxu0 0.0
        %3158 = vmatprep.subr.mxu0 0.0
        %3159 = vmatpush1.msra.mxu0 0.0
        %3160 = vmatprep.subr.mxu0 0.0
        %3161 = vmatpush1.msra.mxu0 0.0
        %3162 = vmatprep.subr.mxu0 0.0
        %3163 = vmatpush1.msra.mxu0 0.0
        %3164 = vmatprep.subr.mxu0 0.0
        %3165 = vmatpush1.msra.mxu0 0.0
        %3166 = vmatprep.subr.mxu0 0.0
        %3167 = vmatpush1.msra.mxu0 0.0
        %3168 = vmatprep.subr.mxu0 0.0
        %3169 = vmatpush1.msra.mxu0 0.0
        %3170 = vmatprep.subr.mxu0 0.0
        %3171 = vmatpush1.msra.mxu0 0.0
        %3172 = vmatprep.subr.mxu0 0.0
        %3173 = vmatpush1.msra.mxu0 0.0
        %3174 = vmatprep.subr.mxu0 0.0
        %3175 = vmatpush1.msra.mxu0 0.0
        %3176 = vmatprep.subr.mxu0 0.0
        %3177 = vmatpush1.msra.mxu0 0.0
        %3178 = vmatprep.subr.mxu0 0.0
        %3179 = vmatpush1.msra.mxu0 0.0
        %3180 = vmatprep.mubr.f32.mxu0 0.0
        %3181 = vmatmul.mubr.f32.gmra.mrb[0].mxu0 %v3114
        %v3182 = vpop.f32.mrb[0].mxu0
        %v3183 = vadd.f32 %v3110, %v3182
        %v3184 = vpop.f32.mrb[0].mxu0
        %3185 = vdwg.mxu0
        %v3186 = vld [vmem:[%s12] sm:$0xff]
        %v3187 = vld [vmem:[%s12 + $0x8] sm:$0xff]
        %v3188 = vld [vmem:[%s12 + $0x10] sm:$0xff]
        %v3189 = vld [vmem:[%s12 + $0x18] sm:$0xff]
        %v3190 = vld [vmem:[%s13] sm:$0x1]
        %v3192 = vrot.slane %v3183, 3
        %v3193 = vsel %vm636, %v3192, 0
        %3195 = vmatprep.subr.mxu0 0.0
        %3196 = vmatpush1.msra.mxu0 %v3186
        %3197 = vmatprep.subr.mxu0 0.0
        %3198 = vmatpush1.msra.mxu0 %v3187
        %3199 = vmatprep.subr.mxu0 0.0
        %3200 = vmatpush1.msra.mxu0 %v3188
        %3201 = vmatprep.subr.mxu0 0.0
        %3202 = vmatpush1.msra.mxu0 %v3189
        %3203 = vmatprep.subr.mxu0 0.0
        %3204 = vmatpush1.msra.mxu0 0.0
        %3205 = vmatprep.subr.mxu0 0.0
        %3206 = vmatpush1.msra.mxu0 0.0
        %3207 = vmatprep.subr.mxu0 0.0
        %3208 = vmatpush1.msra.mxu0 0.0
        %3209 = vmatprep.subr.mxu0 0.0
        %3210 = vmatpush1.msra.mxu0 0.0
        %3211 = vmatprep.subr.mxu0 0.0
        %3212 = vmatpush1.msra.mxu0 0.0
        %3213 = vmatprep.subr.mxu0 0.0
        %3214 = vmatpush1.msra.mxu0 0.0
        %3215 = vmatprep.subr.mxu0 0.0
        %3216 = vmatpush1.msra.mxu0 0.0
        %3217 = vmatprep.subr.mxu0 0.0
        %3218 = vmatpush1.msra.mxu0 0.0
        %3219 = vmatprep.subr.mxu0 0.0
        %3220 = vmatpush1.msra.mxu0 0.0
        %3221 = vmatprep.subr.mxu0 0.0
        %3222 = vmatpush1.msra.mxu0 0.0
        %3223 = vmatprep.subr.mxu0 0.0
        %3224 = vmatpush1.msra.mxu0 0.0
        %3225 = vmatprep.subr.mxu0 0.0
        %3226 = vmatpush1.msra.mxu0 0.0
        %3227 = vmatprep.subr.mxu0 0.0
        %3228 = vmatpush1.msra.mxu0 0.0
        %3229 = vmatprep.subr.mxu0 0.0
        %3230 = vmatpush1.msra.mxu0 0.0
        %3231 = vmatprep.subr.mxu0 0.0
        %3232 = vmatpush1.msra.mxu0 0.0
        %3233 = vmatprep.subr.mxu0 0.0
        %3234 = vmatpush1.msra.mxu0 0.0
        %3235 = vmatprep.subr.mxu0 0.0
        %3236 = vmatpush1.msra.mxu0 0.0
        %3237 = vmatprep.subr.mxu0 0.0
        %3238 = vmatpush1.msra.mxu0 0.0
        %3239 = vmatprep.subr.mxu0 0.0
        %3240 = vmatpush1.msra.mxu0 0.0
        %3241 = vmatprep.subr.mxu0 0.0
        %3242 = vmatpush1.msra.mxu0 0.0
        %3243 = vmatprep.subr.mxu0 0.0
        %3244 = vmatpush1.msra.mxu0 0.0
        %3245 = vmatprep.subr.mxu0 0.0
        %3246 = vmatpush1.msra.mxu0 0.0
        %3247 = vmatprep.subr.mxu0 0.0
        %3248 = vmatpush1.msra.mxu0 0.0
        %3249 = vmatprep.subr.mxu0 0.0
        %3250 = vmatpush1.msra.mxu0 0.0
        %3251 = vmatprep.subr.mxu0 0.0
        %3252 = vmatpush1.msra.mxu0 0.0
        %3253 = vmatprep.subr.mxu0 0.0
        %3254 = vmatpush1.msra.mxu0 0.0
        %3255 = vmatprep.subr.mxu0 0.0
        %3256 = vmatpush1.msra.mxu0 0.0
        %3257 = vmatprep.subr.mxu0 0.0
        %3258 = vmatpush1.msra.mxu0 0.0
        %3259 = vmatprep.mubr.f32.mxu0 0.0
        %3260 = vmatmul.mubr.f32.gmra.mrb[0].mxu0 %v3193
        %v3261 = vpop.f32.mrb[0].mxu0
        %v3262 = vadd.f32 %v3190, %v3261
        %v3263 = vpop.f32.mrb[0].mxu0
        %3264 = vdwg.mxu0
        %vm3265 = vcmask 1040384
        %v3266 = vsel %vm3265, %v3262, -inf
        %3267 = vmax.xlane.f32.xlu0 %v3266
        %v3268 = vpop.xlane.xlu0 %3267
        %v3269 = vsub.f32 %v3262, %v3268
        %v3270 = vmul.f32 %v3269, 1.442695
        %v3271 = vpow.pop %v3270
        %v3272 = vsel %vm3265, %v3271, 0.0
        %3273 = vadd.xlane.f32.xlu0 %v3272
        %v3274 = vpop.xlane.xlu0 %3273
        %v3275 = vrcp.pop %v3274
        %v3276 = vmul.f32 %v3271, %v3275
        %3277 = vst [vmem:[%s585] sm:$0x1] %v3276
        %s3278 = sand.u32 %s357, 1
        %s3279 = scalar_lea.sflag [#allocation4], %s3278
        %s3280 = sand.u32 %s357, 1
        %s3281 = scalar_lea.vmem [#allocation11], %s3280
        // Predicated region
        $region97: #{tpu_custom_call.1} parent=75 // pred_check
          %p3282 = pneg %p367
        $region98: #{tpu_custom_call.1} parent=75 // pred_check_branch
          %3284 = sbr.rel (%p3282) target = $region100
        $region99: #{tpu_custom_call.1} parent=75 // pred_region
          %s3286 = ssub.s32 16, 16
          %3287 = vsyncadd %s3279, %s3286
          %s3288 = smul.addr %s35, 16
          %s3289 = scalar_lea.hbm %s14, %s3288
          %s3291 = sshll.u32 %s3281, 4
          %s3292 = int_to_ptr.vmem [resolvable:$true] %s3291
          %3294 = dma.vmem_to_hbm [thread:$0]  %s3292, 16, %s3289, %s3279
        $region100: #{tpu_custom_call.1} parent=75 // pred_fallthru
          _
      $region76: #{tpu_custom_call.1} parent=5 // pred_fallthru
        _
      %p3295 = scmp.le.s32.totalorder 2, %s30
      // Predicated region
      $region101: #{tpu_custom_call.1} parent=5 // pred_check
        %p3296 = pneg %p3295
      $region102: #{tpu_custom_call.1} parent=5 // pred_check_branch
        %3298 = sbr.rel (%p3296) target = $region104
      $region103: #{tpu_custom_call.1} parent=5 // pred_region
        %s3299 = ssub.s32 %s30, 2
        // Predicated region
        $region105: #{tpu_custom_call.1} parent=103 // pred_check
          %p3300 = pneg %p373
        $region106: #{tpu_custom_call.1} parent=103 // pred_check_branch
          %3302 = sbr.rel (%p3300) target = $region108
        $region107: #{tpu_custom_call.1} parent=103 // pred_region
          %s3303 = sand.u32 %s358, 1
          %s3304 = scalar_lea.sflag [#allocation4], %s3303
          %s3305 = sand.u32 %s358, 1
          %s3306 = scalar_lea.vmem [#allocation11], %s3305
          %3307 = dma.done %s3304, 16
        $region108: #{tpu_custom_call.1} parent=103 // pred_fallthru
          _
      $region104: #{tpu_custom_call.1} parent=5 // pred_fallthru
        _
    $region6: #{tpu_custom_call.1} parent=1 // loop_footer
      %s34 = sadd.s32 1, %s30
    $region7: #{tpu_custom_call.1} parent=1 // loop_footer_branch
      %29 = sbr.rel target = $region3
    $region8: #{tpu_custom_call.1} parent=1 // loop_exit
      _
    %3308 = vsyncpa [#allocation3], 1
    %s3309 = scalar_lea.sflag [#allocation3], 1
    %3310 = vsyncpa %s3309, 1
    %3311 = vsyncpa [#allocation6], 1
    %s3312 = scalar_lea.sflag [#allocation6], 1
    %3313 = vsyncpa %s3312, 1
    %3314 = vsyncpa [#allocation9], 1
    %3315 = vsyncpa [#allocation4], 1
    %s3316 = scalar_lea.sflag [#allocation4], 1
    %3317 = vsyncpa %s3316, 1

</llo_original>
